<compile_context>
chip_gen: v6e
topology: v6e:2x2x1
jax: 0.10.0
libtpu: 0.0.40
codegen_flags: <defaults>
</compile_context>

<pallas_src>
import jax
import jax.numpy as jnp
from jax import lax
from jax.experimental import pallas as pl
from jax.experimental.pallas import tpu as pltpu

BN_EPS = 1e-5
LANE = 128


def _lane_pad(c):
    return ((c + LANE - 1) // LANE) * LANE


def _row_band(hp, wp):
    """Pooled rows per grid step: largest divisor of hp with rows*wp <= 1024."""
    best = 1
    for cand in range(1, hp + 1):
        if hp % cand == 0 and cand * wp <= 1024:
            best = cand
    return best


def _vmem_limit_bytes():
    # Generation-aware: ~3/4 of physical VMEM (48 MiB on v7x's 64 MiB,
    # 96 MiB on v5e/v6e's 128 MiB), leaving headroom for compiler temps.
    try:
        cap = int(pltpu.get_tpu_info().vmem_capacity_bytes)
    except Exception:
        cap = 64 * 1024 * 1024
    return cap * 3 // 4


def _mosaic_params():
    return pltpu.CompilerParams(
        dimension_semantics=("parallel", "parallel"),
        vmem_limit_bytes=_vmem_limit_bytes(),
    )


# ---------------------------------------------------------------------------
# Shared conv body: 3x3 conv of the zero-padded band in `pad_ref` (bf16),
# one K = 9*Cin_p contraction for the whole band (M = rt*wp), f32 accumulation,
# per-channel sum / sum-of-squares emitted for the cross-tile BN reduction.
# ---------------------------------------------------------------------------
def _conv_band_store(pad_ref, w_ref, y_ref, st_ref):
    rt, wp, cout_p = y_ref.shape
    cin_p = pad_ref.shape[-1]
    cols = []
    for dy in range(3):
        for dx in range(3):
            tap = pad_ref[dy:dy + rt, dx:dx + wp, :]
            cols.append(tap.reshape(rt * wp, cin_p))
    patch = jnp.concatenate(cols, axis=1)                 # (rt*wp, 9*cin_p) bf16
    acc = jnp.dot(patch, w_ref[...], preferred_element_type=jnp.float32)
    y_ref[...] = acc.reshape(rt, wp, cout_p).astype(y_ref.dtype)
    # BN partial statistics from the f32 accumulator (no second pass).
    st_ref[0:1, :] = jnp.sum(acc, axis=0, keepdims=True)
    st_ref[1:2, :] = jnp.sum(acc * acc, axis=0, keepdims=True)


def _zero_border_cols(pad_ref, rt, wp, cin_p):
    zcol = jnp.zeros((rt + 2, 1, cin_p), pad_ref.dtype)
    pad_ref[:, 0:1, :] = zcol
    pad_ref[:, wp + 1:wp + 2, :] = zcol


def _mask_boundary_halo_rows(pad_ref, rt, wp, cin_p):
    j = pl.program_id(1)
    nb = pl.num_programs(1)

    @pl.when(j == 0)
    def _():
        pad_ref[0:1, 1:wp + 1, :] = jnp.zeros((1, wp, cin_p), pad_ref.dtype)

    @pl.when(j + 1 == nb)
    def _():
        pad_ref[rt + 1:rt + 2, 1:wp + 1, :] = jnp.zeros((1, wp, cin_p),
                                                        pad_ref.dtype)


# ---------------------------------------------------------------------------
# Kernel 1: 2x2 max-pool fused into conv1's input stage (one row band / step).
#   x_*_ref: (rows, 2, Wp, 2*Cin) blocks of the free-reshaped NHWC input.
# ---------------------------------------------------------------------------
def _pool_conv_kernel(x_mid_ref, x_top_ref, x_bot_ref, w_ref,
                      y_ref, st_ref, pad_ref):
    rt, _, wp, two_cin = x_mid_ref.shape
    cin = two_cin // 2
    cin_p = pad_ref.shape[-1]

    def pool(v):
        hmax = jnp.maximum(v[:, 0], v[:, 1])                     # pool along H
        p = jnp.maximum(hmax[..., :cin], hmax[..., cin:])        # pool along W
        if cin_p > cin:                                          # full-lane pad
            p = jnp.concatenate(
                [p, jnp.zeros(p.shape[:-1] + (cin_p - cin,), p.dtype)], axis=-1)
        return p

    band = jnp.concatenate(
        [pool(x_top_ref[...]), pool(x_mid_ref[...]), pool(x_bot_ref[...])],
        axis=0)                                                  # (rt+2, wp, cin_p)
    pad_ref[:, 1:wp + 1, :] = band.astype(pad_ref.dtype)
    _zero_border_cols(pad_ref, rt, wp, cin_p)
    _mask_boundary_halo_rows(pad_ref, rt, wp, cin_p)
    _conv_band_store(pad_ref, w_ref, y_ref, st_ref)


# ---------------------------------------------------------------------------
# Kernel 2: BN1 (scale/shift form) + ReLU fused into conv2's input stage.
# ---------------------------------------------------------------------------
def _bn_relu_conv_kernel(y_mid_ref, y_top_ref, y_bot_ref, scale_ref, shift_ref,
                         w_ref, y_ref, st_ref, pad_ref):
    rt, wp, cin_p = y_mid_ref.shape
    scale = scale_ref[...].reshape(1, 1, cin_p)
    shift = shift_ref[...].reshape(1, 1, cin_p)

    def act(v):
        return jnp.maximum(v.astype(jnp.float32) * scale + shift, 0.0)

    band = jnp.concatenate(
        [act(y_top_ref[...]), act(y_mid_ref[...]), act(y_bot_ref[...])], axis=0)
    pad_ref[:, 1:wp + 1, :] = band.astype(pad_ref.dtype)
    _zero_border_cols(pad_ref, rt, wp, cin_p)
    _mask_boundary_halo_rows(pad_ref, rt, wp, cin_p)
    _conv_band_store(pad_ref, w_ref, y_ref, st_ref)


# ---------------------------------------------------------------------------
# Kernel 3: final BN2 + ReLU, lane-dense (full padded channel width) output.
# ---------------------------------------------------------------------------
def _bn_relu_kernel(y_ref, scale_ref, shift_ref, o_ref):
    cp = y_ref.shape[-1]
    y = (y_ref[...].astype(jnp.float32) * scale_ref[...].reshape(1, 1, cp)
         + shift_ref[...].reshape(1, 1, cp))
    o_ref[...] = jnp.maximum(y, 0.0).astype(o_ref.dtype)


# ---------------------------------------------------------------------------
# pallas_call wrappers
# ---------------------------------------------------------------------------
def _pool_conv(x_r, w_mat, cin_p, rt):
    n, hp, _, wp, two_cin = x_r.shape
    nb = hp // rt
    cout_p = w_mat.shape[1]
    top_map = lambda i, j: (i, jnp.maximum(j * rt - 1, 0), 0, 0, 0)
    bot_map = lambda i, j: (i, jnp.minimum(j * rt + rt, hp - 1), 0, 0, 0)
    return pl.pallas_call(
        _pool_conv_kernel,
        grid=(n, nb),
        in_specs=[
            pl.BlockSpec((None, rt, 2, wp, two_cin), lambda i, j: (i, j, 0, 0, 0)),
            pl.BlockSpec((None, 1, 2, wp, two_cin), top_map),
            pl.BlockSpec((None, 1, 2, wp, two_cin), bot_map),
            pl.BlockSpec(w_mat.shape, lambda i, j: (0, 0)),
        ],
        out_specs=[
            pl.BlockSpec((None, rt, wp, cout_p), lambda i, j: (i, j, 0, 0)),
            pl.BlockSpec((None, None, 2, cout_p), lambda i, j: (i, j, 0, 0)),
        ],
        out_shape=[
            jax.ShapeDtypeStruct((n, hp, wp, cout_p), jnp.bfloat16),
            jax.ShapeDtypeStruct((n, nb, 2, cout_p), jnp.float32),
        ],
        scratch_shapes=[pltpu.VMEM((rt + 2, wp + 2, cin_p), jnp.bfloat16)],
        compiler_params=_mosaic_params(),
    )(x_r, x_r, x_r, w_mat)


def _bn_relu_conv(y_in, scale, shift, w_mat, rt):
    n, hp, wp, cin_p = y_in.shape
    nb = hp // rt
    cout_p = w_mat.shape[1]
    top_map = lambda i, j: (i, jnp.maximum(j * rt - 1, 0), 0, 0)
    bot_map = lambda i, j: (i, jnp.minimum(j * rt + rt, hp - 1), 0, 0)
    return pl.pallas_call(
        _bn_relu_conv_kernel,
        grid=(n, nb),
        in_specs=[
            pl.BlockSpec((None, rt, wp, cin_p), lambda i, j: (i, j, 0, 0)),
            pl.BlockSpec((None, 1, wp, cin_p), top_map),
            pl.BlockSpec((None, 1, wp, cin_p), bot_map),
            pl.BlockSpec((1, cin_p), lambda i, j: (0, 0)),
            pl.BlockSpec((1, cin_p), lambda i, j: (0, 0)),
            pl.BlockSpec(w_mat.shape, lambda i, j: (0, 0)),
        ],
        out_specs=[
            pl.BlockSpec((None, rt, wp, cout_p), lambda i, j: (i, j, 0, 0)),
            pl.BlockSpec((None, None, 2, cout_p), lambda i, j: (i, j, 0, 0)),
        ],
        out_shape=[
            jax.ShapeDtypeStruct((n, hp, wp, cout_p), jnp.bfloat16),
            jax.ShapeDtypeStruct((n, nb, 2, cout_p), jnp.float32),
        ],
        scratch_shapes=[pltpu.VMEM((rt + 2, wp + 2, cin_p), jnp.bfloat16)],
        compiler_params=_mosaic_params(),
    )(y_in, y_in, y_in, scale, shift, w_mat)


def _bn_relu(y_in, scale, shift, rt):
    n, hp, wp, cp = y_in.shape
    nb = hp // rt
    return pl.pallas_call(
        _bn_relu_kernel,
        grid=(n, nb),
        in_specs=[
            pl.BlockSpec((None, rt, wp, cp), lambda i, j: (i, j, 0, 0)),
            pl.BlockSpec((1, cp), lambda i, j: (0, 0)),
            pl.BlockSpec((1, cp), lambda i, j: (0, 0)),
        ],
        out_specs=pl.BlockSpec((None, rt, wp, cp), lambda i, j: (i, j, 0, 0)),
        out_shape=jax.ShapeDtypeStruct((n, hp, wp, cp), jnp.float32),
        compiler_params=_mosaic_params(),
    )(y_in, scale, shift)


# ---------------------------------------------------------------------------
# Parameter packing / BN finalize (O(C) glue)
# ---------------------------------------------------------------------------
def _pack_weight(w_hwio, cin_p, cout_p):
    kh, kw, cin, cout = w_hwio.shape
    wp_ = jnp.zeros((kh, kw, cin_p, cout_p), jnp.float32)
    wp_ = wp_.at[:, :, :cin, :cout].set(w_hwio.astype(jnp.float32))
    # tap-major (dy, dx, cin) rows, matches the im2col concat order; bf16 MXU.
    return wp_.reshape(kh * kw * cin_p, cout_p).astype(jnp.bfloat16)


def _bn_scale_shift(stats, gamma, beta, count):
    """Reduce per-(image,band) (sum, sumsq) partials -> per-channel scale/shift."""
    c_pad = stats.shape[-1]
    c = gamma.shape[0]
    s = jnp.sum(stats, axis=(0, 1))                       # (2, c_pad), f32
    mean = s[0] / count
    # NOTE: E[x^2]-E[x]^2 in f32; fine at these counts (clamped for safety).
    var = jnp.maximum(s[1] / count - mean * mean, 0.0)    # biased (training) var
    g = jnp.zeros((c_pad,), jnp.float32).at[:c].set(gamma.astype(jnp.float32))
    b = jnp.zeros((c_pad,), jnp.float32).at[:c].set(beta.astype(jnp.float32))
    scale = g * lax.rsqrt(var + BN_EPS)
    shift = b - mean * scale
    return scale.reshape(1, c_pad), shift.reshape(1, c_pad)


# ---------------------------------------------------------------------------
# Down.forward
# ---------------------------------------------------------------------------
def down_forward(x_nchw, params):
    n, cin, h, w = x_nchw.shape
    assert h % 2 == 0 and w % 2 == 0
    c1 = params["w1"].shape[-1]
    c2 = params["w2"].shape[-1]
    cin_p, c1_p, c2_p = _lane_pad(cin), _lane_pad(c1), _lane_pad(c2)
    hp, wp = h // 2, w // 2
    rt = _row_band(hp, wp)

    x = jnp.transpose(x_nchw, (0, 2, 3, 1))          # boundary layout glue only
    # Free row-major reshape exposes the 2x2 pooling window (middle axis + lane
    # halves) with zero extra HBM traffic.
    x_r = x.reshape(n, hp, 2, wp, 2 * cin)

    w1 = _pack_weight(params["w1"], cin_p, c1_p)
    w2 = _pack_weight(params["w2"], c1_p, c2_p)

    # maxpool + conv1 (raw, bf16) + per-band BN partial sums
    y1, st1 = _pool_conv(x_r, w1, cin_p, rt)
    scale1, shift1 = _bn_scale_shift(st1, params["gamma1"], params["beta1"],
                                     n * hp * wp)

    # BN1+ReLU fused into conv2's input stage; conv2 (raw) + partial sums
    y2, st2 = _bn_relu_conv(y1, scale1, shift1, w2, rt)
    scale2, shift2 = _bn_scale_shift(st2, params["gamma2"], params["beta2"],
                                     n * hp * wp)

    # final BN2 + ReLU: lane-dense kernel store, channel slice done in XLA.
    out = _bn_relu(y2, scale2, shift2, rt)[..., :c2]
    return jnp.transpose(out, (0, 3, 1, 2))          # boundary layout glue only


# ---------------------------------------------------------------------------
# Pure-JAX reference (correctness check; mirrors the kernel's bf16 cast points)
# ---------------------------------------------------------------------------
def down_reference(x_nchw, params):
    def q(v):
        return v.astype(jnp.bfloat16).astype(jnp.float32)

    def conv_bn_relu(a, w, gamma, beta):
        y = lax.conv_general_dilated(
            q(a), q(w), window_strides=(1, 1), padding=((1, 1), (1, 1)),
            dimension_numbers=("NHWC", "HWIO", "NHWC"),
            precision=lax.Precision.HIGHEST)
        mean = jnp.mean(y, axis=(0, 1, 2), keepdims=True)
        var = jnp.mean((y - mean) ** 2, axis=(0, 1, 2), keepdims=True)
        yq = q(y)                      # kernels store the conv output as bf16
        out = (yq - mean) * lax.rsqrt(var + BN_EPS) * gamma + beta
        return jnp.maximum(out, 0.0)

    x = jnp.transpose(x_nchw, (0, 2, 3, 1))
    x = lax.reduce_window(x, -jnp.inf, lax.max, (1, 2, 2, 1), (1, 2, 2, 1),
                          "VALID")
    a1 = conv_bn_relu(x, params["w1"], params["gamma1"], params["beta1"])
    a2 = conv_bn_relu(a1, params["w2"], params["gamma2"], params["beta2"])
    return jnp.transpose(a2, (0, 3, 1, 2))


if __name__ == "__main__":
    N, Cin, Cout, H, W = 2, 4, 8, 16, 16

    key = jax.random.PRNGKey(0)
    kx, kw1, kw2, kg1, kb1, kg2, kb2 = jax.random.split(key, 7)

    x = jax.random.normal(kx, (N, Cin, H, W), jnp.float32)

    # Conv2d has bias=False; BN affine parameters exercised with non-trivial
    # values (forward semantics identical to a fresh training-mode module).
    params = {
        "w1": 0.1 * jax.random.normal(kw1, (3, 3, Cin, Cout), jnp.float32),
        "gamma1": 1.0 + 0.1 * jax.random.normal(kg1, (Cout,), jnp.float32),
        "beta1": 0.1 * jax.random.normal(kb1, (Cout,), jnp.float32),
        "w2": 0.1 * jax.random.normal(kw2, (3, 3, Cout, Cout), jnp.float32),
        "gamma2": 1.0 + 0.1 * jax.random.normal(kg2, (Cout,), jnp.float32),
        "beta2": 0.1 * jax.random.normal(kb2, (Cout,), jnp.float32),
    }

    down = jax.jit(down_forward)
    out = jax.block_until_ready(down(x, params))
    ref = jax.block_until_ready(down_reference(x, params))

    assert out.shape == (N, Cout, H // 2, W // 2), out.shape
    if not bool(jnp.allclose(out, ref, atol=1e-2, rtol=1e-2)):
        err = float(jnp.max(jnp.abs(out - ref)))
        raise AssertionError(
            f"Pallas Down output mismatches JAX reference (max abs err {err})")

    print("KERNEL_OK")
</pallas_src>

<mosaic_0001>
module attributes {stable_mosaic.version = 11 : i64} {
  func.func @_pool_conv_kernel(%arg0: i32, %arg1: i32, %arg2: memref<1x8x2x8x8xf32, #tpu.memory_space<vmem>>, %arg3: memref<1x1x2x8x8xf32, #tpu.memory_space<vmem>>, %arg4: memref<1x1x2x8x8xf32, #tpu.memory_space<vmem>>, %arg5: memref<1152x128xbf16, #tpu.memory_space<vmem>>, %arg6: memref<1x8x8x128xbf16, #tpu.memory_space<vmem>>, %arg7: memref<1x1x2x128xf32, #tpu.memory_space<vmem>>, %arg8: memref<10x10x128xbf16, #tpu.memory_space<vmem>>) attributes {dimension_semantics = [#tpu.dimension_semantics<parallel>, #tpu.dimension_semantics<parallel>], iteration_bounds = array<i64: 2, 1>, scalar_prefetch = 0 : i64, scratch_operands = 1 : i64, tpu.core_type = #tpu.core_type<tc>, window_params = [{transform_indices = @transform_0, window_bounds = array<i64: 1, 8, 2, 8, 8>}, {transform_indices = @transform_1, window_bounds = array<i64: 1, 1, 2, 8, 8>}, {transform_indices = @transform_2, window_bounds = array<i64: 1, 1, 2, 8, 8>}, {pipeline_mode = #tpu.pipeline_mode<synchronous>, transform_indices = @transform_3, window_bounds = array<i64: 1152, 128>}, {transform_indices = @transform_4, window_bounds = array<i64: 1, 8, 8, 128>}, {transform_indices = @transform_5, window_bounds = array<i64: 1, 1, 2, 128>}]} {
    %c0 = arith.constant 0 : index
    %c0_0 = arith.constant 0 : index
    %c0_1 = arith.constant 0 : index
    %c0_2 = arith.constant 0 : index
    %c0_3 = arith.constant 0 : index
    %0 = vector.load %arg3[%c0, %c0_0, %c0_1, %c0_2, %c0_3] : memref<1x1x2x8x8xf32, #tpu.memory_space<vmem>>, vector<1x1x2x8x8xf32>
    %1 = vector.shape_cast %0 : vector<1x1x2x8x8xf32> to vector<1x2x8x8xf32>
    %2 = vector.extract_strided_slice %1 {offsets = [0, 0, 0, 0], sizes = [1, 1, 8, 8], strides = [1, 1, 1, 1]} : vector<1x2x8x8xf32> to vector<1x1x8x8xf32>
    %3 = vector.shape_cast %2 : vector<1x1x8x8xf32> to vector<1x8x8xf32>
    %4 = vector.extract_strided_slice %1 {offsets = [0, 1, 0, 0], sizes = [1, 1, 8, 8], strides = [1, 1, 1, 1]} : vector<1x2x8x8xf32> to vector<1x1x8x8xf32>
    %5 = vector.shape_cast %4 : vector<1x1x8x8xf32> to vector<1x8x8xf32>
    %6 = arith.maximumf %3, %5 : vector<1x8x8xf32>
    %7 = vector.extract_strided_slice %6 {offsets = [0, 0, 0], sizes = [1, 8, 4], strides = [1, 1, 1]} : vector<1x8x8xf32> to vector<1x8x4xf32>
    %8 = vector.extract_strided_slice %6 {offsets = [0, 0, 4], sizes = [1, 8, 4], strides = [1, 1, 1]} : vector<1x8x8xf32> to vector<1x8x4xf32>
    %9 = arith.maximumf %7, %8 : vector<1x8x4xf32>
    %cst = arith.constant 0.000000e+00 : f32
    %10 = vector.broadcast %cst : f32 to vector<1x8x124xf32>
    %11 = tpu.concatenate %9, %10 in 2 : vector<1x8x4xf32>, vector<1x8x124xf32> -> vector<1x8x128xf32>
    %c0_4 = arith.constant 0 : index
    %c0_5 = arith.constant 0 : index
    %c0_6 = arith.constant 0 : index
    %c0_7 = arith.constant 0 : index
    %c0_8 = arith.constant 0 : index
    %12 = vector.load %arg2[%c0_4, %c0_5, %c0_6, %c0_7, %c0_8] : memref<1x8x2x8x8xf32, #tpu.memory_space<vmem>>, vector<1x8x2x8x8xf32>
    %13 = vector.shape_cast %12 : vector<1x8x2x8x8xf32> to vector<8x2x8x8xf32>
    %14 = vector.extract_strided_slice %13 {offsets = [0, 0, 0, 0], sizes = [8, 1, 8, 8], strides = [1, 1, 1, 1]} : vector<8x2x8x8xf32> to vector<8x1x8x8xf32>
    %15 = vector.shape_cast %14 : vector<8x1x8x8xf32> to vector<8x8x8xf32>
    %16 = vector.extract_strided_slice %13 {offsets = [0, 1, 0, 0], sizes = [8, 1, 8, 8], strides = [1, 1, 1, 1]} : vector<8x2x8x8xf32> to vector<8x1x8x8xf32>
    %17 = vector.shape_cast %16 : vector<8x1x8x8xf32> to vector<8x8x8xf32>
    %18 = arith.maximumf %15, %17 : vector<8x8x8xf32>
    %19 = vector.extract_strided_slice %18 {offsets = [0, 0, 0], sizes = [8, 8, 4], strides = [1, 1, 1]} : vector<8x8x8xf32> to vector<8x8x4xf32>
    %20 = vector.extract_strided_slice %18 {offsets = [0, 0, 4], sizes = [8, 8, 4], strides = [1, 1, 1]} : vector<8x8x8xf32> to vector<8x8x4xf32>
    %21 = arith.maximumf %19, %20 : vector<8x8x4xf32>
    %cst_9 = arith.constant 0.000000e+00 : f32
    %22 = vector.broadcast %cst_9 : f32 to vector<8x8x124xf32>
    %23 = tpu.concatenate %21, %22 in 2 : vector<8x8x4xf32>, vector<8x8x124xf32> -> vector<8x8x128xf32>
    %c0_10 = arith.constant 0 : index
    %c0_11 = arith.constant 0 : index
    %c0_12 = arith.constant 0 : index
    %c0_13 = arith.constant 0 : index
    %c0_14 = arith.constant 0 : index
    %24 = vector.load %arg4[%c0_10, %c0_11, %c0_12, %c0_13, %c0_14] : memref<1x1x2x8x8xf32, #tpu.memory_space<vmem>>, vector<1x1x2x8x8xf32>
    %25 = vector.shape_cast %24 : vector<1x1x2x8x8xf32> to vector<1x2x8x8xf32>
    %26 = vector.extract_strided_slice %25 {offsets = [0, 0, 0, 0], sizes = [1, 1, 8, 8], strides = [1, 1, 1, 1]} : vector<1x2x8x8xf32> to vector<1x1x8x8xf32>
    %27 = vector.shape_cast %26 : vector<1x1x8x8xf32> to vector<1x8x8xf32>
    %28 = vector.extract_strided_slice %25 {offsets = [0, 1, 0, 0], sizes = [1, 1, 8, 8], strides = [1, 1, 1, 1]} : vector<1x2x8x8xf32> to vector<1x1x8x8xf32>
    %29 = vector.shape_cast %28 : vector<1x1x8x8xf32> to vector<1x8x8xf32>
    %30 = arith.maximumf %27, %29 : vector<1x8x8xf32>
    %31 = vector.extract_strided_slice %30 {offsets = [0, 0, 0], sizes = [1, 8, 4], strides = [1, 1, 1]} : vector<1x8x8xf32> to vector<1x8x4xf32>
    %32 = vector.extract_strided_slice %30 {offsets = [0, 0, 4], sizes = [1, 8, 4], strides = [1, 1, 1]} : vector<1x8x8xf32> to vector<1x8x4xf32>
    %33 = arith.maximumf %31, %32 : vector<1x8x4xf32>
    %cst_15 = arith.constant 0.000000e+00 : f32
    %34 = vector.broadcast %cst_15 : f32 to vector<1x8x124xf32>
    %35 = tpu.concatenate %33, %34 in 2 : vector<1x8x4xf32>, vector<1x8x124xf32> -> vector<1x8x128xf32>
    %36 = tpu.concatenate %11, %23, %35 in 0 : vector<1x8x128xf32>, vector<8x8x128xf32>, vector<1x8x128xf32> -> vector<10x8x128xf32>
    %37 = arith.truncf %36 : vector<10x8x128xf32> to vector<10x8x128xbf16>
    %c0_16 = arith.constant 0 : index
    %c1 = arith.constant 1 : index
    %c0_17 = arith.constant 0 : index
    %38 = vector.load %arg8[%c0_16, %c1, %c0_17] : memref<10x10x128xbf16, #tpu.memory_space<vmem>>, vector<10x8x128xbf16>
    tpu.vector_store %arg8[%c0_16, %c1, %c0_17], %37 {strides = array<i32>} : memref<10x10x128xbf16, #tpu.memory_space<vmem>>, vector<10x8x128xbf16>,
    %cst_18 = arith.constant 0.000000e+00 : bf16
    %39 = vector.broadcast %cst_18 : bf16 to vector<10x1x128xbf16>
    %c0_19 = arith.constant 0 : index
    %c0_20 = arith.constant 0 : index
    %c0_21 = arith.constant 0 : index
    %40 = vector.load %arg8[%c0_19, %c0_20, %c0_21] : memref<10x10x128xbf16, #tpu.memory_space<vmem>>, vector<10x1x128xbf16>
    tpu.vector_store %arg8[%c0_19, %c0_20, %c0_21], %39 {strides = array<i32>} : memref<10x10x128xbf16, #tpu.memory_space<vmem>>, vector<10x1x128xbf16>,
    %c0_22 = arith.constant 0 : index
    %c9 = arith.constant 9 : index
    %c0_23 = arith.constant 0 : index
    %41 = vector.load %arg8[%c0_22, %c9, %c0_23] : memref<10x10x128xbf16, #tpu.memory_space<vmem>>, vector<10x1x128xbf16>
    tpu.vector_store %arg8[%c0_22, %c9, %c0_23], %39 {strides = array<i32>} : memref<10x10x128xbf16, #tpu.memory_space<vmem>>, vector<10x1x128xbf16>,
    %c0_i32 = arith.constant 0 : i32
    %42 = arith.cmpi eq, %arg1, %c0_i32 : i32
    %43 = arith.extui %42 : i1 to i32
    %c0_i32_24 = arith.constant 0 : i32
    %44 = arith.cmpi ne, %43, %c0_i32_24 : i32
    scf.if %44 {
      %cst_70 = arith.constant 0.000000e+00 : bf16
      %86 = vector.broadcast %cst_70 : bf16 to vector<1x8x128xbf16>
      %c0_71 = arith.constant 0 : index
      %c1_72 = arith.constant 1 : index
      %c0_73 = arith.constant 0 : index
      %87 = vector.load %arg8[%c0_71, %c1_72, %c0_73] : memref<10x10x128xbf16, #tpu.memory_space<vmem>>, vector<1x8x128xbf16>
      tpu.vector_store %arg8[%c0_71, %c1_72, %c0_73], %86 {strides = array<i32>} : memref<10x10x128xbf16, #tpu.memory_space<vmem>>, vector<1x8x128xbf16>,
    } else {
    }
    %c1_i32 = arith.constant 1 : i32
    %45 = arith.addi %arg1, %c1_i32 : i32
    %c1_i32_25 = arith.constant 1 : i32
    %46 = arith.cmpi eq, %45, %c1_i32_25 : i32
    %47 = arith.extui %46 : i1 to i32
    %c0_i32_26 = arith.constant 0 : i32
    %48 = arith.cmpi ne, %47, %c0_i32_26 : i32
    scf.if %48 {
      %cst_70 = arith.constant 0.000000e+00 : bf16
      %86 = vector.broadcast %cst_70 : bf16 to vector<1x8x128xbf16>
      %c9_71 = arith.constant 9 : index
      %c1_72 = arith.constant 1 : index
      %c0_73 = arith.constant 0 : index
      %87 = vector.load %arg8[%c9_71, %c1_72, %c0_73] : memref<10x10x128xbf16, #tpu.memory_space<vmem>>, vector<1x8x128xbf16>
      tpu.vector_store %arg8[%c9_71, %c1_72, %c0_73], %86 {strides = array<i32>} : memref<10x10x128xbf16, #tpu.memory_space<vmem>>, vector<1x8x128xbf16>,
    } else {
    }
    %c0_27 = arith.constant 0 : index
    %c0_28 = arith.constant 0 : index
    %c0_29 = arith.constant 0 : index
    %49 = vector.load %arg8[%c0_27, %c0_28, %c0_29] : memref<10x10x128xbf16, #tpu.memory_space<vmem>>, vector<8x8x128xbf16>
    %50 = vector.shape_cast %49 : vector<8x8x128xbf16> to vector<64x128xbf16>
    %c0_30 = arith.constant 0 : index
    %c1_31 = arith.constant 1 : index
    %c0_32 = arith.constant 0 : index
    %51 = vector.load %arg8[%c0_30, %c1_31, %c0_32] : memref<10x10x128xbf16, #tpu.memory_space<vmem>>, vector<8x8x128xbf16>
    %52 = vector.shape_cast %51 : vector<8x8x128xbf16> to vector<64x128xbf16>
    %c0_33 = arith.constant 0 : index
    %c2 = arith.constant 2 : index
    %c0_34 = arith.constant 0 : index
    %53 = vector.load %arg8[%c0_33, %c2, %c0_34] : memref<10x10x128xbf16, #tpu.memory_space<vmem>>, vector<8x8x128xbf16>
    %54 = vector.shape_cast %53 : vector<8x8x128xbf16> to vector<64x128xbf16>
    %c1_35 = arith.constant 1 : index
    %c0_36 = arith.constant 0 : index
    %c0_37 = arith.constant 0 : index
    %55 = vector.load %arg8[%c1_35, %c0_36, %c0_37] : memref<10x10x128xbf16, #tpu.memory_space<vmem>>, vector<8x8x128xbf16>
    %56 = vector.shape_cast %55 : vector<8x8x128xbf16> to vector<64x128xbf16>
    %c1_38 = arith.constant 1 : index
    %c1_39 = arith.constant 1 : index
    %c0_40 = arith.constant 0 : index
    %57 = vector.load %arg8[%c1_38, %c1_39, %c0_40] : memref<10x10x128xbf16, #tpu.memory_space<vmem>>, vector<8x8x128xbf16>
    %58 = vector.shape_cast %57 : vector<8x8x128xbf16> to vector<64x128xbf16>
    %c1_41 = arith.constant 1 : index
    %c2_42 = arith.constant 2 : index
    %c0_43 = arith.constant 0 : index
    %59 = vector.load %arg8[%c1_41, %c2_42, %c0_43] : memref<10x10x128xbf16, #tpu.memory_space<vmem>>, vector<8x8x128xbf16>
    %60 = vector.shape_cast %59 : vector<8x8x128xbf16> to vector<64x128xbf16>
    %c2_44 = arith.constant 2 : index
    %c0_45 = arith.constant 0 : index
    %c0_46 = arith.constant 0 : index
    %61 = vector.load %arg8[%c2_44, %c0_45, %c0_46] : memref<10x10x128xbf16, #tpu.memory_space<vmem>>, vector<8x8x128xbf16>
    %62 = vector.shape_cast %61 : vector<8x8x128xbf16> to vector<64x128xbf16>
    %c2_47 = arith.constant 2 : index
    %c1_48 = arith.constant 1 : index
    %c0_49 = arith.constant 0 : index
    %63 = vector.load %arg8[%c2_47, %c1_48, %c0_49] : memref<10x10x128xbf16, #tpu.memory_space<vmem>>, vector<8x8x128xbf16>
    %64 = vector.shape_cast %63 : vector<8x8x128xbf16> to vector<64x128xbf16>
    %c2_50 = arith.constant 2 : index
    %c2_51 = arith.constant 2 : index
    %c0_52 = arith.constant 0 : index
    %65 = vector.load %arg8[%c2_50, %c2_51, %c0_52] : memref<10x10x128xbf16, #tpu.memory_space<vmem>>, vector<8x8x128xbf16>
    %66 = vector.shape_cast %65 : vector<8x8x128xbf16> to vector<64x128xbf16>
    %67 = tpu.concatenate %50, %52, %54, %56, %58, %60, %62, %64, %66 in 1 : vector<64x128xbf16>, vector<64x128xbf16>, vector<64x128xbf16>, vector<64x128xbf16>, vector<64x128xbf16>, vector<64x128xbf16>, vector<64x128xbf16>, vector<64x128xbf16>, vector<64x128xbf16> -> vector<64x1152xbf16>
    %c0_53 = arith.constant 0 : index
    %c0_54 = arith.constant 0 : index
    %68 = vector.load %arg5[%c0_53, %c0_54] : memref<1152x128xbf16, #tpu.memory_space<vmem>>, vector<1152x128xbf16>
    %cst_55 = arith.constant dense<0.000000e+00> : vector<64x128xf32>
    %69 = tpu.matmul %67, %68, %cst_55 {dimension_numbers = #tpu.dot_dimension_numbers<[1], [0], [0], [1], [0, 0, 1, 1], [], []>} : vector<64x1152xbf16>, vector<1152x128xbf16>, vector<64x128xf32> -> vector<64x128xf32>
    %70 = vector.shape_cast %69 : vector<64x128xf32> to vector<8x8x128xf32>
    %71 = arith.truncf %70 : vector<8x8x128xf32> to vector<8x8x128xbf16>
    %c0_56 = arith.constant 0 : index
    %c0_57 = arith.constant 0 : index
    %c0_58 = arith.constant 0 : index
    %c0_59 = arith.constant 0 : index
    %72 = vector.load %arg6[%c0_56, %c0_57, %c0_58, %c0_59] : memref<1x8x8x128xbf16, #tpu.memory_space<vmem>>, vector<1x8x8x128xbf16>
    %73 = vector.shape_cast %72 : vector<1x8x8x128xbf16> to vector<8x8x128xbf16>
    %74 = vector.shape_cast %71 : vector<8x8x128xbf16> to vector<1x8x8x128xbf16>
    tpu.vector_store %arg6[%c0_56, %c0_57, %c0_58, %c0_59], %74 {strides = array<i32>} : memref<1x8x8x128xbf16, #tpu.memory_space<vmem>>, vector<1x8x8x128xbf16>,
    %cst_60 = arith.constant dense<0.000000e+00> : vector<128xf32>
    %75 = vector.multi_reduction <add>, %69, %cst_60 [0] : vector<64x128xf32> to vector<128xf32>
    %76 = vector.shape_cast %75 : vector<128xf32> to vector<1x128xf32>
    %c0_61 = arith.constant 0 : index
    %c0_62 = arith.constant 0 : index
    %c0_63 = arith.constant 0 : index
    %c0_64 = arith.constant 0 : index
    %77 = vector.load %arg7[%c0_61, %c0_62, %c0_63, %c0_64] : memref<1x1x2x128xf32, #tpu.memory_space<vmem>>, vector<1x1x1x128xf32>
    %78 = vector.shape_cast %77 : vector<1x1x1x128xf32> to vector<1x128xf32>
    %79 = vector.shape_cast %76 : vector<1x128xf32> to vector<1x1x1x128xf32>
    tpu.vector_store %arg7[%c0_61, %c0_62, %c0_63, %c0_64], %79 {strides = array<i32>} : memref<1x1x2x128xf32, #tpu.memory_space<vmem>>, vector<1x1x1x128xf32>,
    %80 = arith.mulf %69, %69 : vector<64x128xf32>
    %cst_65 = arith.constant dense<0.000000e+00> : vector<128xf32>
    %81 = vector.multi_reduction <add>, %80, %cst_65 [0] : vector<64x128xf32> to vector<128xf32>
    %82 = vector.shape_cast %81 : vector<128xf32> to vector<1x128xf32>
    %c0_66 = arith.constant 0 : index
    %c0_67 = arith.constant 0 : index
    %c1_68 = arith.constant 1 : index
    %c0_69 = arith.constant 0 : index
    %83 = vector.load %arg7[%c0_66, %c0_67, %c1_68, %c0_69] : memref<1x1x2x128xf32, #tpu.memory_space<vmem>>, vector<1x1x1x128xf32>
    %84 = vector.shape_cast %83 : vector<1x1x1x128xf32> to vector<1x128xf32>
    %85 = vector.shape_cast %82 : vector<1x128xf32> to vector<1x1x1x128xf32>
    tpu.vector_store %arg7[%c0_66, %c0_67, %c1_68, %c0_69], %85 {strides = array<i32>} : memref<1x1x2x128xf32, #tpu.memory_space<vmem>>, vector<1x1x1x128xf32>,
    return
  }
  func.func @transform_0(%arg0: i32, %arg1: i32) -> (i32, i32, i32, i32, i32) {
    %c0_i32 = arith.constant 0 : i32
    %c0_i32_0 = arith.constant 0 : i32
    %c0_i32_1 = arith.constant 0 : i32
    %c0_i32_2 = arith.constant 0 : i32
    return %arg0, %arg1, %c0_i32, %c0_i32_0, %c0_i32_1 : i32, i32, i32, i32, i32
  }
  func.func @transform_1(%arg0: i32, %arg1: i32) -> (i32, i32, i32, i32, i32) {
    %c8_i32 = arith.constant 8 : i32
    %0 = arith.muli %arg1, %c8_i32 : i32
    %c1_i32 = arith.constant 1 : i32
    %1 = arith.subi %0, %c1_i32 : i32
    %c0_i32 = arith.constant 0 : i32
    %2 = arith.maxsi %1, %c0_i32 : i32
    %c0_i32_0 = arith.constant 0 : i32
    %c0_i32_1 = arith.constant 0 : i32
    %c0_i32_2 = arith.constant 0 : i32
    %c0_i32_3 = arith.constant 0 : i32
    return %arg0, %2, %c0_i32_0, %c0_i32_1, %c0_i32_2 : i32, i32, i32, i32, i32
  }
  func.func @transform_2(%arg0: i32, %arg1: i32) -> (i32, i32, i32, i32, i32) {
    %c8_i32 = arith.constant 8 : i32
    %0 = arith.muli %arg1, %c8_i32 : i32
    %c8_i32_0 = arith.constant 8 : i32
    %1 = arith.addi %0, %c8_i32_0 : i32
    %c7_i32 = arith.constant 7 : i32
    %2 = arith.minsi %1, %c7_i32 : i32
    %c0_i32 = arith.constant 0 : i32
    %c0_i32_1 = arith.constant 0 : i32
    %c0_i32_2 = arith.constant 0 : i32
    %c0_i32_3 = arith.constant 0 : i32
    return %arg0, %2, %c0_i32, %c0_i32_1, %c0_i32_2 : i32, i32, i32, i32, i32
  }
  func.func @transform_3(%arg0: i32, %arg1: i32) -> (i32, i32) {
    %c0_i32 = arith.constant 0 : i32
    %c0_i32_0 = arith.constant 0 : i32
    %c0_i32_1 = arith.constant 0 : i32
    return %c0_i32, %c0_i32_0 : i32, i32
  }
  func.func @transform_4(%arg0: i32, %arg1: i32) -> (i32, i32, i32, i32) {
    %c0_i32 = arith.constant 0 : i32
    %c0_i32_0 = arith.constant 0 : i32
    %c0_i32_1 = arith.constant 0 : i32
    return %arg0, %arg1, %c0_i32, %c0_i32_0 : i32, i32, i32, i32
  }
  func.func @transform_5(%arg0: i32, %arg1: i32) -> (i32, i32, i32, i32) {
    %c0_i32 = arith.constant 0 : i32
    %c0_i32_0 = arith.constant 0 : i32
    %c0_i32_1 = arith.constant 0 : i32
    return %arg0, %arg1, %c0_i32, %c0_i32_0 : i32, i32, i32, i32
  }
}

module attributes {stable_mosaic.version = 11 : i64} {
  func.func @_bn_relu_kernel(%arg0: i32, %arg1: i32, %arg2: memref<1x8x8x128xbf16, #tpu.memory_space<vmem>>, %arg3: memref<1x128xf32, #tpu.memory_space<vmem>>, %arg4: memref<1x128xf32, #tpu.memory_space<vmem>>, %arg5: memref<1x8x8x128xf32, #tpu.memory_space<vmem>>) attributes {dimension_semantics = [#tpu.dimension_semantics<parallel>, #tpu.dimension_semantics<parallel>], iteration_bounds = array<i64: 2, 1>, scalar_prefetch = 0 : i64, scratch_operands = 0 : i64, tpu.core_type = #tpu.core_type<tc>, window_params = [{transform_indices = @transform_0, window_bounds = array<i64: 1, 8, 8, 128>}, {pipeline_mode = #tpu.pipeline_mode<synchronous>, transform_indices = @transform_1, window_bounds = array<i64: 1, 128>}, {pipeline_mode = #tpu.pipeline_mode<synchronous>, transform_indices = @transform_2, window_bounds = array<i64: 1, 128>}, {transform_indices = @transform_3, window_bounds = array<i64: 1, 8, 8, 128>}]} {
    %c0 = arith.constant 0 : index
    %c0_0 = arith.constant 0 : index
    %c0_1 = arith.constant 0 : index
    %c0_2 = arith.constant 0 : index
    %0 = vector.load %arg2[%c0, %c0_0, %c0_1, %c0_2] : memref<1x8x8x128xbf16, #tpu.memory_space<vmem>>, vector<1x8x8x128xbf16>
    %1 = vector.shape_cast %0 : vector<1x8x8x128xbf16> to vector<8x8x128xbf16>
    %2 = arith.extf %1 : vector<8x8x128xbf16> to vector<8x8x128xf32>
    %c0_3 = arith.constant 0 : index
    %c0_4 = arith.constant 0 : index
    %3 = vector.load %arg3[%c0_3, %c0_4] : memref<1x128xf32, #tpu.memory_space<vmem>>, vector<1x128xf32>
    %4 = vector.shape_cast %3 : vector<1x128xf32> to vector<1x1x128xf32>
    %5 = vector.broadcast %4 : vector<1x1x128xf32> to vector<8x8x128xf32>
    %6 = arith.mulf %2, %5 : vector<8x8x128xf32>
    %c0_5 = arith.constant 0 : index
    %c0_6 = arith.constant 0 : index
    %7 = vector.load %arg4[%c0_5, %c0_6] : memref<1x128xf32, #tpu.memory_space<vmem>>, vector<1x128xf32>
    %8 = vector.shape_cast %7 : vector<1x128xf32> to vector<1x1x128xf32>
    %9 = vector.broadcast %8 : vector<1x1x128xf32> to vector<8x8x128xf32>
    %10 = arith.addf %6, %9 : vector<8x8x128xf32>
    %cst = arith.constant 0.000000e+00 : f32
    %11 = vector.broadcast %cst : f32 to vector<8x8x128xf32>
    %12 = arith.maximumf %10, %11 : vector<8x8x128xf32>
    %c0_7 = arith.constant 0 : index
    %c0_8 = arith.constant 0 : index
    %c0_9 = arith.constant 0 : index
    %c0_10 = arith.constant 0 : index
    %13 = vector.load %arg5[%c0_7, %c0_8, %c0_9, %c0_10] : memref<1x8x8x128xf32, #tpu.memory_space<vmem>>, vector<1x8x8x128xf32>
    %14 = vector.shape_cast %13 : vector<1x8x8x128xf32> to vector<8x8x128xf32>
    %15 = vector.shape_cast %12 : vector<8x8x128xf32> to vector<1x8x8x128xf32>
    tpu.vector_store %arg5[%c0_7, %c0_8, %c0_9, %c0_10], %15 {strides = array<i32>} : memref<1x8x8x128xf32, #tpu.memory_space<vmem>>, vector<1x8x8x128xf32>,
    return
  }
  func.func @transform_0(%arg0: i32, %arg1: i32) -> (i32, i32, i32, i32) {
    %c0_i32 = arith.constant 0 : i32
    %c0_i32_0 = arith.constant 0 : i32
    %c0_i32_1 = arith.constant 0 : i32
    return %arg0, %arg1, %c0_i32, %c0_i32_0 : i32, i32, i32, i32
  }
  func.func @transform_1(%arg0: i32, %arg1: i32) -> (i32, i32) {
    %c0_i32 = arith.constant 0 : i32
    %c0_i32_0 = arith.constant 0 : i32
    %c0_i32_1 = arith.constant 0 : i32
    return %c0_i32, %c0_i32_0 : i32, i32
  }
  func.func @transform_2(%arg0: i32, %arg1: i32) -> (i32, i32) {
    %c0_i32 = arith.constant 0 : i32
    %c0_i32_0 = arith.constant 0 : i32
    %c0_i32_1 = arith.constant 0 : i32
    return %c0_i32, %c0_i32_0 : i32, i32
  }
  func.func @transform_3(%arg0: i32, %arg1: i32) -> (i32, i32, i32, i32) {
    %c0_i32 = arith.constant 0 : i32
    %c0_i32_0 = arith.constant 0 : i32
    %c0_i32_1 = arith.constant 0 : i32
    return %arg0, %arg1, %c0_i32, %c0_i32_0 : i32, i32, i32, i32
  }
}

module attributes {stable_mosaic.version = 11 : i64} {
  func.func @_bn_relu_conv_kernel(%arg0: i32, %arg1: i32, %arg2: memref<1x8x8x128xbf16, #tpu.memory_space<vmem>>, %arg3: memref<1x1x8x128xbf16, #tpu.memory_space<vmem>>, %arg4: memref<1x1x8x128xbf16, #tpu.memory_space<vmem>>, %arg5: memref<1x128xf32, #tpu.memory_space<vmem>>, %arg6: memref<1x128xf32, #tpu.memory_space<vmem>>, %arg7: memref<1152x128xbf16, #tpu.memory_space<vmem>>, %arg8: memref<1x8x8x128xbf16, #tpu.memory_space<vmem>>, %arg9: memref<1x1x2x128xf32, #tpu.memory_space<vmem>>, %arg10: memref<10x10x128xbf16, #tpu.memory_space<vmem>>) attributes {dimension_semantics = [#tpu.dimension_semantics<parallel>, #tpu.dimension_semantics<parallel>], iteration_bounds = array<i64: 2, 1>, scalar_prefetch = 0 : i64, scratch_operands = 1 : i64, tpu.core_type = #tpu.core_type<tc>, window_params = [{transform_indices = @transform_0, window_bounds = array<i64: 1, 8, 8, 128>}, {transform_indices = @transform_1, window_bounds = array<i64: 1, 1, 8, 128>}, {transform_indices = @transform_2, window_bounds = array<i64: 1, 1, 8, 128>}, {pipeline_mode = #tpu.pipeline_mode<synchronous>, transform_indices = @transform_3, window_bounds = array<i64: 1, 128>}, {pipeline_mode = #tpu.pipeline_mode<synchronous>, transform_indices = @transform_4, window_bounds = array<i64: 1, 128>}, {pipeline_mode = #tpu.pipeline_mode<synchronous>, transform_indices = @transform_5, window_bounds = array<i64: 1152, 128>}, {transform_indices = @transform_6, window_bounds = array<i64: 1, 8, 8, 128>}, {transform_indices = @transform_7, window_bounds = array<i64: 1, 1, 2, 128>}]} {
    %c0 = arith.constant 0 : index
    %c0_0 = arith.constant 0 : index
    %0 = vector.load %arg5[%c0, %c0_0] : memref<1x128xf32, #tpu.memory_space<vmem>>, vector<1x128xf32>
    %1 = vector.shape_cast %0 : vector<1x128xf32> to vector<1x1x128xf32>
    %c0_1 = arith.constant 0 : index
    %c0_2 = arith.constant 0 : index
    %2 = vector.load %arg6[%c0_1, %c0_2] : memref<1x128xf32, #tpu.memory_space<vmem>>, vector<1x128xf32>
    %3 = vector.shape_cast %2 : vector<1x128xf32> to vector<1x1x128xf32>
    %c0_3 = arith.constant 0 : index
    %c0_4 = arith.constant 0 : index
    %c0_5 = arith.constant 0 : index
    %c0_6 = arith.constant 0 : index
    %4 = vector.load %arg3[%c0_3, %c0_4, %c0_5, %c0_6] : memref<1x1x8x128xbf16, #tpu.memory_space<vmem>>, vector<1x1x8x128xbf16>
    %5 = vector.shape_cast %4 : vector<1x1x8x128xbf16> to vector<1x8x128xbf16>
    %6 = arith.extf %5 : vector<1x8x128xbf16> to vector<1x8x128xf32>
    %7 = vector.broadcast %1 : vector<1x1x128xf32> to vector<1x8x128xf32>
    %8 = arith.mulf %6, %7 : vector<1x8x128xf32>
    %9 = vector.broadcast %3 : vector<1x1x128xf32> to vector<1x8x128xf32>
    %10 = arith.addf %8, %9 : vector<1x8x128xf32>
    %cst = arith.constant 0.000000e+00 : f32
    %11 = vector.broadcast %cst : f32 to vector<1x8x128xf32>
    %12 = arith.maximumf %10, %11 : vector<1x8x128xf32>
    %c0_7 = arith.constant 0 : index
    %c0_8 = arith.constant 0 : index
    %c0_9 = arith.constant 0 : index
    %c0_10 = arith.constant 0 : index
    %13 = vector.load %arg2[%c0_7, %c0_8, %c0_9, %c0_10] : memref<1x8x8x128xbf16, #tpu.memory_space<vmem>>, vector<1x8x8x128xbf16>
    %14 = vector.shape_cast %13 : vector<1x8x8x128xbf16> to vector<8x8x128xbf16>
    %15 = arith.extf %14 : vector<8x8x128xbf16> to vector<8x8x128xf32>
    %16 = vector.broadcast %1 : vector<1x1x128xf32> to vector<8x8x128xf32>
    %17 = arith.mulf %15, %16 : vector<8x8x128xf32>
    %18 = vector.broadcast %3 : vector<1x1x128xf32> to vector<8x8x128xf32>
    %19 = arith.addf %17, %18 : vector<8x8x128xf32>
    %cst_11 = arith.constant 0.000000e+00 : f32
    %20 = vector.broadcast %cst_11 : f32 to vector<8x8x128xf32>
    %21 = arith.maximumf %19, %20 : vector<8x8x128xf32>
    %c0_12 = arith.constant 0 : index
    %c0_13 = arith.constant 0 : index
    %c0_14 = arith.constant 0 : index
    %c0_15 = arith.constant 0 : index
    %22 = vector.load %arg4[%c0_12, %c0_13, %c0_14, %c0_15] : memref<1x1x8x128xbf16, #tpu.memory_space<vmem>>, vector<1x1x8x128xbf16>
    %23 = vector.shape_cast %22 : vector<1x1x8x128xbf16> to vector<1x8x128xbf16>
    %24 = arith.extf %23 : vector<1x8x128xbf16> to vector<1x8x128xf32>
    %25 = vector.broadcast %1 : vector<1x1x128xf32> to vector<1x8x128xf32>
    %26 = arith.mulf %24, %25 : vector<1x8x128xf32>
    %27 = vector.broadcast %3 : vector<1x1x128xf32> to vector<1x8x128xf32>
    %28 = arith.addf %26, %27 : vector<1x8x128xf32>
    %cst_16 = arith.constant 0.000000e+00 : f32
    %29 = vector.broadcast %cst_16 : f32 to vector<1x8x128xf32>
    %30 = arith.maximumf %28, %29 : vector<1x8x128xf32>
    %31 = tpu.concatenate %12, %21, %30 in 0 : vector<1x8x128xf32>, vector<8x8x128xf32>, vector<1x8x128xf32> -> vector<10x8x128xf32>
    %32 = arith.truncf %31 : vector<10x8x128xf32> to vector<10x8x128xbf16>
    %c0_17 = arith.constant 0 : index
    %c1 = arith.constant 1 : index
    %c0_18 = arith.constant 0 : index
    %33 = vector.load %arg10[%c0_17, %c1, %c0_18] : memref<10x10x128xbf16, #tpu.memory_space<vmem>>, vector<10x8x128xbf16>
    tpu.vector_store %arg10[%c0_17, %c1, %c0_18], %32 {strides = array<i32>} : memref<10x10x128xbf16, #tpu.memory_space<vmem>>, vector<10x8x128xbf16>,
    %cst_19 = arith.constant 0.000000e+00 : bf16
    %34 = vector.broadcast %cst_19 : bf16 to vector<10x1x128xbf16>
    %c0_20 = arith.constant 0 : index
    %c0_21 = arith.constant 0 : index
    %c0_22 = arith.constant 0 : index
    %35 = vector.load %arg10[%c0_20, %c0_21, %c0_22] : memref<10x10x128xbf16, #tpu.memory_space<vmem>>, vector<10x1x128xbf16>
    tpu.vector_store %arg10[%c0_20, %c0_21, %c0_22], %34 {strides = array<i32>} : memref<10x10x128xbf16, #tpu.memory_space<vmem>>, vector<10x1x128xbf16>,
    %c0_23 = arith.constant 0 : index
    %c9 = arith.constant 9 : index
    %c0_24 = arith.constant 0 : index
    %36 = vector.load %arg10[%c0_23, %c9, %c0_24] : memref<10x10x128xbf16, #tpu.memory_space<vmem>>, vector<10x1x128xbf16>
    tpu.vector_store %arg10[%c0_23, %c9, %c0_24], %34 {strides = array<i32>} : memref<10x10x128xbf16, #tpu.memory_space<vmem>>, vector<10x1x128xbf16>,
    %c0_i32 = arith.constant 0 : i32
    %37 = arith.cmpi eq, %arg1, %c0_i32 : i32
    %38 = arith.extui %37 : i1 to i32
    %c0_i32_25 = arith.constant 0 : i32
    %39 = arith.cmpi ne, %38, %c0_i32_25 : i32
    scf.if %39 {
      %cst_71 = arith.constant 0.000000e+00 : bf16
      %81 = vector.broadcast %cst_71 : bf16 to vector<1x8x128xbf16>
      %c0_72 = arith.constant 0 : index
      %c1_73 = arith.constant 1 : index
      %c0_74 = arith.constant 0 : index
      %82 = vector.load %arg10[%c0_72, %c1_73, %c0_74] : memref<10x10x128xbf16, #tpu.memory_space<vmem>>, vector<1x8x128xbf16>
      tpu.vector_store %arg10[%c0_72, %c1_73, %c0_74], %81 {strides = array<i32>} : memref<10x10x128xbf16, #tpu.memory_space<vmem>>, vector<1x8x128xbf16>,
    } else {
    }
    %c1_i32 = arith.constant 1 : i32
    %40 = arith.addi %arg1, %c1_i32 : i32
    %c1_i32_26 = arith.constant 1 : i32
    %41 = arith.cmpi eq, %40, %c1_i32_26 : i32
    %42 = arith.extui %41 : i1 to i32
    %c0_i32_27 = arith.constant 0 : i32
    %43 = arith.cmpi ne, %42, %c0_i32_27 : i32
    scf.if %43 {
      %cst_71 = arith.constant 0.000000e+00 : bf16
      %81 = vector.broadcast %cst_71 : bf16 to vector<1x8x128xbf16>
      %c9_72 = arith.constant 9 : index
      %c1_73 = arith.constant 1 : index
      %c0_74 = arith.constant 0 : index
      %82 = vector.load %arg10[%c9_72, %c1_73, %c0_74] : memref<10x10x128xbf16, #tpu.memory_space<vmem>>, vector<1x8x128xbf16>
      tpu.vector_store %arg10[%c9_72, %c1_73, %c0_74], %81 {strides = array<i32>} : memref<10x10x128xbf16, #tpu.memory_space<vmem>>, vector<1x8x128xbf16>,
    } else {
    }
    %c0_28 = arith.constant 0 : index
    %c0_29 = arith.constant 0 : index
    %c0_30 = arith.constant 0 : index
    %44 = vector.load %arg10[%c0_28, %c0_29, %c0_30] : memref<10x10x128xbf16, #tpu.memory_space<vmem>>, vector<8x8x128xbf16>
    %45 = vector.shape_cast %44 : vector<8x8x128xbf16> to vector<64x128xbf16>
    %c0_31 = arith.constant 0 : index
    %c1_32 = arith.constant 1 : index
    %c0_33 = arith.constant 0 : index
    %46 = vector.load %arg10[%c0_31, %c1_32, %c0_33] : memref<10x10x128xbf16, #tpu.memory_space<vmem>>, vector<8x8x128xbf16>
    %47 = vector.shape_cast %46 : vector<8x8x128xbf16> to vector<64x128xbf16>
    %c0_34 = arith.constant 0 : index
    %c2 = arith.constant 2 : index
    %c0_35 = arith.constant 0 : index
    %48 = vector.load %arg10[%c0_34, %c2, %c0_35] : memref<10x10x128xbf16, #tpu.memory_space<vmem>>, vector<8x8x128xbf16>
    %49 = vector.shape_cast %48 : vector<8x8x128xbf16> to vector<64x128xbf16>
    %c1_36 = arith.constant 1 : index
    %c0_37 = arith.constant 0 : index
    %c0_38 = arith.constant 0 : index
    %50 = vector.load %arg10[%c1_36, %c0_37, %c0_38] : memref<10x10x128xbf16, #tpu.memory_space<vmem>>, vector<8x8x128xbf16>
    %51 = vector.shape_cast %50 : vector<8x8x128xbf16> to vector<64x128xbf16>
    %c1_39 = arith.constant 1 : index
    %c1_40 = arith.constant 1 : index
    %c0_41 = arith.constant 0 : index
    %52 = vector.load %arg10[%c1_39, %c1_40, %c0_41] : memref<10x10x128xbf16, #tpu.memory_space<vmem>>, vector<8x8x128xbf16>
    %53 = vector.shape_cast %52 : vector<8x8x128xbf16> to vector<64x128xbf16>
    %c1_42 = arith.constant 1 : index
    %c2_43 = arith.constant 2 : index
    %c0_44 = arith.constant 0 : index
    %54 = vector.load %arg10[%c1_42, %c2_43, %c0_44] : memref<10x10x128xbf16, #tpu.memory_space<vmem>>, vector<8x8x128xbf16>
    %55 = vector.shape_cast %54 : vector<8x8x128xbf16> to vector<64x128xbf16>
    %c2_45 = arith.constant 2 : index
    %c0_46 = arith.constant 0 : index
    %c0_47 = arith.constant 0 : index
    %56 = vector.load %arg10[%c2_45, %c0_46, %c0_47] : memref<10x10x128xbf16, #tpu.memory_space<vmem>>, vector<8x8x128xbf16>
    %57 = vector.shape_cast %56 : vector<8x8x128xbf16> to vector<64x128xbf16>
    %c2_48 = arith.constant 2 : index
    %c1_49 = arith.constant 1 : index
    %c0_50 = arith.constant 0 : index
    %58 = vector.load %arg10[%c2_48, %c1_49, %c0_50] : memref<10x10x128xbf16, #tpu.memory_space<vmem>>, vector<8x8x128xbf16>
    %59 = vector.shape_cast %58 : vector<8x8x128xbf16> to vector<64x128xbf16>
    %c2_51 = arith.constant 2 : index
    %c2_52 = arith.constant 2 : index
    %c0_53 = arith.constant 0 : index
    %60 = vector.load %arg10[%c2_51, %c2_52, %c0_53] : memref<10x10x128xbf16, #tpu.memory_space<vmem>>, vector<8x8x128xbf16>
    %61 = vector.shape_cast %60 : vector<8x8x128xbf16> to vector<64x128xbf16>
    %62 = tpu.concatenate %45, %47, %49, %51, %53, %55, %57, %59, %61 in 1 : vector<64x128xbf16>, vector<64x128xbf16>, vector<64x128xbf16>, vector<64x128xbf16>, vector<64x128xbf16>, vector<64x128xbf16>, vector<64x128xbf16>, vector<64x128xbf16>, vector<64x128xbf16> -> vector<64x1152xbf16>
    %c0_54 = arith.constant 0 : index
    %c0_55 = arith.constant 0 : index
    %63 = vector.load %arg7[%c0_54, %c0_55] : memref<1152x128xbf16, #tpu.memory_space<vmem>>, vector<1152x128xbf16>
    %cst_56 = arith.constant dense<0.000000e+00> : vector<64x128xf32>
    %64 = tpu.matmul %62, %63, %cst_56 {dimension_numbers = #tpu.dot_dimension_numbers<[1], [0], [0], [1], [0, 0, 1, 1], [], []>} : vector<64x1152xbf16>, vector<1152x128xbf16>, vector<64x128xf32> -> vector<64x128xf32>
    %65 = vector.shape_cast %64 : vector<64x128xf32> to vector<8x8x128xf32>
    %66 = arith.truncf %65 : vector<8x8x128xf32> to vector<8x8x128xbf16>
    %c0_57 = arith.constant 0 : index
    %c0_58 = arith.constant 0 : index
    %c0_59 = arith.constant 0 : index
    %c0_60 = arith.constant 0 : index
    %67 = vector.load %arg8[%c0_57, %c0_58, %c0_59, %c0_60] : memref<1x8x8x128xbf16, #tpu.memory_space<vmem>>, vector<1x8x8x128xbf16>
    %68 = vector.shape_cast %67 : vector<1x8x8x128xbf16> to vector<8x8x128xbf16>
    %69 = vector.shape_cast %66 : vector<8x8x128xbf16> to vector<1x8x8x128xbf16>
    tpu.vector_store %arg8[%c0_57, %c0_58, %c0_59, %c0_60], %69 {strides = array<i32>} : memref<1x8x8x128xbf16, #tpu.memory_space<vmem>>, vector<1x8x8x128xbf16>,
    %cst_61 = arith.constant dense<0.000000e+00> : vector<128xf32>
    %70 = vector.multi_reduction <add>, %64, %cst_61 [0] : vector<64x128xf32> to vector<128xf32>
    %71 = vector.shape_cast %70 : vector<128xf32> to vector<1x128xf32>
    %c0_62 = arith.constant 0 : index
    %c0_63 = arith.constant 0 : index
    %c0_64 = arith.constant 0 : index
    %c0_65 = arith.constant 0 : index
    %72 = vector.load %arg9[%c0_62, %c0_63, %c0_64, %c0_65] : memref<1x1x2x128xf32, #tpu.memory_space<vmem>>, vector<1x1x1x128xf32>
    %73 = vector.shape_cast %72 : vector<1x1x1x128xf32> to vector<1x128xf32>
    %74 = vector.shape_cast %71 : vector<1x128xf32> to vector<1x1x1x128xf32>
    tpu.vector_store %arg9[%c0_62, %c0_63, %c0_64, %c0_65], %74 {strides = array<i32>} : memref<1x1x2x128xf32, #tpu.memory_space<vmem>>, vector<1x1x1x128xf32>,
    %75 = arith.mulf %64, %64 : vector<64x128xf32>
    %cst_66 = arith.constant dense<0.000000e+00> : vector<128xf32>
    %76 = vector.multi_reduction <add>, %75, %cst_66 [0] : vector<64x128xf32> to vector<128xf32>
    %77 = vector.shape_cast %76 : vector<128xf32> to vector<1x128xf32>
    %c0_67 = arith.constant 0 : index
    %c0_68 = arith.constant 0 : index
    %c1_69 = arith.constant 1 : index
    %c0_70 = arith.constant 0 : index
    %78 = vector.load %arg9[%c0_67, %c0_68, %c1_69, %c0_70] : memref<1x1x2x128xf32, #tpu.memory_space<vmem>>, vector<1x1x1x128xf32>
    %79 = vector.shape_cast %78 : vector<1x1x1x128xf32> to vector<1x128xf32>
    %80 = vector.shape_cast %77 : vector<1x128xf32> to vector<1x1x1x128xf32>
    tpu.vector_store %arg9[%c0_67, %c0_68, %c1_69, %c0_70], %80 {strides = array<i32>} : memref<1x1x2x128xf32, #tpu.memory_space<vmem>>, vector<1x1x1x128xf32>,
    return
  }
  func.func @transform_0(%arg0: i32, %arg1: i32) -> (i32, i32, i32, i32) {
    %c0_i32 = arith.constant 0 : i32
    %c0_i32_0 = arith.constant 0 : i32
    %c0_i32_1 = arith.constant 0 : i32
    return %arg0, %arg1, %c0_i32, %c0_i32_0 : i32, i32, i32, i32
  }
  func.func @transform_1(%arg0: i32, %arg1: i32) -> (i32, i32, i32, i32) {
    %c8_i32 = arith.constant 8 : i32
    %0 = arith.muli %arg1, %c8_i32 : i32
    %c1_i32 = arith.constant 1 : i32
    %1 = arith.subi %0, %c1_i32 : i32
    %c0_i32 = arith.constant 0 : i32
    %2 = arith.maxsi %1, %c0_i32 : i32
    %c0_i32_0 = arith.constant 0 : i32
    %c0_i32_1 = arith.constant 0 : i32
    %c0_i32_2 = arith.constant 0 : i32
    return %arg0, %2, %c0_i32_0, %c0_i32_1 : i32, i32, i32, i32
  }
  func.func @transform_2(%arg0: i32, %arg1: i32) -> (i32, i32, i32, i32) {
    %c8_i32 = arith.constant 8 : i32
    %0 = arith.muli %arg1, %c8_i32 : i32
    %c8_i32_0 = arith.constant 8 : i32
    %1 = arith.addi %0, %c8_i32_0 : i32
    %c7_i32 = arith.constant 7 : i32
    %2 = arith.minsi %1, %c7_i32 : i32
    %c0_i32 = arith.constant 0 : i32
    %c0_i32_1 = arith.constant 0 : i32
    %c0_i32_2 = arith.constant 0 : i32
    return %arg0, %2, %c0_i32, %c0_i32_1 : i32, i32, i32, i32
  }
  func.func @transform_3(%arg0: i32, %arg1: i32) -> (i32, i32) {
    %c0_i32 = arith.constant 0 : i32
    %c0_i32_0 = arith.constant 0 : i32
    %c0_i32_1 = arith.constant 0 : i32
    return %c0_i32, %c0_i32_0 : i32, i32
  }
  func.func @transform_4(%arg0: i32, %arg1: i32) -> (i32, i32) {
    %c0_i32 = arith.constant 0 : i32
    %c0_i32_0 = arith.constant 0 : i32
    %c0_i32_1 = arith.constant 0 : i32
    return %c0_i32, %c0_i32_0 : i32, i32
  }
  func.func @transform_5(%arg0: i32, %arg1: i32) -> (i32, i32) {
    %c0_i32 = arith.constant 0 : i32
    %c0_i32_0 = arith.constant 0 : i32
    %c0_i32_1 = arith.constant 0 : i32
    return %c0_i32, %c0_i32_0 : i32, i32
  }
  func.func @transform_6(%arg0: i32, %arg1: i32) -> (i32, i32, i32, i32) {
    %c0_i32 = arith.constant 0 : i32
    %c0_i32_0 = arith.constant 0 : i32
    %c0_i32_1 = arith.constant 0 : i32
    return %arg0, %arg1, %c0_i32, %c0_i32_0 : i32, i32, i32, i32
  }
  func.func @transform_7(%arg0: i32, %arg1: i32) -> (i32, i32, i32, i32) {
    %c0_i32 = arith.constant 0 : i32
    %c0_i32_0 = arith.constant 0 : i32
    %c0_i32_1 = arith.constant 0 : i32
    return %arg0, %arg1, %c0_i32, %c0_i32_0 : i32, i32, i32, i32
  }
}

</mosaic_0001>

<llo_original>
// kernel: down_forward.5
$region0: #{down_forward.5}
  #allocation0 [shape = 'u32[]', space=smem, size = 0x4, offset = 0x4, fixed_abs, tag = 'smem constant byte address 0x4 - core index']
  #allocation1 [shape = 'u32[144,128]{1,0:T(1,128)}', space=vmem, size = 0x12000, scoped, tag = 'internal scratch']
  %s0 = inlined_call_operand.vmem [shape: bf16[2,8,8,128], index: 0, kind: input, shape index: {}]
  %s1 = inlined_call_operand.vmem [shape: f32[1,128], index: 1, kind: input, shape index: {}]
  %s2 = inlined_call_operand.vmem [shape: f32[1,128], index: 2, kind: input, shape index: {}]
  %s3 = inlined_call_operand.vmem [shape: f32[2,8,8,128], index: 3, kind: output, shape index: {}]
  %s4 = sld [smem:[#allocation0]]
  $region45: #{down_forward.5} parent=0
    _
  %s6 = ssub.s32 1, %s4
  %s7 = scalar_select 0, %s6, %s4
  loop: start=0, step=1, limit=4
  $region2: #{down_forward.5} parent=0 // loop_pre_header
    _
  $region3: #{down_forward.5} parent=0 // loop_header
    %s9 = sphi 0, %s13
    %p10 = scmp.ge.s32.totalorder %s9, 4
    %s16 = sphi 0, %s28
    %s17 = sphi 0, %s24
    %s18 = sphi 0, %s16
    %s19 = sphi 0, %s17
    %s20 = sphi 0, %s18
    %s21 = sphi 0, %s19
    %s33 = sphi 0, %s35
    %s36 = sphi 0, %s33
    %s37 = sphi 0, %s36
    %s53 = sphi 0, %s37
    %s57 = sphi 0, %s57
    %s59 = sphi 0, %s57
    %s60 = sphi 0, %s59
    %s74 = sphi 0, %s60
    %s78 = sphi 0, %s78
    %s80 = sphi 0, %s78
    %s81 = sphi 0, %s80
    %s95 = sphi 0, %s81
    %s103 = sphi 0, %s105
    %s106 = sphi 0, %s103
    %s107 = sphi 0, %s106
    %s123 = sphi 0, %s107
  $region4: #{down_forward.5} parent=0 // loop_header_branch
    %12 = sbr.rel (%p10) target = $region8
  $region5: #{down_forward.5} parent=0 // loop_body
    %s14 = ssub.s32 %s9, 1
    %s15 = ssub.s32 %s9, 2
    %s22 = sadd.s32 1, %s17
    %p23 = scmp.ge.s32.totalorder %s22, 1
    %s24 = scalar_select %p23, 0, %s22
    %s25 = sadd.s32 1, %s16
    %s26 = scalar_select %p23, %s25, %s16
    %p27 = scmp.ge.s32.totalorder %s26, 2
    %s28 = scalar_select %p27, 0, %s26
    %s29 = ssub.s32 %s16, %s28
    %s30 = ssub.s32 %s17, %s24
    %s31 = sor.u32 %s29, %s30
    %p32 = scmp.eq.s32.totalorder %s31, 0
    %s34 = sadd.s32 %s33, 1
    %s35 = scalar_select %p32, %s33, %s34
    %p38 = pneg %p32
    %p39 = scmp.eq.s32.totalorder %s9, 1
    %p40 = por %p38, %p39
    %p41 = scmp.ne.s32.totalorder %s33, %s36
    %p42 = scmp.eq.s32.totalorder %s9, 0
    %p43 = por %p41, %p42
    %p44 = scmp.ne.s32.totalorder %s33, %s36
    %p45 = scmp.eq.s32.totalorder %s14, 1
    %p46 = por %p44, %p45
    %p47 = scmp.ne.s32.totalorder %s36, %s37
    %p48 = scmp.eq.s32.totalorder %s14, 0
    %p49 = por %p47, %p48
    %p50 = scmp.ne.s32.totalorder %s36, %s37
    %p51 = scmp.eq.s32.totalorder %s15, 1
    %p52 = por %p50, %p51
    %p54 = scmp.ne.s32.totalorder %s37, %s53
    %p55 = scmp.eq.s32.totalorder %s15, 0
    %p56 = por %p54, %p55
    %s58 = sadd.s32 %s57, 1
    %p61 = scmp.eq.s32.totalorder %s9, 1
    %p62 = scmp.ne.s32.totalorder %s57, %s59
    %p63 = scmp.eq.s32.totalorder %s9, 0
    %p64 = por %p62, %p63
    %p65 = scmp.ne.s32.totalorder %s57, %s59
    %p66 = scmp.eq.s32.totalorder %s14, 1
    %p67 = por %p65, %p66
    %p68 = scmp.ne.s32.totalorder %s59, %s60
    %p69 = scmp.eq.s32.totalorder %s14, 0
    %p70 = por %p68, %p69
    %p71 = scmp.ne.s32.totalorder %s59, %s60
    %p72 = scmp.eq.s32.totalorder %s15, 1
    %p73 = por %p71, %p72
    %p75 = scmp.ne.s32.totalorder %s60, %s74
    %p76 = scmp.eq.s32.totalorder %s15, 0
    %p77 = por %p75, %p76
    %s79 = sadd.s32 %s78, 1
    %p82 = scmp.eq.s32.totalorder %s9, 1
    %p83 = scmp.ne.s32.totalorder %s78, %s80
    %p84 = scmp.eq.s32.totalorder %s9, 0
    %p85 = por %p83, %p84
    %p86 = scmp.ne.s32.totalorder %s78, %s80
    %p87 = scmp.eq.s32.totalorder %s14, 1
    %p88 = por %p86, %p87
    %p89 = scmp.ne.s32.totalorder %s80, %s81
    %p90 = scmp.eq.s32.totalorder %s14, 0
    %p91 = por %p89, %p90
    %p92 = scmp.ne.s32.totalorder %s80, %s81
    %p93 = scmp.eq.s32.totalorder %s15, 1
    %p94 = por %p92, %p93
    %p96 = scmp.ne.s32.totalorder %s81, %s95
    %p97 = scmp.eq.s32.totalorder %s15, 0
    %p98 = por %p96, %p97
    %s99 = ssub.s32 %s16, %s28
    %s100 = ssub.s32 %s17, %s24
    %s101 = sor.u32 %s99, %s100
    %p102 = scmp.eq.s32.totalorder %s101, 0
    %s104 = sadd.s32 %s103, 1
    %s105 = scalar_select %p102, %s103, %s104
    %p108 = pneg %p102
    %p109 = scmp.eq.s32.totalorder %s9, 1
    %p110 = por %p108, %p109
    %p111 = scmp.ne.s32.totalorder %s103, %s106
    %p112 = scmp.eq.s32.totalorder %s9, 0
    %p113 = por %p111, %p112
    %p114 = scmp.ne.s32.totalorder %s103, %s106
    %p115 = scmp.eq.s32.totalorder %s14, 1
    %p116 = por %p114, %p115
    %p117 = scmp.ne.s32.totalorder %s106, %s107
    %p118 = scmp.eq.s32.totalorder %s14, 0
    %p119 = por %p117, %p118
    %p120 = scmp.ne.s32.totalorder %s106, %s107
    %p121 = scmp.eq.s32.totalorder %s15, 1
    %p122 = por %p120, %p121
    %p124 = scmp.ne.s32.totalorder %s107, %s123
    %p125 = scmp.eq.s32.totalorder %s15, 0
    %p126 = por %p124, %p125
    %p127 = scmp.le.s32.totalorder 1, %s9
    %p128 = scmp.lt.s32.totalorder %s9, 3
    %p129 = pnand %p127, %p128
    %p130 = pneg %p129
    // Predicated region
    $region9: #{down_forward.5} parent=5 // pred_check
      _
    $region10: #{down_forward.5} parent=5 // pred_check_branch
      %132 = sbr.rel (%p129) target = $region12
    $region11: #{down_forward.5} parent=5 // pred_region
      %s133 = ssub.s32 %s9, 1
      // Predicated region
      $region13: #{down_forward.5} parent=11 // pred_check
        %p134 = pneg %p70
      $region14: #{down_forward.5} parent=11 // pred_check_branch
        %136 = sbr.rel (%p134) target = $region16
      $region15: #{down_forward.5} parent=11 // pred_region
        _
      $region16: #{down_forward.5} parent=11 // pred_fallthru
        _
      // Predicated region
      $region17: #{down_forward.5} parent=11 // pred_check
        %p137 = pneg %p91
      $region18: #{down_forward.5} parent=11 // pred_check_branch
        %139 = sbr.rel (%p137) target = $region20
      $region19: #{down_forward.5} parent=11 // pred_region
        _
      $region20: #{down_forward.5} parent=11 // pred_fallthru
        _
    $region12: #{down_forward.5} parent=5 // pred_fallthru
      _
    %p140 = scmp.lt.s32.totalorder %s9, 2
    // Predicated region
    $region21: #{down_forward.5} parent=5 // pred_check
      %p141 = pneg %p140
    $region22: #{down_forward.5} parent=5 // pred_check_branch
      %143 = sbr.rel (%p141) target = $region24
    $region23: #{down_forward.5} parent=5 // pred_region
      // Predicated region
      $region25: #{down_forward.5} parent=23 // pred_check
        %p144 = pneg %p43
      $region26: #{down_forward.5} parent=23 // pred_check_branch
        %146 = sbr.rel (%p144) target = $region28
      $region27: #{down_forward.5} parent=23 // pred_region
        %s147 = smul.u32 8, %s17
        %p148 = scmp.lt.s32.totalorder %s16, 1
        %s149 = scalar_select %p148, %s16, 1
        %p150 = scmp.lt.s32.totalorder %s147, 7
        %s151 = scalar_select %p150, %s147, 7
        %s152 = smul.addr %s149, 8
        %s153 = sadd.s32 %s151, %s152
        %s154 = smul.addr %s153, 4
        %s155 = scalar_lea.vmem %s0, %s154
        %s156 = smul.u32 8, %s17
      $region28: #{down_forward.5} parent=23 // pred_fallthru
        _
    $region24: #{down_forward.5} parent=5 // pred_fallthru
      _
    %p157 = scmp.le.s32.totalorder 1, %s9
    %p158 = scmp.lt.s32.totalorder %s9, 3
    %p159 = pnand %p157, %p158
    %p160 = pneg %p159
    // Predicated region
    $region29: #{down_forward.5} parent=5 // pred_check
      _
    $region30: #{down_forward.5} parent=5 // pred_check_branch
      %162 = sbr.rel (%p159) target = $region32
    $region31: #{down_forward.5} parent=5 // pred_region
      %s163 = ssub.s32 %s9, 1
      %s164 = smul.u32 8, %s19
      %p165 = scmp.lt.s32.totalorder %s18, 1
      %s166 = scalar_select %p165, %s18, 1
      %p167 = scmp.lt.s32.totalorder %s164, 7
      %s168 = scalar_select %p167, %s164, 7
      %s169 = smul.addr %s166, 8
      %s170 = sadd.s32 %s168, %s169
      %s171 = smul.addr %s170, 4
      %s172 = scalar_lea.vmem %s0, %s171
      %p173 = pneg %p49
      %p174 = pneg %p46
      %p175 = pneg %p70
      %p176 = pneg %p67
      %p177 = pneg %p91
      %p178 = pneg %p88
      %p179 = pneg %p119
      %p180 = pneg %p116
      %s181 = smul.u32 8, %s19
      %p182 = scmp.lt.s32.totalorder %s18, 1
      %s183 = scalar_select %p182, %s18, 1
      %p184 = scmp.lt.s32.totalorder %s181, 7
      %s185 = scalar_select %p184, %s181, 7
      %s186 = smul.addr %s183, 8
      %s187 = sadd.s32 %s185, %s186
      %s188 = smul.addr %s187, 8
      %s189 = scalar_lea.vmem %s3, %s188
      %s190 = smul.u32 8, %s19
      %p191 = scmp.lt.s32.totalorder %s18, 1
      %s192 = scalar_select %p191, %s18, 1
      %p193 = scmp.lt.s32.totalorder %s190, 7
      %s194 = scalar_select %p193, %s190, 7
      %s195 = smul.addr %s192, 8
      %s196 = sadd.s32 %s194, %s195
      %s197 = smul.addr %s196, 4
      %s198 = scalar_lea.vmem %s0, %s197
      %s199 = smul.u32 8, %s19
      %s200 = smul.u32 8, %s19
      %p201 = scmp.lt.s32.totalorder %s18, 1
      %s202 = scalar_select %p201, %s18, 1
      %p203 = scmp.lt.s32.totalorder %s200, 7
      %s204 = scalar_select %p203, %s200, 7
      %s205 = smul.addr %s202, 8
      %s206 = sadd.s32 %s204, %s205
      %s207 = smul.addr %s206, 8
      %s208 = scalar_lea.vmem %s3, %s207
      %s209 = smul.u32 8, %s19
      %v210 = vld [vmem:[%s198] sm:$0xf]
      %v211 = vld [vmem:[%s198 + $0x4] sm:$0xf]
      %v212 = vld [vmem:[%s198 + $0x8] sm:$0xf]
      %v213 = vld [vmem:[%s198 + $0xc] sm:$0xf]
      %v214 = vld [vmem:[%s198 + $0x10] sm:$0xf]
      %v215 = vld [vmem:[%s198 + $0x14] sm:$0xf]
      %v216 = vld [vmem:[%s198 + $0x18] sm:$0xf]
      %v217 = vld [vmem:[%s198 + $0x1c] sm:$0xf]
      %v218 = vunpack.c.l.bf16 %v210
      %v219 = vunpack.c.l.bf16 %v211
      %v220 = vunpack.c.l.bf16 %v212
      %v221 = vunpack.c.l.bf16 %v213
      %v222 = vunpack.c.l.bf16 %v214
      %v223 = vunpack.c.l.bf16 %v215
      %v224 = vunpack.c.l.bf16 %v216
      %v225 = vunpack.c.l.bf16 %v217
      %v226 = vld [vmem:[%s1] sm:$0x1]
      %v228 = vlaneseq
      %v229 = vshrl.u32 %v228, 7
      %v230 = vsub.s32 0, %v229
      %v231 = vrot.slane %v226, %v230
      %v233 = vmul.f32 %v218, %v231
      %v234 = vmul.f32 %v219, %v231
      %v235 = vmul.f32 %v220, %v231
      %v236 = vmul.f32 %v221, %v231
      %v237 = vmul.f32 %v222, %v231
      %v238 = vmul.f32 %v223, %v231
      %v239 = vmul.f32 %v224, %v231
      %v240 = vmul.f32 %v225, %v231
      %v241 = vld [vmem:[%s2] sm:$0x1]
      %v243 = vlaneseq
      %v244 = vshrl.u32 %v243, 7
      %v245 = vsub.s32 0, %v244
      %v246 = vrot.slane %v241, %v245
      %v248 = vadd.f32 %v233, %v246
      %v249 = vadd.f32 %v234, %v246
      %v250 = vadd.f32 %v235, %v246
      %v251 = vadd.f32 %v236, %v246
      %v252 = vadd.f32 %v237, %v246
      %v253 = vadd.f32 %v238, %v246
      %v254 = vadd.f32 %v239, %v246
      %v255 = vadd.f32 %v240, %v246
      %v256 = vmax.f32 %v248, 0.0
      %v257 = vmax.f32 %v249, 0.0
      %v258 = vmax.f32 %v250, 0.0
      %v259 = vmax.f32 %v251, 0.0
      %v260 = vmax.f32 %v252, 0.0
      %v261 = vmax.f32 %v253, 0.0
      %v262 = vmax.f32 %v254, 0.0
      %v263 = vmax.f32 %v255, 0.0
      %264 = vst [vmem:[%s208] sm:$0xff] %v256
      %265 = vst [vmem:[%s208 + $0x8] sm:$0xff] %v257
      %266 = vst [vmem:[%s208 + $0x10] sm:$0xff] %v258
      %267 = vst [vmem:[%s208 + $0x18] sm:$0xff] %v259
      %268 = vst [vmem:[%s208 + $0x20] sm:$0xff] %v260
      %269 = vst [vmem:[%s208 + $0x28] sm:$0xff] %v261
      %270 = vst [vmem:[%s208 + $0x30] sm:$0xff] %v262
      %271 = vst [vmem:[%s208 + $0x38] sm:$0xff] %v263
      %s272 = smul.u32 8, %s19
      %p273 = scmp.lt.s32.totalorder %s18, 1
      %s274 = scalar_select %p273, %s18, 1
      %p275 = scmp.lt.s32.totalorder %s272, 7
      %s276 = scalar_select %p275, %s272, 7
      %s277 = smul.addr %s274, 8
      %s278 = sadd.s32 %s276, %s277
      %s279 = smul.addr %s278, 8
      %s280 = scalar_lea.vmem %s3, %s279
      // Predicated region
      $region33: #{down_forward.5} parent=31 // pred_check
        %p281 = pneg %p116
      $region34: #{down_forward.5} parent=31 // pred_check_branch
        %283 = sbr.rel (%p281) target = $region36
      $region35: #{down_forward.5} parent=31 // pred_region
        %s284 = smul.u32 8, %s19
      $region36: #{down_forward.5} parent=31 // pred_fallthru
        _
    $region32: #{down_forward.5} parent=5 // pred_fallthru
      _
    %p285 = scmp.le.s32.totalorder 2, %s9
    // Predicated region
    $region37: #{down_forward.5} parent=5 // pred_check
      %p286 = pneg %p285
    $region38: #{down_forward.5} parent=5 // pred_check_branch
      %288 = sbr.rel (%p286) target = $region40
    $region39: #{down_forward.5} parent=5 // pred_region
      %s289 = ssub.s32 %s9, 2
      // Predicated region
      $region41: #{down_forward.5} parent=39 // pred_check
        %p290 = pneg %p122
      $region42: #{down_forward.5} parent=39 // pred_check_branch
        %292 = sbr.rel (%p290) target = $region44
      $region43: #{down_forward.5} parent=39 // pred_region
        %s293 = smul.u32 8, %s21
        %p294 = scmp.lt.s32.totalorder %s20, 1
        %s295 = scalar_select %p294, %s20, 1
        %p296 = scmp.lt.s32.totalorder %s293, 7
        %s297 = scalar_select %p296, %s293, 7
        %s298 = smul.addr %s295, 8
        %s299 = sadd.s32 %s297, %s298
        %s300 = smul.addr %s299, 8
        %s301 = scalar_lea.vmem %s3, %s300
      $region44: #{down_forward.5} parent=39 // pred_fallthru
        _
    $region40: #{down_forward.5} parent=5 // pred_fallthru
      _
  $region6: #{down_forward.5} parent=0 // loop_footer
    %s13 = sadd.s32 1, %s9
  $region7: #{down_forward.5} parent=0 // loop_footer_branch
    %8 = sbr.rel target = $region3
  $region8: #{down_forward.5} parent=0 // loop_exit
    _

// kernel: down_forward.4
$region0: #{down_forward.4}
  #allocation0 [shape = 'u32[]', space=smem, size = 0x4, offset = 0x4, fixed_abs, tag = 'smem constant byte address 0x4 - core index']
  #allocation1 [shape = 'u32[144,128]{1,0:T(1,128)}', space=vmem, size = 0x12000, scoped, tag = 'internal scratch']
  #allocation2 [shape = 'bf16[10,10,128]{2,1,0:T(8,128)(2,1)}', space=vmem, size = 0xa000, scoped, tag = 'scratch operand']
  %s0 = inlined_call_operand.vmem [shape: bf16[2,8,8,128], index: 0, kind: input, shape index: {}, may-alias: {0,1,2}]
  %s1 = inlined_call_operand.vmem [shape: bf16[2,8,8,128], index: 1, kind: input, shape index: {}, may-alias: {0,1,2}]
  %s2 = inlined_call_operand.vmem [shape: bf16[2,8,8,128], index: 2, kind: input, shape index: {}, may-alias: {0,1,2}]
  %s3 = inlined_call_operand.vmem [shape: f32[1,128], index: 3, kind: input, shape index: {}]
  %s4 = inlined_call_operand.vmem [shape: f32[1,128], index: 4, kind: input, shape index: {}]
  %s5 = inlined_call_operand.vmem [shape: bf16[1152,128], index: 5, kind: input, shape index: {}]
  %s6 = inlined_call_operand.vmem [shape: bf16[2,8,8,128], index: 6, kind: output, shape index: {0}]
  %s7 = inlined_call_operand.vmem [shape: f32[2,1,2,128], index: 7, kind: output, shape index: {1}]
  %8 = xla_tuple %s6, %s7
  %s9 = sld [smem:[#allocation0]]
  $region73: #{down_forward.4} parent=0
    _
  %s11 = ssub.s32 1, %s9
  %s12 = scalar_select 0, %s11, %s9
  loop: start=0, step=1, limit=4
  $region2: #{down_forward.4} parent=0 // loop_pre_header
    _
  $region3: #{down_forward.4} parent=0 // loop_header
    %s14 = sphi 0, %s18
    %p15 = scmp.ge.s32.totalorder %s14, 4
    %s21 = sphi 0, %s33
    %s22 = sphi 0, %s29
    %s23 = sphi 0, %s21
    %s24 = sphi 0, %s22
    %s25 = sphi 0, %s23
    %s26 = sphi 0, %s24
    %s38 = sphi 0, %s40
    %s41 = sphi 0, %s38
    %s42 = sphi 0, %s41
    %s58 = sphi 0, %s42
    %s74 = sphi 0, %s76
    %s77 = sphi 0, %s74
    %s78 = sphi 0, %s77
    %s94 = sphi 0, %s78
    %s110 = sphi 0, %s112
    %s113 = sphi 0, %s110
    %s114 = sphi 0, %s113
    %s130 = sphi 0, %s114
    %s134 = sphi 0, %s134
    %s136 = sphi 0, %s134
    %s137 = sphi 0, %s136
    %s151 = sphi 0, %s137
    %s155 = sphi 0, %s155
    %s157 = sphi 0, %s155
    %s158 = sphi 0, %s157
    %s172 = sphi 0, %s158
    %s176 = sphi 0, %s176
    %s178 = sphi 0, %s176
    %s179 = sphi 0, %s178
    %s193 = sphi 0, %s179
    %s201 = sphi 0, %s203
    %s204 = sphi 0, %s201
    %s205 = sphi 0, %s204
    %s221 = sphi 0, %s205
    %s229 = sphi 0, %s231
    %s232 = sphi 0, %s229
    %s233 = sphi 0, %s232
    %s249 = sphi 0, %s233
  $region4: #{down_forward.4} parent=0 // loop_header_branch
    %17 = sbr.rel (%p15) target = $region8
  $region5: #{down_forward.4} parent=0 // loop_body
    %s19 = ssub.s32 %s14, 1
    %s20 = ssub.s32 %s14, 2
    %s27 = sadd.s32 1, %s22
    %p28 = scmp.ge.s32.totalorder %s27, 1
    %s29 = scalar_select %p28, 0, %s27
    %s30 = sadd.s32 1, %s21
    %s31 = scalar_select %p28, %s30, %s21
    %p32 = scmp.ge.s32.totalorder %s31, 2
    %s33 = scalar_select %p32, 0, %s31
    %s34 = ssub.s32 %s21, %s33
    %s35 = ssub.s32 %s22, %s29
    %s36 = sor.u32 %s34, %s35
    %p37 = scmp.eq.s32.totalorder %s36, 0
    %s39 = sadd.s32 %s38, 1
    %s40 = scalar_select %p37, %s38, %s39
    %p43 = pneg %p37
    %p44 = scmp.eq.s32.totalorder %s14, 1
    %p45 = por %p43, %p44
    %p46 = scmp.ne.s32.totalorder %s38, %s41
    %p47 = scmp.eq.s32.totalorder %s14, 0
    %p48 = por %p46, %p47
    %p49 = scmp.ne.s32.totalorder %s38, %s41
    %p50 = scmp.eq.s32.totalorder %s19, 1
    %p51 = por %p49, %p50
    %p52 = scmp.ne.s32.totalorder %s41, %s42
    %p53 = scmp.eq.s32.totalorder %s19, 0
    %p54 = por %p52, %p53
    %p55 = scmp.ne.s32.totalorder %s41, %s42
    %p56 = scmp.eq.s32.totalorder %s20, 1
    %p57 = por %p55, %p56
    %p59 = scmp.ne.s32.totalorder %s42, %s58
    %p60 = scmp.eq.s32.totalorder %s20, 0
    %p61 = por %p59, %p60
    %s62 = smul.u32 %s22, 8
    %s63 = ssub.s32 %s62, 1
    %p64 = scmp.gt.s32.totalorder %s63, 0
    %s65 = scalar_select %p64, %s63, 0
    %s66 = smul.u32 %s29, 8
    %s67 = ssub.s32 %s66, 1
    %p68 = scmp.gt.s32.totalorder %s67, 0
    %s69 = scalar_select %p68, %s67, 0
    %s70 = ssub.s32 %s21, %s33
    %s71 = ssub.s32 %s65, %s69
    %s72 = sor.u32 %s70, %s71
    %p73 = scmp.eq.s32.totalorder %s72, 0
    %s75 = sadd.s32 %s74, 1
    %s76 = scalar_select %p73, %s74, %s75
    %p79 = pneg %p73
    %p80 = scmp.eq.s32.totalorder %s14, 1
    %p81 = por %p79, %p80
    %p82 = scmp.ne.s32.totalorder %s74, %s77
    %p83 = scmp.eq.s32.totalorder %s14, 0
    %p84 = por %p82, %p83
    %p85 = scmp.ne.s32.totalorder %s74, %s77
    %p86 = scmp.eq.s32.totalorder %s19, 1
    %p87 = por %p85, %p86
    %p88 = scmp.ne.s32.totalorder %s77, %s78
    %p89 = scmp.eq.s32.totalorder %s19, 0
    %p90 = por %p88, %p89
    %p91 = scmp.ne.s32.totalorder %s77, %s78
    %p92 = scmp.eq.s32.totalorder %s20, 1
    %p93 = por %p91, %p92
    %p95 = scmp.ne.s32.totalorder %s78, %s94
    %p96 = scmp.eq.s32.totalorder %s20, 0
    %p97 = por %p95, %p96
    %s98 = smul.u32 %s22, 8
    %s99 = sadd.s32 %s98, 8
    %p100 = scmp.lt.s32.totalorder %s99, 7
    %s101 = scalar_select %p100, %s99, 7
    %s102 = smul.u32 %s29, 8
    %s103 = sadd.s32 %s102, 8
    %p104 = scmp.lt.s32.totalorder %s103, 7
    %s105 = scalar_select %p104, %s103, 7
    %s106 = ssub.s32 %s21, %s33
    %s107 = ssub.s32 %s101, %s105
    %s108 = sor.u32 %s106, %s107
    %p109 = scmp.eq.s32.totalorder %s108, 0
    %s111 = sadd.s32 %s110, 1
    %s112 = scalar_select %p109, %s110, %s111
    %p115 = pneg %p109
    %p116 = scmp.eq.s32.totalorder %s14, 1
    %p117 = por %p115, %p116
    %p118 = scmp.ne.s32.totalorder %s110, %s113
    %p119 = scmp.eq.s32.totalorder %s14, 0
    %p120 = por %p118, %p119
    %p121 = scmp.ne.s32.totalorder %s110, %s113
    %p122 = scmp.eq.s32.totalorder %s19, 1
    %p123 = por %p121, %p122
    %p124 = scmp.ne.s32.totalorder %s113, %s114
    %p125 = scmp.eq.s32.totalorder %s19, 0
    %p126 = por %p124, %p125
    %p127 = scmp.ne.s32.totalorder %s113, %s114
    %p128 = scmp.eq.s32.totalorder %s20, 1
    %p129 = por %p127, %p128
    %p131 = scmp.ne.s32.totalorder %s114, %s130
    %p132 = scmp.eq.s32.totalorder %s20, 0
    %p133 = por %p131, %p132
    %s135 = sadd.s32 %s134, 1
    %p138 = scmp.eq.s32.totalorder %s14, 1
    %p139 = scmp.ne.s32.totalorder %s134, %s136
    %p140 = scmp.eq.s32.totalorder %s14, 0
    %p141 = por %p139, %p140
    %p142 = scmp.ne.s32.totalorder %s134, %s136
    %p143 = scmp.eq.s32.totalorder %s19, 1
    %p144 = por %p142, %p143
    %p145 = scmp.ne.s32.totalorder %s136, %s137
    %p146 = scmp.eq.s32.totalorder %s19, 0
    %p147 = por %p145, %p146
    %p148 = scmp.ne.s32.totalorder %s136, %s137
    %p149 = scmp.eq.s32.totalorder %s20, 1
    %p150 = por %p148, %p149
    %p152 = scmp.ne.s32.totalorder %s137, %s151
    %p153 = scmp.eq.s32.totalorder %s20, 0
    %p154 = por %p152, %p153
    %s156 = sadd.s32 %s155, 1
    %p159 = scmp.eq.s32.totalorder %s14, 1
    %p160 = scmp.ne.s32.totalorder %s155, %s157
    %p161 = scmp.eq.s32.totalorder %s14, 0
    %p162 = por %p160, %p161
    %p163 = scmp.ne.s32.totalorder %s155, %s157
    %p164 = scmp.eq.s32.totalorder %s19, 1
    %p165 = por %p163, %p164
    %p166 = scmp.ne.s32.totalorder %s157, %s158
    %p167 = scmp.eq.s32.totalorder %s19, 0
    %p168 = por %p166, %p167
    %p169 = scmp.ne.s32.totalorder %s157, %s158
    %p170 = scmp.eq.s32.totalorder %s20, 1
    %p171 = por %p169, %p170
    %p173 = scmp.ne.s32.totalorder %s158, %s172
    %p174 = scmp.eq.s32.totalorder %s20, 0
    %p175 = por %p173, %p174
    %s177 = sadd.s32 %s176, 1
    %p180 = scmp.eq.s32.totalorder %s14, 1
    %p181 = scmp.ne.s32.totalorder %s176, %s178
    %p182 = scmp.eq.s32.totalorder %s14, 0
    %p183 = por %p181, %p182
    %p184 = scmp.ne.s32.totalorder %s176, %s178
    %p185 = scmp.eq.s32.totalorder %s19, 1
    %p186 = por %p184, %p185
    %p187 = scmp.ne.s32.totalorder %s178, %s179
    %p188 = scmp.eq.s32.totalorder %s19, 0
    %p189 = por %p187, %p188
    %p190 = scmp.ne.s32.totalorder %s178, %s179
    %p191 = scmp.eq.s32.totalorder %s20, 1
    %p192 = por %p190, %p191
    %p194 = scmp.ne.s32.totalorder %s179, %s193
    %p195 = scmp.eq.s32.totalorder %s20, 0
    %p196 = por %p194, %p195
    %s197 = ssub.s32 %s21, %s33
    %s198 = ssub.s32 %s22, %s29
    %s199 = sor.u32 %s197, %s198
    %p200 = scmp.eq.s32.totalorder %s199, 0
    %s202 = sadd.s32 %s201, 1
    %s203 = scalar_select %p200, %s201, %s202
    %p206 = pneg %p200
    %p207 = scmp.eq.s32.totalorder %s14, 1
    %p208 = por %p206, %p207
    %p209 = scmp.ne.s32.totalorder %s201, %s204
    %p210 = scmp.eq.s32.totalorder %s14, 0
    %p211 = por %p209, %p210
    %p212 = scmp.ne.s32.totalorder %s201, %s204
    %p213 = scmp.eq.s32.totalorder %s19, 1
    %p214 = por %p212, %p213
    %p215 = scmp.ne.s32.totalorder %s204, %s205
    %p216 = scmp.eq.s32.totalorder %s19, 0
    %p217 = por %p215, %p216
    %p218 = scmp.ne.s32.totalorder %s204, %s205
    %p219 = scmp.eq.s32.totalorder %s20, 1
    %p220 = por %p218, %p219
    %p222 = scmp.ne.s32.totalorder %s205, %s221
    %p223 = scmp.eq.s32.totalorder %s20, 0
    %p224 = por %p222, %p223
    %s225 = ssub.s32 %s21, %s33
    %s226 = ssub.s32 %s22, %s29
    %s227 = sor.u32 %s225, %s226
    %p228 = scmp.eq.s32.totalorder %s227, 0
    %s230 = sadd.s32 %s229, 1
    %s231 = scalar_select %p228, %s229, %s230
    %p234 = pneg %p228
    %p235 = scmp.eq.s32.totalorder %s14, 1
    %p236 = por %p234, %p235
    %p237 = scmp.ne.s32.totalorder %s229, %s232
    %p238 = scmp.eq.s32.totalorder %s14, 0
    %p239 = por %p237, %p238
    %p240 = scmp.ne.s32.totalorder %s229, %s232
    %p241 = scmp.eq.s32.totalorder %s19, 1
    %p242 = por %p240, %p241
    %p243 = scmp.ne.s32.totalorder %s232, %s233
    %p244 = scmp.eq.s32.totalorder %s19, 0
    %p245 = por %p243, %p244
    %p246 = scmp.ne.s32.totalorder %s232, %s233
    %p247 = scmp.eq.s32.totalorder %s20, 1
    %p248 = por %p246, %p247
    %p250 = scmp.ne.s32.totalorder %s233, %s249
    %p251 = scmp.eq.s32.totalorder %s20, 0
    %p252 = por %p250, %p251
    %p253 = scmp.le.s32.totalorder 1, %s14
    %p254 = scmp.lt.s32.totalorder %s14, 3
    %p255 = pnand %p253, %p254
    %p256 = pneg %p255
    // Predicated region
    $region9: #{down_forward.4} parent=5 // pred_check
      _
    $region10: #{down_forward.4} parent=5 // pred_check_branch
      %258 = sbr.rel (%p255) target = $region12
    $region11: #{down_forward.4} parent=5 // pred_region
      %s259 = ssub.s32 %s14, 1
      // Predicated region
      $region13: #{down_forward.4} parent=11 // pred_check
        %p260 = pneg %p147
      $region14: #{down_forward.4} parent=11 // pred_check_branch
        %262 = sbr.rel (%p260) target = $region16
      $region15: #{down_forward.4} parent=11 // pred_region
        _
      $region16: #{down_forward.4} parent=11 // pred_fallthru
        _
      // Predicated region
      $region17: #{down_forward.4} parent=11 // pred_check
        %p263 = pneg %p168
      $region18: #{down_forward.4} parent=11 // pred_check_branch
        %265 = sbr.rel (%p263) target = $region20
      $region19: #{down_forward.4} parent=11 // pred_region
        _
      $region20: #{down_forward.4} parent=11 // pred_fallthru
        _
      // Predicated region
      $region21: #{down_forward.4} parent=11 // pred_check
        %p266 = pneg %p189
      $region22: #{down_forward.4} parent=11 // pred_check_branch
        %268 = sbr.rel (%p266) target = $region24
      $region23: #{down_forward.4} parent=11 // pred_region
        _
      $region24: #{down_forward.4} parent=11 // pred_fallthru
        _
    $region12: #{down_forward.4} parent=5 // pred_fallthru
      _
    %p269 = scmp.lt.s32.totalorder %s14, 2
    // Predicated region
    $region25: #{down_forward.4} parent=5 // pred_check
      %p270 = pneg %p269
    $region26: #{down_forward.4} parent=5 // pred_check_branch
      %272 = sbr.rel (%p270) target = $region28
    $region27: #{down_forward.4} parent=5 // pred_region
      // Predicated region
      $region29: #{down_forward.4} parent=27 // pred_check
        %p273 = pneg %p48
      $region30: #{down_forward.4} parent=27 // pred_check_branch
        %275 = sbr.rel (%p273) target = $region32
      $region31: #{down_forward.4} parent=27 // pred_region
        %s276 = smul.u32 8, %s22
        %p277 = scmp.lt.s32.totalorder %s21, 1
        %s278 = scalar_select %p277, %s21, 1
        %p279 = scmp.lt.s32.totalorder %s276, 7
        %s280 = scalar_select %p279, %s276, 7
        %s281 = smul.addr %s278, 8
        %s282 = sadd.s32 %s280, %s281
        %s283 = smul.addr %s282, 4
        %s284 = scalar_lea.vmem %s0, %s283
        %s285 = smul.u32 8, %s22
      $region32: #{down_forward.4} parent=27 // pred_fallthru
        _
      // Predicated region
      $region33: #{down_forward.4} parent=27 // pred_check
        %p286 = pneg %p84
      $region34: #{down_forward.4} parent=27 // pred_check_branch
        %288 = sbr.rel (%p286) target = $region36
      $region35: #{down_forward.4} parent=27 // pred_region
        %s289 = smul.u32 %s22, 8
        %s290 = ssub.s32 %s289, 1
        %p291 = scmp.gt.s32.totalorder %s290, 0
        %s292 = scalar_select %p291, %s290, 0
        %p293 = scmp.lt.s32.totalorder %s21, 1
        %s294 = scalar_select %p293, %s21, 1
        %p295 = scmp.lt.s32.totalorder %s292, 7
        %s296 = scalar_select %p295, %s292, 7
        %s297 = smul.addr %s294, 8
        %s298 = sadd.s32 %s296, %s297
        %s299 = smul.addr %s298, 4
        %s300 = scalar_lea.vmem %s1, %s299
        %s301 = smul.u32 %s22, 8
        %s302 = ssub.s32 %s301, 1
        %p303 = scmp.gt.s32.totalorder %s302, 0
        %s304 = scalar_select %p303, %s302, 0
      $region36: #{down_forward.4} parent=27 // pred_fallthru
        _
      // Predicated region
      $region37: #{down_forward.4} parent=27 // pred_check
        %p305 = pneg %p120
      $region38: #{down_forward.4} parent=27 // pred_check_branch
        %307 = sbr.rel (%p305) target = $region40
      $region39: #{down_forward.4} parent=27 // pred_region
        %s308 = smul.u32 %s22, 8
        %s309 = sadd.s32 %s308, 8
        %p310 = scmp.lt.s32.totalorder %s309, 7
        %s311 = scalar_select %p310, %s309, 7
        %p312 = scmp.lt.s32.totalorder %s21, 1
        %s313 = scalar_select %p312, %s21, 1
        %p314 = scmp.lt.s32.totalorder %s311, 7
        %s315 = scalar_select %p314, %s311, 7
        %s316 = smul.addr %s313, 8
        %s317 = sadd.s32 %s315, %s316
        %s318 = smul.addr %s317, 4
        %s319 = scalar_lea.vmem %s2, %s318
        %s320 = smul.u32 %s22, 8
        %s321 = sadd.s32 %s320, 8
        %p322 = scmp.lt.s32.totalorder %s321, 7
        %s323 = scalar_select %p322, %s321, 7
      $region40: #{down_forward.4} parent=27 // pred_fallthru
        _
    $region28: #{down_forward.4} parent=5 // pred_fallthru
      _
    %p324 = scmp.le.s32.totalorder 1, %s14
    %p325 = scmp.lt.s32.totalorder %s14, 3
    %p326 = pnand %p324, %p325
    %p327 = pneg %p326
    // Predicated region
    $region41: #{down_forward.4} parent=5 // pred_check
      _
    $region42: #{down_forward.4} parent=5 // pred_check_branch
      %329 = sbr.rel (%p326) target = $region44
    $region43: #{down_forward.4} parent=5 // pred_region
      %s330 = ssub.s32 %s14, 1
      %s331 = smul.u32 8, %s24
      %p332 = scmp.lt.s32.totalorder %s23, 1
      %s333 = scalar_select %p332, %s23, 1
      %p334 = scmp.lt.s32.totalorder %s331, 7
      %s335 = scalar_select %p334, %s331, 7
      %s336 = smul.addr %s333, 8
      %s337 = sadd.s32 %s335, %s336
      %s338 = smul.addr %s337, 4
      %s339 = scalar_lea.vmem %s0, %s338
      %p340 = pneg %p54
      %p341 = pneg %p51
      %s342 = smul.u32 %s24, 8
      %s343 = ssub.s32 %s342, 1
      %p344 = scmp.gt.s32.totalorder %s343, 0
      %s345 = scalar_select %p344, %s343, 0
      %p346 = scmp.lt.s32.totalorder %s23, 1
      %s347 = scalar_select %p346, %s23, 1
      %p348 = scmp.lt.s32.totalorder %s345, 7
      %s349 = scalar_select %p348, %s345, 7
      %s350 = smul.addr %s347, 8
      %s351 = sadd.s32 %s349, %s350
      %s352 = smul.addr %s351, 4
      %s353 = scalar_lea.vmem %s1, %s352
      %p354 = pneg %p90
      %p355 = pneg %p87
      %s356 = smul.u32 %s24, 8
      %s357 = sadd.s32 %s356, 8
      %p358 = scmp.lt.s32.totalorder %s357, 7
      %s359 = scalar_select %p358, %s357, 7
      %p360 = scmp.lt.s32.totalorder %s23, 1
      %s361 = scalar_select %p360, %s23, 1
      %p362 = scmp.lt.s32.totalorder %s359, 7
      %s363 = scalar_select %p362, %s359, 7
      %s364 = smul.addr %s361, 8
      %s365 = sadd.s32 %s363, %s364
      %s366 = smul.addr %s365, 4
      %s367 = scalar_lea.vmem %s2, %s366
      %p368 = pneg %p126
      %p369 = pneg %p123
      %p370 = pneg %p147
      %p371 = pneg %p144
      %p372 = pneg %p168
      %p373 = pneg %p165
      %p374 = pneg %p189
      %p375 = pneg %p186
      %p376 = pneg %p217
      %p377 = pneg %p214
      %s378 = smul.u32 8, %s24
      %p379 = scmp.lt.s32.totalorder %s23, 1
      %s380 = scalar_select %p379, %s23, 1
      %p381 = scmp.lt.s32.totalorder %s378, 7
      %s382 = scalar_select %p381, %s378, 7
      %s383 = smul.addr %s380, 8
      %s384 = sadd.s32 %s382, %s383
      %s385 = smul.addr %s384, 4
      %s386 = scalar_lea.vmem %s6, %s385
      %p387 = pneg %p245
      %p388 = pneg %p242
      %p389 = scmp.lt.s32.totalorder %s23, 1
      %s390 = scalar_select %p389, %s23, 1
      %p391 = scmp.lt.s32.totalorder %s24, 0
      %s392 = scalar_select %p391, %s24, 0
      %s393 = sadd.s32 %s392, %s390
      %s394 = smul.addr %s393, 2
      %s395 = scalar_lea.vmem %s7, %s394
      %s396 = smul.u32 8, %s24
      %p397 = scmp.lt.s32.totalorder %s23, 1
      %s398 = scalar_select %p397, %s23, 1
      %p399 = scmp.lt.s32.totalorder %s396, 7
      %s400 = scalar_select %p399, %s396, 7
      %s401 = smul.addr %s398, 8
      %s402 = sadd.s32 %s400, %s401
      %s403 = smul.addr %s402, 4
      %s404 = scalar_lea.vmem %s0, %s403
      %s405 = smul.u32 8, %s24
      %s406 = smul.u32 %s24, 8
      %s407 = ssub.s32 %s406, 1
      %p408 = scmp.gt.s32.totalorder %s407, 0
      %s409 = scalar_select %p408, %s407, 0
      %p410 = scmp.lt.s32.totalorder %s23, 1
      %s411 = scalar_select %p410, %s23, 1
      %p412 = scmp.lt.s32.totalorder %s409, 7
      %s413 = scalar_select %p412, %s409, 7
      %s414 = smul.addr %s411, 8
      %s415 = sadd.s32 %s413, %s414
      %s416 = smul.addr %s415, 4
      %s417 = scalar_lea.vmem %s1, %s416
      %s418 = smul.u32 %s24, 8
      %s419 = ssub.s32 %s418, 1
      %p420 = scmp.gt.s32.totalorder %s419, 0
      %s421 = scalar_select %p420, %s419, 0
      %s422 = smul.u32 %s24, 8
      %s423 = sadd.s32 %s422, 8
      %p424 = scmp.lt.s32.totalorder %s423, 7
      %s425 = scalar_select %p424, %s423, 7
      %p426 = scmp.lt.s32.totalorder %s23, 1
      %s427 = scalar_select %p426, %s23, 1
      %p428 = scmp.lt.s32.totalorder %s425, 7
      %s429 = scalar_select %p428, %s425, 7
      %s430 = smul.addr %s427, 8
      %s431 = sadd.s32 %s429, %s430
      %s432 = smul.addr %s431, 4
      %s433 = scalar_lea.vmem %s2, %s432
      %s434 = smul.u32 %s24, 8
      %s435 = sadd.s32 %s434, 8
      %p436 = scmp.lt.s32.totalorder %s435, 7
      %s437 = scalar_select %p436, %s435, 7
      %s438 = smul.u32 8, %s24
      %p439 = scmp.lt.s32.totalorder %s23, 1
      %s440 = scalar_select %p439, %s23, 1
      %p441 = scmp.lt.s32.totalorder %s438, 7
      %s442 = scalar_select %p441, %s438, 7
      %s443 = smul.addr %s440, 8
      %s444 = sadd.s32 %s442, %s443
      %s445 = smul.addr %s444, 4
      %s446 = scalar_lea.vmem %s6, %s445
      %s447 = smul.u32 8, %s24
      %p448 = scmp.lt.s32.totalorder %s23, 1
      %s449 = scalar_select %p448, %s23, 1
      %p450 = scmp.lt.s32.totalorder %s24, 0
      %s451 = scalar_select %p450, %s24, 0
      %s452 = sadd.s32 %s451, %s449
      %s453 = smul.addr %s452, 2
      %s454 = scalar_lea.vmem %s7, %s453
      %v456 = vld [vmem:[%s3] sm:$0x1]
      %v457 = vld [vmem:[%s4] sm:$0x1]
      %v458 = vld [vmem:[%s417] sm:$0xf]
      %v459 = vunpack.c.l.bf16 %v458
      %v461 = vlaneseq
      %v462 = vshrl.u32 %v461, 7
      %v463 = vsub.s32 0, %v462
      %v464 = vrot.slane %v456, %v463
      %v466 = vmul.f32 %v459, %v464
      %v468 = vlaneseq
      %v469 = vshrl.u32 %v468, 7
      %v470 = vsub.s32 0, %v469
      %v471 = vrot.slane %v457, %v470
      %v473 = vadd.f32 %v466, %v471
      %v474 = vmax.f32 %v473, 0.0
      %v475 = vld [vmem:[%s404] sm:$0xf]
      %v476 = vld [vmem:[%s404 + $0x4] sm:$0xf]
      %v477 = vld [vmem:[%s404 + $0x8] sm:$0xf]
      %v478 = vld [vmem:[%s404 + $0xc] sm:$0xf]
      %v479 = vld [vmem:[%s404 + $0x10] sm:$0xf]
      %v480 = vld [vmem:[%s404 + $0x14] sm:$0xf]
      %v481 = vld [vmem:[%s404 + $0x18] sm:$0xf]
      %v482 = vld [vmem:[%s404 + $0x1c] sm:$0xf]
      %v483 = vunpack.c.l.bf16 %v475
      %v484 = vunpack.c.l.bf16 %v476
      %v485 = vunpack.c.l.bf16 %v477
      %v486 = vunpack.c.l.bf16 %v478
      %v487 = vunpack.c.l.bf16 %v479
      %v488 = vunpack.c.l.bf16 %v480
      %v489 = vunpack.c.l.bf16 %v481
      %v490 = vunpack.c.l.bf16 %v482
      %v491 = vmul.f32 %v483, %v464
      %v492 = vmul.f32 %v484, %v464
      %v493 = vmul.f32 %v485, %v464
      %v494 = vmul.f32 %v486, %v464
      %v495 = vmul.f32 %v487, %v464
      %v496 = vmul.f32 %v488, %v464
      %v497 = vmul.f32 %v489, %v464
      %v498 = vmul.f32 %v490, %v464
      %v499 = vadd.f32 %v491, %v471
      %v500 = vadd.f32 %v492, %v471
      %v501 = vadd.f32 %v493, %v471
      %v502 = vadd.f32 %v494, %v471
      %v503 = vadd.f32 %v495, %v471
      %v504 = vadd.f32 %v496, %v471
      %v505 = vadd.f32 %v497, %v471
      %v506 = vadd.f32 %v498, %v471
      %v507 = vmax.f32 %v499, 0.0
      %v508 = vmax.f32 %v500, 0.0
      %v509 = vmax.f32 %v501, 0.0
      %v510 = vmax.f32 %v502, 0.0
      %v511 = vmax.f32 %v503, 0.0
      %v512 = vmax.f32 %v504, 0.0
      %v513 = vmax.f32 %v505, 0.0
      %v514 = vmax.f32 %v506, 0.0
      %v515 = vld [vmem:[%s433] sm:$0xf]
      %v516 = vunpack.c.l.bf16 %v515
      %v517 = vmul.f32 %v516, %v464
      %v518 = vadd.f32 %v517, %v471
      %v519 = vmax.f32 %v518, 0.0
      %v520 = vpack.c.bf16 %v474, %v474
      %v521 = vpack.c.bf16 %v507, %v507
      %v522 = vpack.c.bf16 %v508, %v508
      %v523 = vpack.c.bf16 %v509, %v509
      %v524 = vpack.c.bf16 %v510, %v510
      %v525 = vpack.c.bf16 %v511, %v511
      %v526 = vpack.c.bf16 %v512, %v512
      %v527 = vpack.c.bf16 %v513, %v513
      %v528 = vpack.c.bf16 %v514, %v514
      %v529 = vpack.c.bf16 %v519, %v519
      %v540 = vunpack.c.l.b16 %v520
      %v541 = vunpack.c.l.b16 %v521
      %v542 = vunpack.c.l.b16 %v522
      %v543 = vunpack.c.l.b16 %v523
      %v544 = vunpack.c.l.b16 %v524
      %v545 = vunpack.c.l.b16 %v525
      %v546 = vunpack.c.l.b16 %v526
      %v547 = vunpack.c.l.b16 %v527
      %v548 = vunpack.c.l.b16 %v528
      %v549 = vunpack.c.l.b16 %v529
      %v550 = vpack.c.b16 %v540, %v540
      %v551 = vpack.c.b16 %v541, %v541
      %v552 = vpack.c.b16 %v542, %v542
      %v553 = vpack.c.b16 %v543, %v543
      %v554 = vpack.c.b16 %v544, %v544
      %v555 = vpack.c.b16 %v545, %v545
      %v556 = vpack.c.b16 %v546, %v546
      %v557 = vpack.c.b16 %v547, %v547
      %v558 = vpack.c.b16 %v548, %v548
      %v559 = vpack.c.b16 %v549, %v549
      %v561 = vshrl.u32 %v550, 16
      %v563 = vrot.slane %v561, 7
      %v564 = vshll.u32 %v550, 16
      %v566 = vor.u32 %v563, %v564
      %v567 = vrot.slane %v563, 4
      %v569 = vshrl.u32 %v551, 16
      %v571 = vrot.slane %v569, 7
      %v572 = vshll.u32 %v551, 16
      %v574 = vor.u32 %v571, %v572
      %v575 = vrot.slane %v571, 4
      %v577 = vshrl.u32 %v552, 16
      %v579 = vrot.slane %v577, 7
      %v580 = vshll.u32 %v552, 16
      %v582 = vor.u32 %v579, %v580
      %v583 = vrot.slane %v579, 4
      %v585 = vshrl.u32 %v553, 16
      %v587 = vrot.slane %v585, 7
      %v588 = vshll.u32 %v553, 16
      %v590 = vor.u32 %v587, %v588
      %v591 = vrot.slane %v587, 4
      %v593 = vshrl.u32 %v554, 16
      %v595 = vrot.slane %v593, 7
      %v596 = vshll.u32 %v554, 16
      %v598 = vor.u32 %v595, %v596
      %v599 = vrot.slane %v595, 4
      %v601 = vshrl.u32 %v555, 16
      %v603 = vrot.slane %v601, 7
      %v604 = vshll.u32 %v555, 16
      %v606 = vor.u32 %v603, %v604
      %v607 = vrot.slane %v603, 4
      %v609 = vshrl.u32 %v556, 16
      %v611 = vrot.slane %v609, 7
      %v612 = vshll.u32 %v556, 16
      %v614 = vor.u32 %v611, %v612
      %v615 = vrot.slane %v611, 4
      %v617 = vshrl.u32 %v557, 16
      %v619 = vrot.slane %v617, 7
      %v620 = vshll.u32 %v557, 16
      %v622 = vor.u32 %v619, %v620
      %v623 = vrot.slane %v619, 4
      %v625 = vshrl.u32 %v558, 16
      %v627 = vrot.slane %v625, 7
      %v628 = vshll.u32 %v558, 16
      %v630 = vor.u32 %v627, %v628
      %v631 = vrot.slane %v627, 4
      %v633 = vshrl.u32 %v559, 16
      %v635 = vrot.slane %v633, 7
      %v636 = vshll.u32 %v559, 16
      %v638 = vor.u32 %v635, %v636
      %v639 = vrot.slane %v635, 4
      %vm660 = vcmask 1043456
      %vm661 = vsmask.f32 7938
      %vm662 = vmand %vm660, %vm661
      %v663 = vld [vmem:[#allocation2] sm:$0xf]
      %v664 = vsel %vm662, %v566, %v663
      %665 = vst [vmem:[#allocation2] sm:$0xf] %v664
      %vm666 = vcmask 1040384
      %vm667 = vsmask.f32 256
      %vm668 = vmand %vm666, %vm667
      %v669 = vld [vmem:[#allocation2 + $0x4] sm:$0x1]
      %v670 = vsel %vm668, %v567, %v669
      %671 = vst [vmem:[#allocation2 + $0x4] sm:$0x1] %v670
      %v672 = vld [vmem:[#allocation2 + $0x8] sm:$0xf]
      %v673 = vsel %vm662, %v574, %v672
      %674 = vst [vmem:[#allocation2 + $0x8] sm:$0xf] %v673
      %v675 = vld [vmem:[#allocation2 + $0xc] sm:$0x1]
      %v676 = vsel %vm668, %v575, %v675
      %677 = vst [vmem:[#allocation2 + $0xc] sm:$0x1] %v676
      %v678 = vld [vmem:[#allocation2 + $0x10] sm:$0xf]
      %v679 = vsel %vm662, %v582, %v678
      %680 = vst [vmem:[#allocation2 + $0x10] sm:$0xf] %v679
      %v681 = vld [vmem:[#allocation2 + $0x14] sm:$0x1]
      %v682 = vsel %vm668, %v583, %v681
      %683 = vst [vmem:[#allocation2 + $0x14] sm:$0x1] %v682
      %v684 = vld [vmem:[#allocation2 + $0x18] sm:$0xf]
      %v685 = vsel %vm662, %v590, %v684
      %686 = vst [vmem:[#allocation2 + $0x18] sm:$0xf] %v685
      %v687 = vld [vmem:[#allocation2 + $0x1c] sm:$0x1]
      %v688 = vsel %vm668, %v591, %v687
      %689 = vst [vmem:[#allocation2 + $0x1c] sm:$0x1] %v688
      %v690 = vld [vmem:[#allocation2 + $0x20] sm:$0xf]
      %v691 = vsel %vm662, %v598, %v690
      %692 = vst [vmem:[#allocation2 + $0x20] sm:$0xf] %v691
      %v693 = vld [vmem:[#allocation2 + $0x24] sm:$0x1]
      %v694 = vsel %vm668, %v599, %v693
      %695 = vst [vmem:[#allocation2 + $0x24] sm:$0x1] %v694
      %v696 = vld [vmem:[#allocation2 + $0x28] sm:$0xf]
      %v697 = vsel %vm662, %v606, %v696
      %698 = vst [vmem:[#allocation2 + $0x28] sm:$0xf] %v697
      %v699 = vld [vmem:[#allocation2 + $0x2c] sm:$0x1]
      %v700 = vsel %vm668, %v607, %v699
      %701 = vst [vmem:[#allocation2 + $0x2c] sm:$0x1] %v700
      %v702 = vld [vmem:[#allocation2 + $0x30] sm:$0xf]
      %v703 = vsel %vm662, %v614, %v702
      %704 = vst [vmem:[#allocation2 + $0x30] sm:$0xf] %v703
      %v705 = vld [vmem:[#allocation2 + $0x34] sm:$0x1]
      %v706 = vsel %vm668, %v615, %v705
      %707 = vst [vmem:[#allocation2 + $0x34] sm:$0x1] %v706
      %v708 = vld [vmem:[#allocation2 + $0x38] sm:$0xf]
      %v709 = vsel %vm662, %v622, %v708
      %710 = vst [vmem:[#allocation2 + $0x38] sm:$0xf] %v709
      %v711 = vld [vmem:[#allocation2 + $0x3c] sm:$0x1]
      %v712 = vsel %vm668, %v623, %v711
      %713 = vst [vmem:[#allocation2 + $0x3c] sm:$0x1] %v712
      %v714 = vld [vmem:[#allocation2 + $0x40] sm:$0xf]
      %v715 = vsel %vm662, %v630, %v714
      %716 = vst [vmem:[#allocation2 + $0x40] sm:$0xf] %v715
      %v717 = vld [vmem:[#allocation2 + $0x44] sm:$0x1]
      %v718 = vsel %vm668, %v631, %v717
      %719 = vst [vmem:[#allocation2 + $0x44] sm:$0x1] %v718
      %v720 = vld [vmem:[#allocation2 + $0x48] sm:$0xf]
      %v721 = vsel %vm662, %v638, %v720
      %722 = vst [vmem:[#allocation2 + $0x48] sm:$0xf] %v721
      %v723 = vld [vmem:[#allocation2 + $0x4c] sm:$0x1]
      %v724 = vsel %vm668, %v639, %v723
      %725 = vst [vmem:[#allocation2 + $0x4c] sm:$0x1] %v724
      %v726 = vld [vmem:[#allocation2] sm:$0x1]
      %v727 = vsel %vm668, 0, %v726
      %728 = vst [vmem:[#allocation2] sm:$0x1] %v727
      %v729 = vld [vmem:[#allocation2 + $0x8] sm:$0x1]
      %v730 = vsel %vm668, 0, %v729
      %731 = vst [vmem:[#allocation2 + $0x8] sm:$0x1] %v730
      %v732 = vld [vmem:[#allocation2 + $0x10] sm:$0x1]
      %v733 = vsel %vm668, 0, %v732
      %734 = vst [vmem:[#allocation2 + $0x10] sm:$0x1] %v733
      %v735 = vld [vmem:[#allocation2 + $0x18] sm:$0x1]
      %v736 = vsel %vm668, 0, %v735
      %737 = vst [vmem:[#allocation2 + $0x18] sm:$0x1] %v736
      %v738 = vld [vmem:[#allocation2 + $0x20] sm:$0x1]
      %v739 = vsel %vm668, 0, %v738
      %740 = vst [vmem:[#allocation2 + $0x20] sm:$0x1] %v739
      %v741 = vld [vmem:[#allocation2 + $0x28] sm:$0x1]
      %v742 = vsel %vm668, 0, %v741
      %743 = vst [vmem:[#allocation2 + $0x28] sm:$0x1] %v742
      %v744 = vld [vmem:[#allocation2 + $0x30] sm:$0x1]
      %v745 = vsel %vm668, 0, %v744
      %746 = vst [vmem:[#allocation2 + $0x30] sm:$0x1] %v745
      %v747 = vld [vmem:[#allocation2 + $0x38] sm:$0x1]
      %v748 = vsel %vm668, 0, %v747
      %749 = vst [vmem:[#allocation2 + $0x38] sm:$0x1] %v748
      %v750 = vld [vmem:[#allocation2 + $0x40] sm:$0x1]
      %v751 = vsel %vm668, 0, %v750
      %752 = vst [vmem:[#allocation2 + $0x40] sm:$0x1] %v751
      %v753 = vld [vmem:[#allocation2 + $0x48] sm:$0x1]
      %v754 = vsel %vm668, 0, %v753
      %755 = vst [vmem:[#allocation2 + $0x48] sm:$0x1] %v754
      %vm756 = vmand %vm666, %vm661
      %v757 = vld [vmem:[#allocation2 + $0x4] sm:$0x1]
      %v758 = vsel %vm756, 0, %v757
      %759 = vst [vmem:[#allocation2 + $0x4] sm:$0x1] %v758
      %v760 = vld [vmem:[#allocation2 + $0xc] sm:$0x1]
      %v761 = vsel %vm756, 0, %v760
      %762 = vst [vmem:[#allocation2 + $0xc] sm:$0x1] %v761
      %v763 = vld [vmem:[#allocation2 + $0x14] sm:$0x1]
      %v764 = vsel %vm756, 0, %v763
      %765 = vst [vmem:[#allocation2 + $0x14] sm:$0x1] %v764
      %v766 = vld [vmem:[#allocation2 + $0x1c] sm:$0x1]
      %v767 = vsel %vm756, 0, %v766
      %768 = vst [vmem:[#allocation2 + $0x1c] sm:$0x1] %v767
      %v769 = vld [vmem:[#allocation2 + $0x24] sm:$0x1]
      %v770 = vsel %vm756, 0, %v769
      %771 = vst [vmem:[#allocation2 + $0x24] sm:$0x1] %v770
      %v772 = vld [vmem:[#allocation2 + $0x2c] sm:$0x1]
      %v773 = vsel %vm756, 0, %v772
      %774 = vst [vmem:[#allocation2 + $0x2c] sm:$0x1] %v773
      %v775 = vld [vmem:[#allocation2 + $0x34] sm:$0x1]
      %v776 = vsel %vm756, 0, %v775
      %777 = vst [vmem:[#allocation2 + $0x34] sm:$0x1] %v776
      %v778 = vld [vmem:[#allocation2 + $0x3c] sm:$0x1]
      %v779 = vsel %vm756, 0, %v778
      %780 = vst [vmem:[#allocation2 + $0x3c] sm:$0x1] %v779
      %v781 = vld [vmem:[#allocation2 + $0x44] sm:$0x1]
      %v782 = vsel %vm756, 0, %v781
      %783 = vst [vmem:[#allocation2 + $0x44] sm:$0x1] %v782
      %v784 = vld [vmem:[#allocation2 + $0x4c] sm:$0x1]
      %v785 = vsel %vm756, 0, %v784
      %786 = vst [vmem:[#allocation2 + $0x4c] sm:$0x1] %v785
      %p787 = scmp.eq.s32.totalorder %s24, 0
      // Predicated region
      $region45: #{down_forward.4} parent=43 // pred_check
        %p788 = pneg %p787
      $region46: #{down_forward.4} parent=43 // pred_check_branch
        %790 = sbr.rel (%p788) target = $region48
      $region47: #{down_forward.4} parent=43 // pred_region
        %v791 = vld [vmem:[#allocation2] sm:$0xf]
        %v792 = vsel %vm662, 0, %v791
        %793 = vst [vmem:[#allocation2] sm:$0xf] %v792
        %v794 = vld [vmem:[#allocation2 + $0x4] sm:$0x1]
        %v795 = vsel %vm668, 0, %v794
        %796 = vst [vmem:[#allocation2 + $0x4] sm:$0x1] %v795
      $region48: #{down_forward.4} parent=43 // pred_fallthru
        _
      %s797 = sadd.s32 %s24, 1
      %p798 = scmp.eq.s32.totalorder %s797, 1
      // Predicated region
      $region49: #{down_forward.4} parent=43 // pred_check
        %p799 = pneg %p798
      $region50: #{down_forward.4} parent=43 // pred_check_branch
        %801 = sbr.rel (%p799) target = $region52
      $region51: #{down_forward.4} parent=43 // pred_region
        %s802 = scalar_lea.vmem [#allocation2], 72
        %v803 = vld [vmem:[%s802] sm:$0xf]
        %v804 = vsel %vm662, 0, %v803
        %805 = vst [vmem:[%s802] sm:$0xf] %v804
        %v806 = vld [vmem:[%s802 + $0x4] sm:$0x1]
        %v807 = vsel %vm668, 0, %v806
        %808 = vst [vmem:[%s802 + $0x4] sm:$0x1] %v807
      $region52: #{down_forward.4} parent=43 // pred_fallthru
        _
      %v809 = vld [vmem:[#allocation2] sm:$0xf]
      %v810 = vld [vmem:[#allocation2 + $0x8] sm:$0xf]
      %v811 = vld [vmem:[#allocation2 + $0x10] sm:$0xf]
      %v812 = vld [vmem:[#allocation2 + $0x18] sm:$0xf]
      %v813 = vld [vmem:[#allocation2 + $0x20] sm:$0xf]
      %v814 = vld [vmem:[#allocation2 + $0x28] sm:$0xf]
      %v815 = vld [vmem:[#allocation2 + $0x30] sm:$0xf]
      %v816 = vld [vmem:[#allocation2 + $0x38] sm:$0xf]
      %v817 = vld [vmem:[#allocation2 + $0x4] sm:$0x1]
      %v818 = vld [vmem:[#allocation2 + $0xc] sm:$0x1]
      %v819 = vld [vmem:[#allocation2 + $0x14] sm:$0x1]
      %v820 = vld [vmem:[#allocation2 + $0x1c] sm:$0x1]
      %v821 = vld [vmem:[#allocation2 + $0x24] sm:$0x1]
      %v822 = vld [vmem:[#allocation2 + $0x2c] sm:$0x1]
      %v823 = vld [vmem:[#allocation2 + $0x34] sm:$0x1]
      %v824 = vld [vmem:[#allocation2 + $0x3c] sm:$0x1]
      %vm825 = vsmask.f32 3328
      %vm826 = vsmask.f32 7440
      %vm827 = vmor %vm825, %vm826
      %v829 = vshrl.u32 %v809, 16
      %v831 = vrot.slane %v829, 4
      %v832 = vshll.u32 %v809, 16
      %v834 = vrot.slane %v832, 5
      %v835 = vor.u32 %v831, %v834
      %v836 = vrot.slane %v835, 4
      %v838 = vshll.u32 %v817, 16
      %v840 = vrot.slane %v838, 5
      %v841 = vsel %vm827, %v836, %v840
      %v843 = vshrl.u32 %v810, 16
      %v845 = vrot.slane %v843, 4
      %v846 = vshll.u32 %v810, 16
      %v848 = vrot.slane %v846, 5
      %v849 = vor.u32 %v845, %v848
      %v850 = vrot.slane %v849, 4
      %v852 = vshll.u32 %v818, 16
      %v854 = vrot.slane %v852, 5
      %v855 = vsel %vm827, %v850, %v854
      %v857 = vshrl.u32 %v811, 16
      %v859 = vrot.slane %v857, 4
      %v860 = vshll.u32 %v811, 16
      %v862 = vrot.slane %v860, 5
      %v863 = vor.u32 %v859, %v862
      %v864 = vrot.slane %v863, 4
      %v866 = vshll.u32 %v819, 16
      %v868 = vrot.slane %v866, 5
      %v869 = vsel %vm827, %v864, %v868
      %v871 = vshrl.u32 %v812, 16
      %v873 = vrot.slane %v871, 4
      %v874 = vshll.u32 %v812, 16
      %v876 = vrot.slane %v874, 5
      %v877 = vor.u32 %v873, %v876
      %v878 = vrot.slane %v877, 4
      %v880 = vshll.u32 %v820, 16
      %v882 = vrot.slane %v880, 5
      %v883 = vsel %vm827, %v878, %v882
      %v885 = vshrl.u32 %v813, 16
      %v887 = vrot.slane %v885, 4
      %v888 = vshll.u32 %v813, 16
      %v890 = vrot.slane %v888, 5
      %v891 = vor.u32 %v887, %v890
      %v892 = vrot.slane %v891, 4
      %v894 = vshll.u32 %v821, 16
      %v896 = vrot.slane %v894, 5
      %v897 = vsel %vm827, %v892, %v896
      %v899 = vshrl.u32 %v814, 16
      %v901 = vrot.slane %v899, 4
      %v902 = vshll.u32 %v814, 16
      %v904 = vrot.slane %v902, 5
      %v905 = vor.u32 %v901, %v904
      %v906 = vrot.slane %v905, 4
      %v908 = vshll.u32 %v822, 16
      %v910 = vrot.slane %v908, 5
      %v911 = vsel %vm827, %v906, %v910
      %v913 = vshrl.u32 %v815, 16
      %v915 = vrot.slane %v913, 4
      %v916 = vshll.u32 %v815, 16
      %v918 = vrot.slane %v916, 5
      %v919 = vor.u32 %v915, %v918
      %v920 = vrot.slane %v919, 4
      %v922 = vshll.u32 %v823, 16
      %v924 = vrot.slane %v922, 5
      %v925 = vsel %vm827, %v920, %v924
      %v927 = vshrl.u32 %v816, 16
      %v929 = vrot.slane %v927, 4
      %v930 = vshll.u32 %v816, 16
      %v932 = vrot.slane %v930, 5
      %v933 = vor.u32 %v929, %v932
      %v934 = vrot.slane %v933, 4
      %v936 = vshll.u32 %v824, 16
      %v938 = vrot.slane %v936, 5
      %v939 = vsel %vm827, %v934, %v938
      %v940 = vld [vmem:[#allocation2] sm:$0xe]
      %v941 = vld [vmem:[#allocation2 + $0x8] sm:$0xe]
      %v942 = vld [vmem:[#allocation2 + $0x10] sm:$0xe]
      %v943 = vld [vmem:[#allocation2 + $0x18] sm:$0xe]
      %v944 = vld [vmem:[#allocation2 + $0x20] sm:$0xe]
      %v945 = vld [vmem:[#allocation2 + $0x28] sm:$0xe]
      %v946 = vld [vmem:[#allocation2 + $0x30] sm:$0xe]
      %v947 = vld [vmem:[#allocation2 + $0x38] sm:$0xe]
      %vm964 = vcmask 1042432
      %vm965 = vcmask 1046532
      %vm966 = vmor %vm964, %vm965
      %v967 = vrot.slane %v940, 5
      %v968 = vrot.slane %v967, 4
      %v969 = vrot.slane %v817, 5
      %v970 = vsel %vm966, %v968, %v969
      %v971 = vrot.slane %v941, 5
      %v972 = vrot.slane %v971, 4
      %v973 = vrot.slane %v818, 5
      %v974 = vsel %vm966, %v972, %v973
      %v975 = vrot.slane %v942, 5
      %v976 = vrot.slane %v975, 4
      %v977 = vrot.slane %v819, 5
      %v978 = vsel %vm966, %v976, %v977
      %v979 = vrot.slane %v943, 5
      %v980 = vrot.slane %v979, 4
      %v981 = vrot.slane %v820, 5
      %v982 = vsel %vm966, %v980, %v981
      %v983 = vrot.slane %v944, 5
      %v984 = vrot.slane %v983, 4
      %v985 = vrot.slane %v821, 5
      %v986 = vsel %vm966, %v984, %v985
      %v987 = vrot.slane %v945, 5
      %v988 = vrot.slane %v987, 4
      %v989 = vrot.slane %v822, 5
      %v990 = vsel %vm966, %v988, %v989
      %v991 = vrot.slane %v946, 5
      %v992 = vrot.slane %v991, 4
      %v993 = vrot.slane %v823, 5
      %v994 = vsel %vm966, %v992, %v993
      %v995 = vrot.slane %v947, 5
      %v996 = vrot.slane %v995, 4
      %v997 = vrot.slane %v824, 5
      %v998 = vsel %vm966, %v996, %v997
      %s999 = scalar_lea.vmem [#allocation2], 8
      %v1000 = vld [vmem:[%s999] sm:$0xf]
      %v1001 = vld [vmem:[%s999 + $0x8] sm:$0xf]
      %v1002 = vld [vmem:[%s999 + $0x10] sm:$0xf]
      %v1003 = vld [vmem:[%s999 + $0x18] sm:$0xf]
      %v1004 = vld [vmem:[%s999 + $0x20] sm:$0xf]
      %v1005 = vld [vmem:[%s999 + $0x28] sm:$0xf]
      %v1006 = vld [vmem:[%s999 + $0x30] sm:$0xf]
      %v1007 = vld [vmem:[%s999 + $0x38] sm:$0xf]
      %v1008 = vld [vmem:[%s999 + $0x4] sm:$0x1]
      %v1009 = vld [vmem:[%s999 + $0xc] sm:$0x1]
      %v1010 = vld [vmem:[%s999 + $0x14] sm:$0x1]
      %v1011 = vld [vmem:[%s999 + $0x1c] sm:$0x1]
      %v1012 = vld [vmem:[%s999 + $0x24] sm:$0x1]
      %v1013 = vld [vmem:[%s999 + $0x2c] sm:$0x1]
      %v1014 = vld [vmem:[%s999 + $0x34] sm:$0x1]
      %v1015 = vld [vmem:[%s999 + $0x3c] sm:$0x1]
      %v1017 = vshrl.u32 %v1000, 16
      %v1019 = vrot.slane %v1017, 4
      %v1020 = vshll.u32 %v1000, 16
      %v1022 = vrot.slane %v1020, 5
      %v1023 = vor.u32 %v1019, %v1022
      %v1024 = vrot.slane %v1023, 4
      %v1026 = vshll.u32 %v1008, 16
      %v1028 = vrot.slane %v1026, 5
      %v1029 = vsel %vm827, %v1024, %v1028
      %v1031 = vshrl.u32 %v1001, 16
      %v1033 = vrot.slane %v1031, 4
      %v1034 = vshll.u32 %v1001, 16
      %v1036 = vrot.slane %v1034, 5
      %v1037 = vor.u32 %v1033, %v1036
      %v1038 = vrot.slane %v1037, 4
      %v1040 = vshll.u32 %v1009, 16
      %v1042 = vrot.slane %v1040, 5
      %v1043 = vsel %vm827, %v1038, %v1042
      %v1045 = vshrl.u32 %v1002, 16
      %v1047 = vrot.slane %v1045, 4
      %v1048 = vshll.u32 %v1002, 16
      %v1050 = vrot.slane %v1048, 5
      %v1051 = vor.u32 %v1047, %v1050
      %v1052 = vrot.slane %v1051, 4
      %v1054 = vshll.u32 %v1010, 16
      %v1056 = vrot.slane %v1054, 5
      %v1057 = vsel %vm827, %v1052, %v1056
      %v1059 = vshrl.u32 %v1003, 16
      %v1061 = vrot.slane %v1059, 4
      %v1062 = vshll.u32 %v1003, 16
      %v1064 = vrot.slane %v1062, 5
      %v1065 = vor.u32 %v1061, %v1064
      %v1066 = vrot.slane %v1065, 4
      %v1068 = vshll.u32 %v1011, 16
      %v1070 = vrot.slane %v1068, 5
      %v1071 = vsel %vm827, %v1066, %v1070
      %v1073 = vshrl.u32 %v1004, 16
      %v1075 = vrot.slane %v1073, 4
      %v1076 = vshll.u32 %v1004, 16
      %v1078 = vrot.slane %v1076, 5
      %v1079 = vor.u32 %v1075, %v1078
      %v1080 = vrot.slane %v1079, 4
      %v1082 = vshll.u32 %v1012, 16
      %v1084 = vrot.slane %v1082, 5
      %v1085 = vsel %vm827, %v1080, %v1084
      %v1087 = vshrl.u32 %v1005, 16
      %v1089 = vrot.slane %v1087, 4
      %v1090 = vshll.u32 %v1005, 16
      %v1092 = vrot.slane %v1090, 5
      %v1093 = vor.u32 %v1089, %v1092
      %v1094 = vrot.slane %v1093, 4
      %v1096 = vshll.u32 %v1013, 16
      %v1098 = vrot.slane %v1096, 5
      %v1099 = vsel %vm827, %v1094, %v1098
      %v1101 = vshrl.u32 %v1006, 16
      %v1103 = vrot.slane %v1101, 4
      %v1104 = vshll.u32 %v1006, 16
      %v1106 = vrot.slane %v1104, 5
      %v1107 = vor.u32 %v1103, %v1106
      %v1108 = vrot.slane %v1107, 4
      %v1110 = vshll.u32 %v1014, 16
      %v1112 = vrot.slane %v1110, 5
      %v1113 = vsel %vm827, %v1108, %v1112
      %v1115 = vshrl.u32 %v1007, 16
      %v1117 = vrot.slane %v1115, 4
      %v1118 = vshll.u32 %v1007, 16
      %v1120 = vrot.slane %v1118, 5
      %v1121 = vor.u32 %v1117, %v1120
      %v1122 = vrot.slane %v1121, 4
      %v1124 = vshll.u32 %v1015, 16
      %v1126 = vrot.slane %v1124, 5
      %v1127 = vsel %vm827, %v1122, %v1126
      %v1128 = vld [vmem:[%s999] sm:$0xe]
      %v1129 = vld [vmem:[%s999 + $0x8] sm:$0xe]
      %v1130 = vld [vmem:[%s999 + $0x10] sm:$0xe]
      %v1131 = vld [vmem:[%s999 + $0x18] sm:$0xe]
      %v1132 = vld [vmem:[%s999 + $0x20] sm:$0xe]
      %v1133 = vld [vmem:[%s999 + $0x28] sm:$0xe]
      %v1134 = vld [vmem:[%s999 + $0x30] sm:$0xe]
      %v1135 = vld [vmem:[%s999 + $0x38] sm:$0xe]
      %v1152 = vrot.slane %v1128, 5
      %v1153 = vrot.slane %v1152, 4
      %v1154 = vrot.slane %v1008, 5
      %v1155 = vsel %vm966, %v1153, %v1154
      %v1156 = vrot.slane %v1129, 5
      %v1157 = vrot.slane %v1156, 4
      %v1158 = vrot.slane %v1009, 5
      %v1159 = vsel %vm966, %v1157, %v1158
      %v1160 = vrot.slane %v1130, 5
      %v1161 = vrot.slane %v1160, 4
      %v1162 = vrot.slane %v1010, 5
      %v1163 = vsel %vm966, %v1161, %v1162
      %v1164 = vrot.slane %v1131, 5
      %v1165 = vrot.slane %v1164, 4
      %v1166 = vrot.slane %v1011, 5
      %v1167 = vsel %vm966, %v1165, %v1166
      %v1168 = vrot.slane %v1132, 5
      %v1169 = vrot.slane %v1168, 4
      %v1170 = vrot.slane %v1012, 5
      %v1171 = vsel %vm966, %v1169, %v1170
      %v1172 = vrot.slane %v1133, 5
      %v1173 = vrot.slane %v1172, 4
      %v1174 = vrot.slane %v1013, 5
      %v1175 = vsel %vm966, %v1173, %v1174
      %v1176 = vrot.slane %v1134, 5
      %v1177 = vrot.slane %v1176, 4
      %v1178 = vrot.slane %v1014, 5
      %v1179 = vsel %vm966, %v1177, %v1178
      %v1180 = vrot.slane %v1135, 5
      %v1181 = vrot.slane %v1180, 4
      %v1182 = vrot.slane %v1015, 5
      %v1183 = vsel %vm966, %v1181, %v1182
      %s1184 = scalar_lea.vmem [#allocation2], 16
      %v1185 = vld [vmem:[%s1184] sm:$0xf]
      %v1186 = vld [vmem:[%s1184 + $0x8] sm:$0xf]
      %v1187 = vld [vmem:[%s1184 + $0x10] sm:$0xf]
      %v1188 = vld [vmem:[%s1184 + $0x18] sm:$0xf]
      %v1189 = vld [vmem:[%s1184 + $0x20] sm:$0xf]
      %v1190 = vld [vmem:[%s1184 + $0x28] sm:$0xf]
      %v1191 = vld [vmem:[%s1184 + $0x30] sm:$0xf]
      %v1192 = vld [vmem:[%s1184 + $0x38] sm:$0xf]
      %v1193 = vld [vmem:[%s1184 + $0x4] sm:$0x1]
      %v1194 = vld [vmem:[%s1184 + $0xc] sm:$0x1]
      %v1195 = vld [vmem:[%s1184 + $0x14] sm:$0x1]
      %v1196 = vld [vmem:[%s1184 + $0x1c] sm:$0x1]
      %v1197 = vld [vmem:[%s1184 + $0x24] sm:$0x1]
      %v1198 = vld [vmem:[%s1184 + $0x2c] sm:$0x1]
      %v1199 = vld [vmem:[%s1184 + $0x34] sm:$0x1]
      %v1200 = vld [vmem:[%s1184 + $0x3c] sm:$0x1]
      %v1202 = vshrl.u32 %v1185, 16
      %v1204 = vrot.slane %v1202, 4
      %v1205 = vshll.u32 %v1185, 16
      %v1207 = vrot.slane %v1205, 5
      %v1208 = vor.u32 %v1204, %v1207
      %v1209 = vrot.slane %v1208, 4
      %v1211 = vshll.u32 %v1193, 16
      %v1213 = vrot.slane %v1211, 5
      %v1214 = vsel %vm827, %v1209, %v1213
      %v1216 = vshrl.u32 %v1186, 16
      %v1218 = vrot.slane %v1216, 4
      %v1219 = vshll.u32 %v1186, 16
      %v1221 = vrot.slane %v1219, 5
      %v1222 = vor.u32 %v1218, %v1221
      %v1223 = vrot.slane %v1222, 4
      %v1225 = vshll.u32 %v1194, 16
      %v1227 = vrot.slane %v1225, 5
      %v1228 = vsel %vm827, %v1223, %v1227
      %v1230 = vshrl.u32 %v1187, 16
      %v1232 = vrot.slane %v1230, 4
      %v1233 = vshll.u32 %v1187, 16
      %v1235 = vrot.slane %v1233, 5
      %v1236 = vor.u32 %v1232, %v1235
      %v1237 = vrot.slane %v1236, 4
      %v1239 = vshll.u32 %v1195, 16
      %v1241 = vrot.slane %v1239, 5
      %v1242 = vsel %vm827, %v1237, %v1241
      %v1244 = vshrl.u32 %v1188, 16
      %v1246 = vrot.slane %v1244, 4
      %v1247 = vshll.u32 %v1188, 16
      %v1249 = vrot.slane %v1247, 5
      %v1250 = vor.u32 %v1246, %v1249
      %v1251 = vrot.slane %v1250, 4
      %v1253 = vshll.u32 %v1196, 16
      %v1255 = vrot.slane %v1253, 5
      %v1256 = vsel %vm827, %v1251, %v1255
      %v1258 = vshrl.u32 %v1189, 16
      %v1260 = vrot.slane %v1258, 4
      %v1261 = vshll.u32 %v1189, 16
      %v1263 = vrot.slane %v1261, 5
      %v1264 = vor.u32 %v1260, %v1263
      %v1265 = vrot.slane %v1264, 4
      %v1267 = vshll.u32 %v1197, 16
      %v1269 = vrot.slane %v1267, 5
      %v1270 = vsel %vm827, %v1265, %v1269
      %v1272 = vshrl.u32 %v1190, 16
      %v1274 = vrot.slane %v1272, 4
      %v1275 = vshll.u32 %v1190, 16
      %v1277 = vrot.slane %v1275, 5
      %v1278 = vor.u32 %v1274, %v1277
      %v1279 = vrot.slane %v1278, 4
      %v1281 = vshll.u32 %v1198, 16
      %v1283 = vrot.slane %v1281, 5
      %v1284 = vsel %vm827, %v1279, %v1283
      %v1286 = vshrl.u32 %v1191, 16
      %v1288 = vrot.slane %v1286, 4
      %v1289 = vshll.u32 %v1191, 16
      %v1291 = vrot.slane %v1289, 5
      %v1292 = vor.u32 %v1288, %v1291
      %v1293 = vrot.slane %v1292, 4
      %v1295 = vshll.u32 %v1199, 16
      %v1297 = vrot.slane %v1295, 5
      %v1298 = vsel %vm827, %v1293, %v1297
      %v1300 = vshrl.u32 %v1192, 16
      %v1302 = vrot.slane %v1300, 4
      %v1303 = vshll.u32 %v1192, 16
      %v1305 = vrot.slane %v1303, 5
      %v1306 = vor.u32 %v1302, %v1305
      %v1307 = vrot.slane %v1306, 4
      %v1309 = vshll.u32 %v1200, 16
      %v1311 = vrot.slane %v1309, 5
      %v1312 = vsel %vm827, %v1307, %v1311
      %v1313 = vld [vmem:[%s1184] sm:$0xe]
      %v1314 = vld [vmem:[%s1184 + $0x8] sm:$0xe]
      %v1315 = vld [vmem:[%s1184 + $0x10] sm:$0xe]
      %v1316 = vld [vmem:[%s1184 + $0x18] sm:$0xe]
      %v1317 = vld [vmem:[%s1184 + $0x20] sm:$0xe]
      %v1318 = vld [vmem:[%s1184 + $0x28] sm:$0xe]
      %v1319 = vld [vmem:[%s1184 + $0x30] sm:$0xe]
      %v1320 = vld [vmem:[%s1184 + $0x38] sm:$0xe]
      %v1337 = vrot.slane %v1313, 5
      %v1338 = vrot.slane %v1337, 4
      %v1339 = vrot.slane %v1193, 5
      %v1340 = vsel %vm966, %v1338, %v1339
      %v1341 = vrot.slane %v1314, 5
      %v1342 = vrot.slane %v1341, 4
      %v1343 = vrot.slane %v1194, 5
      %v1344 = vsel %vm966, %v1342, %v1343
      %v1345 = vrot.slane %v1315, 5
      %v1346 = vrot.slane %v1345, 4
      %v1347 = vrot.slane %v1195, 5
      %v1348 = vsel %vm966, %v1346, %v1347
      %v1349 = vrot.slane %v1316, 5
      %v1350 = vrot.slane %v1349, 4
      %v1351 = vrot.slane %v1196, 5
      %v1352 = vsel %vm966, %v1350, %v1351
      %v1353 = vrot.slane %v1317, 5
      %v1354 = vrot.slane %v1353, 4
      %v1355 = vrot.slane %v1197, 5
      %v1356 = vsel %vm966, %v1354, %v1355
      %v1357 = vrot.slane %v1318, 5
      %v1358 = vrot.slane %v1357, 4
      %v1359 = vrot.slane %v1198, 5
      %v1360 = vsel %vm966, %v1358, %v1359
      %v1361 = vrot.slane %v1319, 5
      %v1362 = vrot.slane %v1361, 4
      %v1363 = vrot.slane %v1199, 5
      %v1364 = vsel %vm966, %v1362, %v1363
      %v1365 = vrot.slane %v1320, 5
      %v1366 = vrot.slane %v1365, 4
      %v1367 = vrot.slane %v1200, 5
      %v1368 = vsel %vm966, %v1366, %v1367
      %v1377 = vunpack.c.l.b16 %v809
      %v1378 = vunpack.c.l.b16 %v810
      %v1379 = vunpack.c.l.b16 %v811
      %v1380 = vunpack.c.l.b16 %v812
      %v1381 = vunpack.c.l.b16 %v813
      %v1382 = vunpack.c.l.b16 %v814
      %v1383 = vunpack.c.l.b16 %v815
      %v1384 = vunpack.c.l.b16 %v816
      %v1385 = vpack.c.b16 %v1378, %v1377
      %v1386 = vpack.c.b16 %v1380, %v1379
      %v1387 = vpack.c.b16 %v1382, %v1381
      %v1388 = vpack.c.b16 %v1384, %v1383
      %v1393 = vunpack.c.l.b16 %v841
      %v1394 = vunpack.c.l.b16 %v855
      %v1395 = vunpack.c.l.b16 %v869
      %v1396 = vunpack.c.l.b16 %v883
      %v1397 = vunpack.c.l.b16 %v897
      %v1398 = vunpack.c.l.b16 %v911
      %v1399 = vunpack.c.l.b16 %v925
      %v1400 = vunpack.c.l.b16 %v939
      %v1401 = vpack.c.b16 %v1394, %v1393
      %v1402 = vpack.c.b16 %v1396, %v1395
      %v1403 = vpack.c.b16 %v1398, %v1397
      %v1404 = vpack.c.b16 %v1400, %v1399
      %v1409 = vunpack.c.l.b16 %v970
      %v1410 = vunpack.c.l.b16 %v974
      %v1411 = vunpack.c.l.b16 %v978
      %v1412 = vunpack.c.l.b16 %v982
      %v1413 = vunpack.c.l.b16 %v986
      %v1414 = vunpack.c.l.b16 %v990
      %v1415 = vunpack.c.l.b16 %v994
      %v1416 = vunpack.c.l.b16 %v998
      %v1417 = vpack.c.b16 %v1410, %v1409
      %v1418 = vpack.c.b16 %v1412, %v1411
      %v1419 = vpack.c.b16 %v1414, %v1413
      %v1420 = vpack.c.b16 %v1416, %v1415
      %v1433 = vunpack.c.l.b16 %v1000
      %v1434 = vunpack.c.l.b16 %v1001
      %v1435 = vunpack.c.l.b16 %v1002
      %v1436 = vunpack.c.l.b16 %v1003
      %v1437 = vunpack.c.l.b16 %v1004
      %v1438 = vunpack.c.l.b16 %v1005
      %v1439 = vunpack.c.l.b16 %v1006
      %v1440 = vunpack.c.l.b16 %v1007
      %v1441 = vpack.c.b16 %v1434, %v1433
      %v1442 = vpack.c.b16 %v1436, %v1435
      %v1443 = vpack.c.b16 %v1438, %v1437
      %v1444 = vpack.c.b16 %v1440, %v1439
      %v1449 = vunpack.c.l.b16 %v1029
      %v1450 = vunpack.c.l.b16 %v1043
      %v1451 = vunpack.c.l.b16 %v1057
      %v1452 = vunpack.c.l.b16 %v1071
      %v1453 = vunpack.c.l.b16 %v1085
      %v1454 = vunpack.c.l.b16 %v1099
      %v1455 = vunpack.c.l.b16 %v1113
      %v1456 = vunpack.c.l.b16 %v1127
      %v1457 = vpack.c.b16 %v1450, %v1449
      %v1458 = vpack.c.b16 %v1452, %v1451
      %v1459 = vpack.c.b16 %v1454, %v1453
      %v1460 = vpack.c.b16 %v1456, %v1455
      %v1465 = vunpack.c.l.b16 %v1155
      %v1466 = vunpack.c.l.b16 %v1159
      %v1467 = vunpack.c.l.b16 %v1163
      %v1468 = vunpack.c.l.b16 %v1167
      %v1469 = vunpack.c.l.b16 %v1171
      %v1470 = vunpack.c.l.b16 %v1175
      %v1471 = vunpack.c.l.b16 %v1179
      %v1472 = vunpack.c.l.b16 %v1183
      %v1473 = vpack.c.b16 %v1466, %v1465
      %v1474 = vpack.c.b16 %v1468, %v1467
      %v1475 = vpack.c.b16 %v1470, %v1469
      %v1476 = vpack.c.b16 %v1472, %v1471
      %v1489 = vunpack.c.l.b16 %v1185
      %v1490 = vunpack.c.l.b16 %v1186
      %v1491 = vunpack.c.l.b16 %v1187
      %v1492 = vunpack.c.l.b16 %v1188
      %v1493 = vunpack.c.l.b16 %v1189
      %v1494 = vunpack.c.l.b16 %v1190
      %v1495 = vunpack.c.l.b16 %v1191
      %v1496 = vunpack.c.l.b16 %v1192
      %v1497 = vpack.c.b16 %v1490, %v1489
      %v1498 = vpack.c.b16 %v1492, %v1491
      %v1499 = vpack.c.b16 %v1494, %v1493
      %v1500 = vpack.c.b16 %v1496, %v1495
      %v1505 = vunpack.c.l.b16 %v1214
      %v1506 = vunpack.c.l.b16 %v1228
      %v1507 = vunpack.c.l.b16 %v1242
      %v1508 = vunpack.c.l.b16 %v1256
      %v1509 = vunpack.c.l.b16 %v1270
      %v1510 = vunpack.c.l.b16 %v1284
      %v1511 = vunpack.c.l.b16 %v1298
      %v1512 = vunpack.c.l.b16 %v1312
      %v1513 = vpack.c.b16 %v1506, %v1505
      %v1514 = vpack.c.b16 %v1508, %v1507
      %v1515 = vpack.c.b16 %v1510, %v1509
      %v1516 = vpack.c.b16 %v1512, %v1511
      %v1521 = vunpack.c.l.b16 %v1340
      %v1522 = vunpack.c.l.b16 %v1344
      %v1523 = vunpack.c.l.b16 %v1348
      %v1524 = vunpack.c.l.b16 %v1352
      %v1525 = vunpack.c.l.b16 %v1356
      %v1526 = vunpack.c.l.b16 %v1360
      %v1527 = vunpack.c.l.b16 %v1364
      %v1528 = vunpack.c.l.b16 %v1368
      %v1529 = vpack.c.b16 %v1522, %v1521
      %v1530 = vpack.c.b16 %v1524, %v1523
      %v1531 = vpack.c.b16 %v1526, %v1525
      %v1532 = vpack.c.b16 %v1528, %v1527
      %v1537 = vld [vmem:[%s5] sm:$0xf]
      %v1538 = vld [vmem:[%s5 + $0x4] sm:$0xf]
      %v1539 = vld [vmem:[%s5 + $0x8] sm:$0xf]
      %v1540 = vld [vmem:[%s5 + $0xc] sm:$0xf]
      %v1541 = vld [vmem:[%s5 + $0x10] sm:$0xf]
      %v1542 = vld [vmem:[%s5 + $0x14] sm:$0xf]
      %v1543 = vld [vmem:[%s5 + $0x18] sm:$0xf]
      %v1544 = vld [vmem:[%s5 + $0x1c] sm:$0xf]
      %v1545 = vld [vmem:[%s5 + $0x20] sm:$0xf]
      %v1546 = vld [vmem:[%s5 + $0x24] sm:$0xf]
      %v1547 = vld [vmem:[%s5 + $0x28] sm:$0xf]
      %v1548 = vld [vmem:[%s5 + $0x2c] sm:$0xf]
      %v1549 = vld [vmem:[%s5 + $0x30] sm:$0xf]
      %v1550 = vld [vmem:[%s5 + $0x34] sm:$0xf]
      %v1551 = vld [vmem:[%s5 + $0x38] sm:$0xf]
      %v1552 = vld [vmem:[%s5 + $0x3c] sm:$0xf]
      %v1553 = vld [vmem:[%s5 + $0x40] sm:$0xf]
      %v1554 = vld [vmem:[%s5 + $0x44] sm:$0xf]
      %v1555 = vld [vmem:[%s5 + $0x48] sm:$0xf]
      %v1556 = vld [vmem:[%s5 + $0x4c] sm:$0xf]
      %v1557 = vld [vmem:[%s5 + $0x50] sm:$0xf]
      %v1558 = vld [vmem:[%s5 + $0x54] sm:$0xf]
      %v1559 = vld [vmem:[%s5 + $0x58] sm:$0xf]
      %v1560 = vld [vmem:[%s5 + $0x5c] sm:$0xf]
      %v1561 = vld [vmem:[%s5 + $0x60] sm:$0xf]
      %v1562 = vld [vmem:[%s5 + $0x64] sm:$0xf]
      %v1563 = vld [vmem:[%s5 + $0x68] sm:$0xf]
      %v1564 = vld [vmem:[%s5 + $0x6c] sm:$0xf]
      %v1565 = vld [vmem:[%s5 + $0x70] sm:$0xf]
      %v1566 = vld [vmem:[%s5 + $0x74] sm:$0xf]
      %v1567 = vld [vmem:[%s5 + $0x78] sm:$0xf]
      %v1568 = vld [vmem:[%s5 + $0x7c] sm:$0xf]
      %v1569 = vld [vmem:[%s5 + $0x80] sm:$0xf]
      %v1570 = vld [vmem:[%s5 + $0x84] sm:$0xf]
      %v1571 = vld [vmem:[%s5 + $0x88] sm:$0xf]
      %v1572 = vld [vmem:[%s5 + $0x8c] sm:$0xf]
      %v1573 = vld [vmem:[%s5 + $0x90] sm:$0xf]
      %v1574 = vld [vmem:[%s5 + $0x94] sm:$0xf]
      %v1575 = vld [vmem:[%s5 + $0x98] sm:$0xf]
      %v1576 = vld [vmem:[%s5 + $0x9c] sm:$0xf]
      %v1577 = vld [vmem:[%s5 + $0xa0] sm:$0xf]
      %v1578 = vld [vmem:[%s5 + $0xa4] sm:$0xf]
      %v1579 = vld [vmem:[%s5 + $0xa8] sm:$0xf]
      %v1580 = vld [vmem:[%s5 + $0xac] sm:$0xf]
      %v1581 = vld [vmem:[%s5 + $0xb0] sm:$0xf]
      %v1582 = vld [vmem:[%s5 + $0xb4] sm:$0xf]
      %v1583 = vld [vmem:[%s5 + $0xb8] sm:$0xf]
      %v1584 = vld [vmem:[%s5 + $0xbc] sm:$0xf]
      %v1585 = vld [vmem:[%s5 + $0xc0] sm:$0xf]
      %v1586 = vld [vmem:[%s5 + $0xc4] sm:$0xf]
      %v1587 = vld [vmem:[%s5 + $0xc8] sm:$0xf]
      %v1588 = vld [vmem:[%s5 + $0xcc] sm:$0xf]
      %v1589 = vld [vmem:[%s5 + $0xd0] sm:$0xf]
      %v1590 = vld [vmem:[%s5 + $0xd4] sm:$0xf]
      %v1591 = vld [vmem:[%s5 + $0xd8] sm:$0xf]
      %v1592 = vld [vmem:[%s5 + $0xdc] sm:$0xf]
      %v1593 = vld [vmem:[%s5 + $0xe0] sm:$0xf]
      %v1594 = vld [vmem:[%s5 + $0xe4] sm:$0xf]
      %v1595 = vld [vmem:[%s5 + $0xe8] sm:$0xf]
      %v1596 = vld [vmem:[%s5 + $0xec] sm:$0xf]
      %v1597 = vld [vmem:[%s5 + $0xf0] sm:$0xf]
      %v1598 = vld [vmem:[%s5 + $0xf4] sm:$0xf]
      %v1599 = vld [vmem:[%s5 + $0xf8] sm:$0xf]
      %v1600 = vld [vmem:[%s5 + $0xfc] sm:$0xf]
      %v1601 = vld [vmem:[%s5 + $0x100] sm:$0xf]
      %v1602 = vld [vmem:[%s5 + $0x104] sm:$0xf]
      %v1603 = vld [vmem:[%s5 + $0x108] sm:$0xf]
      %v1604 = vld [vmem:[%s5 + $0x10c] sm:$0xf]
      %v1605 = vld [vmem:[%s5 + $0x110] sm:$0xf]
      %v1606 = vld [vmem:[%s5 + $0x114] sm:$0xf]
      %v1607 = vld [vmem:[%s5 + $0x118] sm:$0xf]
      %v1608 = vld [vmem:[%s5 + $0x11c] sm:$0xf]
      %v1609 = vld [vmem:[%s5 + $0x120] sm:$0xf]
      %v1610 = vld [vmem:[%s5 + $0x124] sm:$0xf]
      %v1611 = vld [vmem:[%s5 + $0x128] sm:$0xf]
      %v1612 = vld [vmem:[%s5 + $0x12c] sm:$0xf]
      %v1613 = vld [vmem:[%s5 + $0x130] sm:$0xf]
      %v1614 = vld [vmem:[%s5 + $0x134] sm:$0xf]
      %v1615 = vld [vmem:[%s5 + $0x138] sm:$0xf]
      %v1616 = vld [vmem:[%s5 + $0x13c] sm:$0xf]
      %v1617 = vld [vmem:[%s5 + $0x140] sm:$0xf]
      %v1618 = vld [vmem:[%s5 + $0x144] sm:$0xf]
      %v1619 = vld [vmem:[%s5 + $0x148] sm:$0xf]
      %v1620 = vld [vmem:[%s5 + $0x14c] sm:$0xf]
      %v1621 = vld [vmem:[%s5 + $0x150] sm:$0xf]
      %v1622 = vld [vmem:[%s5 + $0x154] sm:$0xf]
      %v1623 = vld [vmem:[%s5 + $0x158] sm:$0xf]
      %v1624 = vld [vmem:[%s5 + $0x15c] sm:$0xf]
      %v1625 = vld [vmem:[%s5 + $0x160] sm:$0xf]
      %v1626 = vld [vmem:[%s5 + $0x164] sm:$0xf]
      %v1627 = vld [vmem:[%s5 + $0x168] sm:$0xf]
      %v1628 = vld [vmem:[%s5 + $0x16c] sm:$0xf]
      %v1629 = vld [vmem:[%s5 + $0x170] sm:$0xf]
      %v1630 = vld [vmem:[%s5 + $0x174] sm:$0xf]
      %v1631 = vld [vmem:[%s5 + $0x178] sm:$0xf]
      %v1632 = vld [vmem:[%s5 + $0x17c] sm:$0xf]
      %v1633 = vld [vmem:[%s5 + $0x180] sm:$0xf]
      %v1634 = vld [vmem:[%s5 + $0x184] sm:$0xf]
      %v1635 = vld [vmem:[%s5 + $0x188] sm:$0xf]
      %v1636 = vld [vmem:[%s5 + $0x18c] sm:$0xf]
      %v1637 = vld [vmem:[%s5 + $0x190] sm:$0xf]
      %v1638 = vld [vmem:[%s5 + $0x194] sm:$0xf]
      %v1639 = vld [vmem:[%s5 + $0x198] sm:$0xf]
      %v1640 = vld [vmem:[%s5 + $0x19c] sm:$0xf]
      %v1641 = vld [vmem:[%s5 + $0x1a0] sm:$0xf]
      %v1642 = vld [vmem:[%s5 + $0x1a4] sm:$0xf]
      %v1643 = vld [vmem:[%s5 + $0x1a8] sm:$0xf]
      %v1644 = vld [vmem:[%s5 + $0x1ac] sm:$0xf]
      %v1645 = vld [vmem:[%s5 + $0x1b0] sm:$0xf]
      %v1646 = vld [vmem:[%s5 + $0x1b4] sm:$0xf]
      %v1647 = vld [vmem:[%s5 + $0x1b8] sm:$0xf]
      %v1648 = vld [vmem:[%s5 + $0x1bc] sm:$0xf]
      %v1649 = vld [vmem:[%s5 + $0x1c0] sm:$0xf]
      %v1650 = vld [vmem:[%s5 + $0x1c4] sm:$0xf]
      %v1651 = vld [vmem:[%s5 + $0x1c8] sm:$0xf]
      %v1652 = vld [vmem:[%s5 + $0x1cc] sm:$0xf]
      %v1653 = vld [vmem:[%s5 + $0x1d0] sm:$0xf]
      %v1654 = vld [vmem:[%s5 + $0x1d4] sm:$0xf]
      %v1655 = vld [vmem:[%s5 + $0x1d8] sm:$0xf]
      %v1656 = vld [vmem:[%s5 + $0x1dc] sm:$0xf]
      %v1657 = vld [vmem:[%s5 + $0x1e0] sm:$0xf]
      %v1658 = vld [vmem:[%s5 + $0x1e4] sm:$0xf]
      %v1659 = vld [vmem:[%s5 + $0x1e8] sm:$0xf]
      %v1660 = vld [vmem:[%s5 + $0x1ec] sm:$0xf]
      %v1661 = vld [vmem:[%s5 + $0x1f0] sm:$0xf]
      %v1662 = vld [vmem:[%s5 + $0x1f4] sm:$0xf]
      %v1663 = vld [vmem:[%s5 + $0x1f8] sm:$0xf]
      %v1664 = vld [vmem:[%s5 + $0x1fc] sm:$0xf]
      %v1665 = vld [vmem:[%s5 + $0x200] sm:$0xf]
      %v1666 = vld [vmem:[%s5 + $0x204] sm:$0xf]
      %v1667 = vld [vmem:[%s5 + $0x208] sm:$0xf]
      %v1668 = vld [vmem:[%s5 + $0x20c] sm:$0xf]
      %v1669 = vld [vmem:[%s5 + $0x210] sm:$0xf]
      %v1670 = vld [vmem:[%s5 + $0x214] sm:$0xf]
      %v1671 = vld [vmem:[%s5 + $0x218] sm:$0xf]
      %v1672 = vld [vmem:[%s5 + $0x21c] sm:$0xf]
      %v1673 = vld [vmem:[%s5 + $0x220] sm:$0xf]
      %v1674 = vld [vmem:[%s5 + $0x224] sm:$0xf]
      %v1675 = vld [vmem:[%s5 + $0x228] sm:$0xf]
      %v1676 = vld [vmem:[%s5 + $0x22c] sm:$0xf]
      %v1677 = vld [vmem:[%s5 + $0x230] sm:$0xf]
      %v1678 = vld [vmem:[%s5 + $0x234] sm:$0xf]
      %v1679 = vld [vmem:[%s5 + $0x238] sm:$0xf]
      %v1680 = vld [vmem:[%s5 + $0x23c] sm:$0xf]
      %v1825 = vunpack.c.l.b16 %v1537
      %v1826 = vunpack.c.l.b16 %v1538
      %v1827 = vunpack.c.l.b16 %v1539
      %v1828 = vunpack.c.l.b16 %v1540
      %v1829 = vunpack.c.l.b16 %v1541
      %v1830 = vunpack.c.l.b16 %v1542
      %v1831 = vunpack.c.l.b16 %v1543
      %v1832 = vunpack.c.l.b16 %v1544
      %v1833 = vunpack.c.l.b16 %v1545
      %v1834 = vunpack.c.l.b16 %v1546
      %v1835 = vunpack.c.l.b16 %v1547
      %v1836 = vunpack.c.l.b16 %v1548
      %v1837 = vunpack.c.l.b16 %v1549
      %v1838 = vunpack.c.l.b16 %v1550
      %v1839 = vunpack.c.l.b16 %v1551
      %v1840 = vunpack.c.l.b16 %v1552
      %v1841 = vunpack.c.l.b16 %v1553
      %v1842 = vunpack.c.l.b16 %v1554
      %v1843 = vunpack.c.l.b16 %v1555
      %v1844 = vunpack.c.l.b16 %v1556
      %v1845 = vunpack.c.l.b16 %v1557
      %v1846 = vunpack.c.l.b16 %v1558
      %v1847 = vunpack.c.l.b16 %v1559
      %v1848 = vunpack.c.l.b16 %v1560
      %v1849 = vunpack.c.l.b16 %v1561
      %v1850 = vunpack.c.l.b16 %v1562
      %v1851 = vunpack.c.l.b16 %v1563
      %v1852 = vunpack.c.l.b16 %v1564
      %v1853 = vunpack.c.l.b16 %v1565
      %v1854 = vunpack.c.l.b16 %v1566
      %v1855 = vunpack.c.l.b16 %v1567
      %v1856 = vunpack.c.l.b16 %v1568
      %v1857 = vunpack.c.l.b16 %v1569
      %v1858 = vunpack.c.l.b16 %v1570
      %v1859 = vunpack.c.l.b16 %v1571
      %v1860 = vunpack.c.l.b16 %v1572
      %v1861 = vunpack.c.l.b16 %v1573
      %v1862 = vunpack.c.l.b16 %v1574
      %v1863 = vunpack.c.l.b16 %v1575
      %v1864 = vunpack.c.l.b16 %v1576
      %v1865 = vunpack.c.l.b16 %v1577
      %v1866 = vunpack.c.l.b16 %v1578
      %v1867 = vunpack.c.l.b16 %v1579
      %v1868 = vunpack.c.l.b16 %v1580
      %v1869 = vunpack.c.l.b16 %v1581
      %v1870 = vunpack.c.l.b16 %v1582
      %v1871 = vunpack.c.l.b16 %v1583
      %v1872 = vunpack.c.l.b16 %v1584
      %v1873 = vunpack.c.l.b16 %v1585
      %v1874 = vunpack.c.l.b16 %v1586
      %v1875 = vunpack.c.l.b16 %v1587
      %v1876 = vunpack.c.l.b16 %v1588
      %v1877 = vunpack.c.l.b16 %v1589
      %v1878 = vunpack.c.l.b16 %v1590
      %v1879 = vunpack.c.l.b16 %v1591
      %v1880 = vunpack.c.l.b16 %v1592
      %v1881 = vunpack.c.l.b16 %v1593
      %v1882 = vunpack.c.l.b16 %v1594
      %v1883 = vunpack.c.l.b16 %v1595
      %v1884 = vunpack.c.l.b16 %v1596
      %v1885 = vunpack.c.l.b16 %v1597
      %v1886 = vunpack.c.l.b16 %v1598
      %v1887 = vunpack.c.l.b16 %v1599
      %v1888 = vunpack.c.l.b16 %v1600
      %v1889 = vunpack.c.l.b16 %v1601
      %v1890 = vunpack.c.l.b16 %v1602
      %v1891 = vunpack.c.l.b16 %v1603
      %v1892 = vunpack.c.l.b16 %v1604
      %v1893 = vunpack.c.l.b16 %v1605
      %v1894 = vunpack.c.l.b16 %v1606
      %v1895 = vunpack.c.l.b16 %v1607
      %v1896 = vunpack.c.l.b16 %v1608
      %v1897 = vunpack.c.l.b16 %v1609
      %v1898 = vunpack.c.l.b16 %v1610
      %v1899 = vunpack.c.l.b16 %v1611
      %v1900 = vunpack.c.l.b16 %v1612
      %v1901 = vunpack.c.l.b16 %v1613
      %v1902 = vunpack.c.l.b16 %v1614
      %v1903 = vunpack.c.l.b16 %v1615
      %v1904 = vunpack.c.l.b16 %v1616
      %v1905 = vunpack.c.l.b16 %v1617
      %v1906 = vunpack.c.l.b16 %v1618
      %v1907 = vunpack.c.l.b16 %v1619
      %v1908 = vunpack.c.l.b16 %v1620
      %v1909 = vunpack.c.l.b16 %v1621
      %v1910 = vunpack.c.l.b16 %v1622
      %v1911 = vunpack.c.l.b16 %v1623
      %v1912 = vunpack.c.l.b16 %v1624
      %v1913 = vunpack.c.l.b16 %v1625
      %v1914 = vunpack.c.l.b16 %v1626
      %v1915 = vunpack.c.l.b16 %v1627
      %v1916 = vunpack.c.l.b16 %v1628
      %v1917 = vunpack.c.l.b16 %v1629
      %v1918 = vunpack.c.l.b16 %v1630
      %v1919 = vunpack.c.l.b16 %v1631
      %v1920 = vunpack.c.l.b16 %v1632
      %v1921 = vunpack.c.l.b16 %v1633
      %v1922 = vunpack.c.l.b16 %v1634
      %v1923 = vunpack.c.l.b16 %v1635
      %v1924 = vunpack.c.l.b16 %v1636
      %v1925 = vunpack.c.l.b16 %v1637
      %v1926 = vunpack.c.l.b16 %v1638
      %v1927 = vunpack.c.l.b16 %v1639
      %v1928 = vunpack.c.l.b16 %v1640
      %v1929 = vunpack.c.l.b16 %v1641
      %v1930 = vunpack.c.l.b16 %v1642
      %v1931 = vunpack.c.l.b16 %v1643
      %v1932 = vunpack.c.l.b16 %v1644
      %v1933 = vunpack.c.l.b16 %v1645
      %v1934 = vunpack.c.l.b16 %v1646
      %v1935 = vunpack.c.l.b16 %v1647
      %v1936 = vunpack.c.l.b16 %v1648
      %v1937 = vunpack.c.l.b16 %v1649
      %v1938 = vunpack.c.l.b16 %v1650
      %v1939 = vunpack.c.l.b16 %v1651
      %v1940 = vunpack.c.l.b16 %v1652
      %v1941 = vunpack.c.l.b16 %v1653
      %v1942 = vunpack.c.l.b16 %v1654
      %v1943 = vunpack.c.l.b16 %v1655
      %v1944 = vunpack.c.l.b16 %v1656
      %v1945 = vunpack.c.l.b16 %v1657
      %v1946 = vunpack.c.l.b16 %v1658
      %v1947 = vunpack.c.l.b16 %v1659
      %v1948 = vunpack.c.l.b16 %v1660
      %v1949 = vunpack.c.l.b16 %v1661
      %v1950 = vunpack.c.l.b16 %v1662
      %v1951 = vunpack.c.l.b16 %v1663
      %v1952 = vunpack.c.l.b16 %v1664
      %v1953 = vunpack.c.l.b16 %v1665
      %v1954 = vunpack.c.l.b16 %v1666
      %v1955 = vunpack.c.l.b16 %v1667
      %v1956 = vunpack.c.l.b16 %v1668
      %v1957 = vunpack.c.l.b16 %v1669
      %v1958 = vunpack.c.l.b16 %v1670
      %v1959 = vunpack.c.l.b16 %v1671
      %v1960 = vunpack.c.l.b16 %v1672
      %v1961 = vunpack.c.l.b16 %v1673
      %v1962 = vunpack.c.l.b16 %v1674
      %v1963 = vunpack.c.l.b16 %v1675
      %v1964 = vunpack.c.l.b16 %v1676
      %v1965 = vunpack.c.l.b16 %v1677
      %v1966 = vunpack.c.l.b16 %v1678
      %v1967 = vunpack.c.l.b16 %v1679
      %v1968 = vunpack.c.l.b16 %v1680
      %v1969 = vpack.c.b16 %v1826, %v1825
      %v1970 = vpack.c.b16 %v1828, %v1827
      %v1971 = vpack.c.b16 %v1830, %v1829
      %v1972 = vpack.c.b16 %v1832, %v1831
      %v1973 = vpack.c.b16 %v1834, %v1833
      %v1974 = vpack.c.b16 %v1836, %v1835
      %v1975 = vpack.c.b16 %v1838, %v1837
      %v1976 = vpack.c.b16 %v1840, %v1839
      %v1977 = vpack.c.b16 %v1842, %v1841
      %v1978 = vpack.c.b16 %v1844, %v1843
      %v1979 = vpack.c.b16 %v1846, %v1845
      %v1980 = vpack.c.b16 %v1848, %v1847
      %v1981 = vpack.c.b16 %v1850, %v1849
      %v1982 = vpack.c.b16 %v1852, %v1851
      %v1983 = vpack.c.b16 %v1854, %v1853
      %v1984 = vpack.c.b16 %v1856, %v1855
      %v1985 = vpack.c.b16 %v1858, %v1857
      %v1986 = vpack.c.b16 %v1860, %v1859
      %v1987 = vpack.c.b16 %v1862, %v1861
      %v1988 = vpack.c.b16 %v1864, %v1863
      %v1989 = vpack.c.b16 %v1866, %v1865
      %v1990 = vpack.c.b16 %v1868, %v1867
      %v1991 = vpack.c.b16 %v1870, %v1869
      %v1992 = vpack.c.b16 %v1872, %v1871
      %v1993 = vpack.c.b16 %v1874, %v1873
      %v1994 = vpack.c.b16 %v1876, %v1875
      %v1995 = vpack.c.b16 %v1878, %v1877
      %v1996 = vpack.c.b16 %v1880, %v1879
      %v1997 = vpack.c.b16 %v1882, %v1881
      %v1998 = vpack.c.b16 %v1884, %v1883
      %v1999 = vpack.c.b16 %v1886, %v1885
      %v2000 = vpack.c.b16 %v1888, %v1887
      %v2001 = vpack.c.b16 %v1890, %v1889
      %v2002 = vpack.c.b16 %v1892, %v1891
      %v2003 = vpack.c.b16 %v1894, %v1893
      %v2004 = vpack.c.b16 %v1896, %v1895
      %v2005 = vpack.c.b16 %v1898, %v1897
      %v2006 = vpack.c.b16 %v1900, %v1899
      %v2007 = vpack.c.b16 %v1902, %v1901
      %v2008 = vpack.c.b16 %v1904, %v1903
      %v2009 = vpack.c.b16 %v1906, %v1905
      %v2010 = vpack.c.b16 %v1908, %v1907
      %v2011 = vpack.c.b16 %v1910, %v1909
      %v2012 = vpack.c.b16 %v1912, %v1911
      %v2013 = vpack.c.b16 %v1914, %v1913
      %v2014 = vpack.c.b16 %v1916, %v1915
      %v2015 = vpack.c.b16 %v1918, %v1917
      %v2016 = vpack.c.b16 %v1920, %v1919
      %v2017 = vpack.c.b16 %v1922, %v1921
      %v2018 = vpack.c.b16 %v1924, %v1923
      %v2019 = vpack.c.b16 %v1926, %v1925
      %v2020 = vpack.c.b16 %v1928, %v1927
      %v2021 = vpack.c.b16 %v1930, %v1929
      %v2022 = vpack.c.b16 %v1932, %v1931
      %v2023 = vpack.c.b16 %v1934, %v1933
      %v2024 = vpack.c.b16 %v1936, %v1935
      %v2025 = vpack.c.b16 %v1938, %v1937
      %v2026 = vpack.c.b16 %v1940, %v1939
      %v2027 = vpack.c.b16 %v1942, %v1941
      %v2028 = vpack.c.b16 %v1944, %v1943
      %v2029 = vpack.c.b16 %v1946, %v1945
      %v2030 = vpack.c.b16 %v1948, %v1947
      %v2031 = vpack.c.b16 %v1950, %v1949
      %v2032 = vpack.c.b16 %v1952, %v1951
      %v2033 = vpack.c.b16 %v1954, %v1953
      %v2034 = vpack.c.b16 %v1956, %v1955
      %v2035 = vpack.c.b16 %v1958, %v1957
      %v2036 = vpack.c.b16 %v1960, %v1959
      %v2037 = vpack.c.b16 %v1962, %v1961
      %v2038 = vpack.c.b16 %v1964, %v1963
      %v2039 = vpack.c.b16 %v1966, %v1965
      %v2040 = vpack.c.b16 %v1968, %v1967
      %2113 = vmatprep.subr.bf16.mxu0 0
      %2114 = vmatpush1.bf16.msra.mxu0 %v1976
      %2115 = vmatprep.subr.bf16.mxu0 0
      %2116 = vmatpush1.bf16.msra.mxu0 %v1975
      %2117 = vmatprep.subr.bf16.mxu0 0
      %2118 = vmatpush1.bf16.msra.mxu0 %v1974
      %2119 = vmatprep.subr.bf16.mxu0 0
      %2120 = vmatpush1.bf16.msra.mxu0 %v1973
      %2121 = vmatprep.subr.bf16.mxu0 0
      %2122 = vmatpush1.bf16.msra.mxu0 %v1972
      %2123 = vmatprep.subr.bf16.mxu0 0
      %2124 = vmatpush1.bf16.msra.mxu0 %v1971
      %2125 = vmatprep.subr.bf16.mxu0 0
      %2126 = vmatpush1.bf16.msra.mxu0 %v1970
      %2127 = vmatprep.subr.bf16.mxu0 0
      %2128 = vmatpush1.bf16.msra.mxu0 %v1969
      %2129 = vmatprep.subr.bf16.mxu0 0
      %2130 = vmatpush2.bf16.msra.mxu0 %v1984
      %2131 = vmatprep.subr.bf16.mxu0 0
      %2132 = vmatpush2.bf16.msra.mxu0 %v1983
      %2133 = vmatprep.subr.bf16.mxu0 0
      %2134 = vmatpush2.bf16.msra.mxu0 %v1982
      %2135 = vmatprep.subr.bf16.mxu0 0
      %2136 = vmatpush2.bf16.msra.mxu0 %v1981
      %2137 = vmatprep.subr.bf16.mxu0 0
      %2138 = vmatpush2.bf16.msra.mxu0 %v1980
      %2139 = vmatprep.subr.bf16.mxu0 0
      %2140 = vmatpush2.bf16.msra.mxu0 %v1979
      %2141 = vmatprep.subr.bf16.mxu0 0
      %2142 = vmatpush2.bf16.msra.mxu0 %v1978
      %2143 = vmatprep.subr.bf16.mxu0 0
      %2144 = vmatpush2.bf16.msra.mxu0 %v1977
      %2145 = vmatprep.mubr.bf16.mxu0 %v1401
      %2146 = vmatmul.mubr.bf16.gmra.mxu0 %v1385
      %v2147 = vpop.f32.mrf.mxu0
      %v2148 = vadd.f32 0.0, %v2147
      %v2149 = vpop.f32.mrf.mxu0
      %v2150 = vpop.f32.mrf.mxu0
      %v2151 = vadd.f32 0.0, %v2150
      %v2152 = vpop.f32.mrf.mxu0
      %2153 = vmatprep.mubr.bf16.mxu0 %v1402
      %2154 = vmatmul.mubr.bf16.gmra.mxu0 %v1386
      %v2155 = vpop.f32.mrf.mxu0
      %v2156 = vadd.f32 0.0, %v2155
      %v2157 = vpop.f32.mrf.mxu0
      %v2158 = vpop.f32.mrf.mxu0
      %v2159 = vadd.f32 0.0, %v2158
      %v2160 = vpop.f32.mrf.mxu0
      %2161 = vmatprep.mubr.bf16.mxu0 %v1403
      %2162 = vmatmul.mubr.bf16.gmra.mxu0 %v1387
      %v2163 = vpop.f32.mrf.mxu0
      %v2164 = vadd.f32 0.0, %v2163
      %v2165 = vpop.f32.mrf.mxu0
      %v2166 = vpop.f32.mrf.mxu0
      %v2167 = vadd.f32 0.0, %v2166
      %v2168 = vpop.f32.mrf.mxu0
      %2169 = vmatprep.mubr.bf16.mxu0 %v1404
      %2170 = vmatmul.mubr.bf16.gmra.mxu0 %v1388
      %v2171 = vpop.f32.mrf.mxu0
      %v2172 = vadd.f32 0.0, %v2171
      %v2173 = vpop.f32.mrf.mxu0
      %v2174 = vpop.f32.mrf.mxu0
      %v2175 = vadd.f32 0.0, %v2174
      %v2176 = vpop.f32.mrf.mxu0
      %2177 = vdwg.mxu0
      %2178 = vmatprep.subr.bf16.mxu0 0
      %2179 = vmatpush1.bf16.msra.mxu0 %v1992
      %2180 = vmatprep.subr.bf16.mxu0 0
      %2181 = vmatpush1.bf16.msra.mxu0 %v1991
      %2182 = vmatprep.subr.bf16.mxu0 0
      %2183 = vmatpush1.bf16.msra.mxu0 %v1990
      %2184 = vmatprep.subr.bf16.mxu0 0
      %2185 = vmatpush1.bf16.msra.mxu0 %v1989
      %2186 = vmatprep.subr.bf16.mxu0 0
      %2187 = vmatpush1.bf16.msra.mxu0 %v1988
      %2188 = vmatprep.subr.bf16.mxu0 0
      %2189 = vmatpush1.bf16.msra.mxu0 %v1987
      %2190 = vmatprep.subr.bf16.mxu0 0
      %2191 = vmatpush1.bf16.msra.mxu0 %v1986
      %2192 = vmatprep.subr.bf16.mxu0 0
      %2193 = vmatpush1.bf16.msra.mxu0 %v1985
      %2194 = vmatprep.subr.bf16.mxu0 0
      %2195 = vmatpush2.bf16.msra.mxu0 %v2000
      %2196 = vmatprep.subr.bf16.mxu0 0
      %2197 = vmatpush2.bf16.msra.mxu0 %v1999
      %2198 = vmatprep.subr.bf16.mxu0 0
      %2199 = vmatpush2.bf16.msra.mxu0 %v1998
      %2200 = vmatprep.subr.bf16.mxu0 0
      %2201 = vmatpush2.bf16.msra.mxu0 %v1997
      %2202 = vmatprep.subr.bf16.mxu0 0
      %2203 = vmatpush2.bf16.msra.mxu0 %v1996
      %2204 = vmatprep.subr.bf16.mxu0 0
      %2205 = vmatpush2.bf16.msra.mxu0 %v1995
      %2206 = vmatprep.subr.bf16.mxu0 0
      %2207 = vmatpush2.bf16.msra.mxu0 %v1994
      %2208 = vmatprep.subr.bf16.mxu0 0
      %2209 = vmatpush2.bf16.msra.mxu0 %v1993
      %2210 = vmatprep.mubr.bf16.mxu0 %v1441
      %2211 = vmatmul.mubr.bf16.gmra.mxu0 %v1417
      %v2212 = vpop.f32.mrf.mxu0
      %v2213 = vadd.f32 %v2148, %v2212
      %v2214 = vpop.f32.mrf.mxu0
      %v2215 = vpop.f32.mrf.mxu0
      %v2216 = vadd.f32 %v2151, %v2215
      %v2217 = vpop.f32.mrf.mxu0
      %2218 = vmatprep.mubr.bf16.mxu0 %v1442
      %2219 = vmatmul.mubr.bf16.gmra.mxu0 %v1418
      %v2220 = vpop.f32.mrf.mxu0
      %v2221 = vadd.f32 %v2156, %v2220
      %v2222 = vpop.f32.mrf.mxu0
      %v2223 = vpop.f32.mrf.mxu0
      %v2224 = vadd.f32 %v2159, %v2223
      %v2225 = vpop.f32.mrf.mxu0
      %2226 = vmatprep.mubr.bf16.mxu0 %v1443
      %2227 = vmatmul.mubr.bf16.gmra.mxu0 %v1419
      %v2228 = vpop.f32.mrf.mxu0
      %v2229 = vadd.f32 %v2164, %v2228
      %v2230 = vpop.f32.mrf.mxu0
      %v2231 = vpop.f32.mrf.mxu0
      %v2232 = vadd.f32 %v2167, %v2231
      %v2233 = vpop.f32.mrf.mxu0
      %2234 = vmatprep.mubr.bf16.mxu0 %v1444
      %2235 = vmatmul.mubr.bf16.gmra.mxu0 %v1420
      %v2236 = vpop.f32.mrf.mxu0
      %v2237 = vadd.f32 %v2172, %v2236
      %v2238 = vpop.f32.mrf.mxu0
      %v2239 = vpop.f32.mrf.mxu0
      %v2240 = vadd.f32 %v2175, %v2239
      %v2241 = vpop.f32.mrf.mxu0
      %2242 = vdwg.mxu0
      %2243 = vmatprep.subr.bf16.mxu0 0
      %2244 = vmatpush1.bf16.msra.mxu0 %v2008
      %2245 = vmatprep.subr.bf16.mxu0 0
      %2246 = vmatpush1.bf16.msra.mxu0 %v2007
      %2247 = vmatprep.subr.bf16.mxu0 0
      %2248 = vmatpush1.bf16.msra.mxu0 %v2006
      %2249 = vmatprep.subr.bf16.mxu0 0
      %2250 = vmatpush1.bf16.msra.mxu0 %v2005
      %2251 = vmatprep.subr.bf16.mxu0 0
      %2252 = vmatpush1.bf16.msra.mxu0 %v2004
      %2253 = vmatprep.subr.bf16.mxu0 0
      %2254 = vmatpush1.bf16.msra.mxu0 %v2003
      %2255 = vmatprep.subr.bf16.mxu0 0
      %2256 = vmatpush1.bf16.msra.mxu0 %v2002
      %2257 = vmatprep.subr.bf16.mxu0 0
      %2258 = vmatpush1.bf16.msra.mxu0 %v2001
      %2259 = vmatprep.subr.bf16.mxu0 0
      %2260 = vmatpush2.bf16.msra.mxu0 %v2016
      %2261 = vmatprep.subr.bf16.mxu0 0
      %2262 = vmatpush2.bf16.msra.mxu0 %v2015
      %2263 = vmatprep.subr.bf16.mxu0 0
      %2264 = vmatpush2.bf16.msra.mxu0 %v2014
      %2265 = vmatprep.subr.bf16.mxu0 0
      %2266 = vmatpush2.bf16.msra.mxu0 %v2013
      %2267 = vmatprep.subr.bf16.mxu0 0
      %2268 = vmatpush2.bf16.msra.mxu0 %v2012
      %2269 = vmatprep.subr.bf16.mxu0 0
      %2270 = vmatpush2.bf16.msra.mxu0 %v2011
      %2271 = vmatprep.subr.bf16.mxu0 0
      %2272 = vmatpush2.bf16.msra.mxu0 %v2010
      %2273 = vmatprep.subr.bf16.mxu0 0
      %2274 = vmatpush2.bf16.msra.mxu0 %v2009
      %2275 = vmatprep.mubr.bf16.mxu0 %v1473
      %2276 = vmatmul.mubr.bf16.gmra.mxu0 %v1457
      %v2277 = vpop.f32.mrf.mxu0
      %v2278 = vadd.f32 %v2213, %v2277
      %v2279 = vpop.f32.mrf.mxu0
      %v2280 = vpop.f32.mrf.mxu0
      %v2281 = vadd.f32 %v2216, %v2280
      %v2282 = vpop.f32.mrf.mxu0
      %2283 = vmatprep.mubr.bf16.mxu0 %v1474
      %2284 = vmatmul.mubr.bf16.gmra.mxu0 %v1458
      %v2285 = vpop.f32.mrf.mxu0
      %v2286 = vadd.f32 %v2221, %v2285
      %v2287 = vpop.f32.mrf.mxu0
      %v2288 = vpop.f32.mrf.mxu0
      %v2289 = vadd.f32 %v2224, %v2288
      %v2290 = vpop.f32.mrf.mxu0
      %2291 = vmatprep.mubr.bf16.mxu0 %v1475
      %2292 = vmatmul.mubr.bf16.gmra.mxu0 %v1459
      %v2293 = vpop.f32.mrf.mxu0
      %v2294 = vadd.f32 %v2229, %v2293
      %v2295 = vpop.f32.mrf.mxu0
      %v2296 = vpop.f32.mrf.mxu0
      %v2297 = vadd.f32 %v2232, %v2296
      %v2298 = vpop.f32.mrf.mxu0
      %2299 = vmatprep.mubr.bf16.mxu0 %v1476
      %2300 = vmatmul.mubr.bf16.gmra.mxu0 %v1460
      %v2301 = vpop.f32.mrf.mxu0
      %v2302 = vadd.f32 %v2237, %v2301
      %v2303 = vpop.f32.mrf.mxu0
      %v2304 = vpop.f32.mrf.mxu0
      %v2305 = vadd.f32 %v2240, %v2304
      %v2306 = vpop.f32.mrf.mxu0
      %2307 = vdwg.mxu0
      %2308 = vmatprep.subr.bf16.mxu0 0
      %2309 = vmatpush1.bf16.msra.mxu0 %v2024
      %2310 = vmatprep.subr.bf16.mxu0 0
      %2311 = vmatpush1.bf16.msra.mxu0 %v2023
      %2312 = vmatprep.subr.bf16.mxu0 0
      %2313 = vmatpush1.bf16.msra.mxu0 %v2022
      %2314 = vmatprep.subr.bf16.mxu0 0
      %2315 = vmatpush1.bf16.msra.mxu0 %v2021
      %2316 = vmatprep.subr.bf16.mxu0 0
      %2317 = vmatpush1.bf16.msra.mxu0 %v2020
      %2318 = vmatprep.subr.bf16.mxu0 0
      %2319 = vmatpush1.bf16.msra.mxu0 %v2019
      %2320 = vmatprep.subr.bf16.mxu0 0
      %2321 = vmatpush1.bf16.msra.mxu0 %v2018
      %2322 = vmatprep.subr.bf16.mxu0 0
      %2323 = vmatpush1.bf16.msra.mxu0 %v2017
      %2324 = vmatprep.subr.bf16.mxu0 0
      %2325 = vmatpush2.bf16.msra.mxu0 %v2032
      %2326 = vmatprep.subr.bf16.mxu0 0
      %2327 = vmatpush2.bf16.msra.mxu0 %v2031
      %2328 = vmatprep.subr.bf16.mxu0 0
      %2329 = vmatpush2.bf16.msra.mxu0 %v2030
      %2330 = vmatprep.subr.bf16.mxu0 0
      %2331 = vmatpush2.bf16.msra.mxu0 %v2029
      %2332 = vmatprep.subr.bf16.mxu0 0
      %2333 = vmatpush2.bf16.msra.mxu0 %v2028
      %2334 = vmatprep.subr.bf16.mxu0 0
      %2335 = vmatpush2.bf16.msra.mxu0 %v2027
      %2336 = vmatprep.subr.bf16.mxu0 0
      %2337 = vmatpush2.bf16.msra.mxu0 %v2026
      %2338 = vmatprep.subr.bf16.mxu0 0
      %2339 = vmatpush2.bf16.msra.mxu0 %v2025
      %2340 = vmatprep.mubr.bf16.mxu0 %v1513
      %2341 = vmatmul.mubr.bf16.gmra.mxu0 %v1497
      %v2342 = vpop.f32.mrf.mxu0
      %v2343 = vadd.f32 %v2278, %v2342
      %v2344 = vpop.f32.mrf.mxu0
      %v2345 = vpop.f32.mrf.mxu0
      %v2346 = vadd.f32 %v2281, %v2345
      %v2347 = vpop.f32.mrf.mxu0
      %2348 = vmatprep.mubr.bf16.mxu0 %v1514
      %2349 = vmatmul.mubr.bf16.gmra.mxu0 %v1498
      %v2350 = vpop.f32.mrf.mxu0
      %v2351 = vadd.f32 %v2286, %v2350
      %v2352 = vpop.f32.mrf.mxu0
      %v2353 = vpop.f32.mrf.mxu0
      %v2354 = vadd.f32 %v2289, %v2353
      %v2355 = vpop.f32.mrf.mxu0
      %2356 = vmatprep.mubr.bf16.mxu0 %v1515
      %2357 = vmatmul.mubr.bf16.gmra.mxu0 %v1499
      %v2358 = vpop.f32.mrf.mxu0
      %v2359 = vadd.f32 %v2294, %v2358
      %v2360 = vpop.f32.mrf.mxu0
      %v2361 = vpop.f32.mrf.mxu0
      %v2362 = vadd.f32 %v2297, %v2361
      %v2363 = vpop.f32.mrf.mxu0
      %2364 = vmatprep.mubr.bf16.mxu0 %v1516
      %2365 = vmatmul.mubr.bf16.gmra.mxu0 %v1500
      %v2366 = vpop.f32.mrf.mxu0
      %v2367 = vadd.f32 %v2302, %v2366
      %v2368 = vpop.f32.mrf.mxu0
      %v2369 = vpop.f32.mrf.mxu0
      %v2370 = vadd.f32 %v2305, %v2369
      %v2371 = vpop.f32.mrf.mxu0
      %2372 = vdwg.mxu0
      %2373 = vmatprep.subr.bf16.mxu0 0
      %2374 = vmatpush1.bf16.msra.mxu0 %v2040
      %2375 = vmatprep.subr.bf16.mxu0 0
      %2376 = vmatpush1.bf16.msra.mxu0 %v2039
      %2377 = vmatprep.subr.bf16.mxu0 0
      %2378 = vmatpush1.bf16.msra.mxu0 %v2038
      %2379 = vmatprep.subr.bf16.mxu0 0
      %2380 = vmatpush1.bf16.msra.mxu0 %v2037
      %2381 = vmatprep.subr.bf16.mxu0 0
      %2382 = vmatpush1.bf16.msra.mxu0 %v2036
      %2383 = vmatprep.subr.bf16.mxu0 0
      %2384 = vmatpush1.bf16.msra.mxu0 %v2035
      %2385 = vmatprep.subr.bf16.mxu0 0
      %2386 = vmatpush1.bf16.msra.mxu0 %v2034
      %2387 = vmatprep.subr.bf16.mxu0 0
      %2388 = vmatpush1.bf16.msra.mxu0 %v2033
      %2389 = vmatprep.subr.bf16.mxu0 0
      %2390 = vmatpush2.bf16.msra.mxu0 0
      %2391 = vmatprep.subr.bf16.mxu0 0
      %2392 = vmatpush2.bf16.msra.mxu0 0
      %2393 = vmatprep.subr.bf16.mxu0 0
      %2394 = vmatpush2.bf16.msra.mxu0 0
      %2395 = vmatprep.subr.bf16.mxu0 0
      %2396 = vmatpush2.bf16.msra.mxu0 0
      %2397 = vmatprep.subr.bf16.mxu0 0
      %2398 = vmatpush2.bf16.msra.mxu0 0
      %2399 = vmatprep.subr.bf16.mxu0 0
      %2400 = vmatpush2.bf16.msra.mxu0 0
      %2401 = vmatprep.subr.bf16.mxu0 0
      %2402 = vmatpush2.bf16.msra.mxu0 0
      %2403 = vmatprep.subr.bf16.mxu0 0
      %2404 = vmatpush2.bf16.msra.mxu0 0
      %2405 = vmatprep.mubr.bf16.mxu0 0
      %2406 = vmatmul.mubr.bf16.gmra.mxu0 %v1529
      %v2407 = vpop.f32.mrf.mxu0
      %v2408 = vadd.f32 %v2343, %v2407
      %v2409 = vpop.f32.mrf.mxu0
      %v2410 = vpop.f32.mrf.mxu0
      %v2411 = vadd.f32 %v2346, %v2410
      %v2412 = vpop.f32.mrf.mxu0
      %2413 = vmatprep.mubr.bf16.mxu0 0
      %2414 = vmatmul.mubr.bf16.gmra.mxu0 %v1530
      %v2415 = vpop.f32.mrf.mxu0
      %v2416 = vadd.f32 %v2351, %v2415
      %v2417 = vpop.f32.mrf.mxu0
      %v2418 = vpop.f32.mrf.mxu0
      %v2419 = vadd.f32 %v2354, %v2418
      %v2420 = vpop.f32.mrf.mxu0
      %2421 = vmatprep.mubr.bf16.mxu0 0
      %2422 = vmatmul.mubr.bf16.gmra.mxu0 %v1531
      %v2423 = vpop.f32.mrf.mxu0
      %v2424 = vadd.f32 %v2359, %v2423
      %v2425 = vpop.f32.mrf.mxu0
      %v2426 = vpop.f32.mrf.mxu0
      %v2427 = vadd.f32 %v2362, %v2426
      %v2428 = vpop.f32.mrf.mxu0
      %2429 = vmatprep.mubr.bf16.mxu0 0
      %2430 = vmatmul.mubr.bf16.gmra.mxu0 %v1532
      %v2431 = vpop.f32.mrf.mxu0
      %v2432 = vadd.f32 %v2367, %v2431
      %v2433 = vpop.f32.mrf.mxu0
      %v2434 = vpop.f32.mrf.mxu0
      %v2435 = vadd.f32 %v2370, %v2434
      %v2436 = vpop.f32.mrf.mxu0
      %2437 = vdwg.mxu0
      %v2438 = vpack.c.bf16 %v2408, %v2408
      %v2439 = vpack.c.bf16 %v2411, %v2411
      %v2440 = vpack.c.bf16 %v2416, %v2416
      %v2441 = vpack.c.bf16 %v2419, %v2419
      %v2442 = vpack.c.bf16 %v2424, %v2424
      %v2443 = vpack.c.bf16 %v2427, %v2427
      %v2444 = vpack.c.bf16 %v2432, %v2432
      %v2445 = vpack.c.bf16 %v2435, %v2435
      %2446 = vst [vmem:[%s446] sm:$0xf] %v2438
      %2447 = vst [vmem:[%s446 + $0x4] sm:$0xf] %v2439
      %2448 = vst [vmem:[%s446 + $0x8] sm:$0xf] %v2440
      %2449 = vst [vmem:[%s446 + $0xc] sm:$0xf] %v2441
      %2450 = vst [vmem:[%s446 + $0x10] sm:$0xf] %v2442
      %2451 = vst [vmem:[%s446 + $0x14] sm:$0xf] %v2443
      %2452 = vst [vmem:[%s446 + $0x18] sm:$0xf] %v2444
      %2453 = vst [vmem:[%s446 + $0x1c] sm:$0xf] %v2445
      %v2454 = vadd.f32 %v2408, %v2411
      %v2455 = vadd.f32 %v2454, %v2416
      %v2456 = vadd.f32 %v2455, %v2419
      %v2457 = vadd.f32 %v2456, %v2424
      %v2458 = vadd.f32 %v2457, %v2427
      %v2459 = vadd.f32 %v2458, %v2432
      %v2460 = vadd.f32 %v2459, %v2435
      %v2461 = vrot.slane %v2460, 4
      %v2462 = vadd.f32 %v2460, %v2461
      %v2463 = vrot.slane %v2462, 2
      %v2464 = vadd.f32 %v2462, %v2463
      %v2465 = vrot.slane %v2464, 1
      %v2466 = vadd.f32 %v2464, %v2465
      %2467 = vst [vmem:[%s454] sm:$0x1] %v2466
      %v2468 = vmul.f32 %v2408, %v2408
      %v2469 = vmul.f32 %v2411, %v2411
      %v2470 = vmul.f32 %v2416, %v2416
      %v2471 = vmul.f32 %v2419, %v2419
      %v2472 = vmul.f32 %v2424, %v2424
      %v2473 = vmul.f32 %v2427, %v2427
      %v2474 = vmul.f32 %v2432, %v2432
      %v2475 = vmul.f32 %v2435, %v2435
      %v2476 = vadd.f32 %v2468, %v2469
      %v2477 = vadd.f32 %v2476, %v2470
      %v2478 = vadd.f32 %v2477, %v2471
      %v2479 = vadd.f32 %v2478, %v2472
      %v2480 = vadd.f32 %v2479, %v2473
      %v2481 = vadd.f32 %v2480, %v2474
      %v2482 = vadd.f32 %v2481, %v2475
      %v2483 = vrot.slane %v2482, 4
      %v2484 = vadd.f32 %v2482, %v2483
      %v2485 = vrot.slane %v2484, 2
      %v2486 = vadd.f32 %v2484, %v2485
      %v2487 = vrot.slane %v2486, 1
      %v2488 = vadd.f32 %v2486, %v2487
      %2489 = vst [vmem:[%s454 + $0x1] sm:$0x1] %v2488
      %s2490 = smul.u32 8, %s24
      %p2491 = scmp.lt.s32.totalorder %s23, 1
      %s2492 = scalar_select %p2491, %s23, 1
      %p2493 = scmp.lt.s32.totalorder %s2490, 7
      %s2494 = scalar_select %p2493, %s2490, 7
      %s2495 = smul.addr %s2492, 8
      %s2496 = sadd.s32 %s2494, %s2495
      %s2497 = smul.addr %s2496, 4
      %s2498 = scalar_lea.vmem %s6, %s2497
      %p2499 = scmp.lt.s32.totalorder %s23, 1
      %s2500 = scalar_select %p2499, %s23, 1
      %p2501 = scmp.lt.s32.totalorder %s24, 0
      %s2502 = scalar_select %p2501, %s24, 0
      %s2503 = sadd.s32 %s2502, %s2500
      %s2504 = smul.addr %s2503, 2
      %s2505 = scalar_lea.vmem %s7, %s2504
      // Predicated region
      $region53: #{down_forward.4} parent=43 // pred_check
        %p2506 = pneg %p214
      $region54: #{down_forward.4} parent=43 // pred_check_branch
        %2508 = sbr.rel (%p2506) target = $region56
      $region55: #{down_forward.4} parent=43 // pred_region
        %s2509 = smul.u32 8, %s24
      $region56: #{down_forward.4} parent=43 // pred_fallthru
        _
      // Predicated region
      $region57: #{down_forward.4} parent=43 // pred_check
        %p2510 = pneg %p242
      $region58: #{down_forward.4} parent=43 // pred_check_branch
        %2512 = sbr.rel (%p2510) target = $region60
      $region59: #{down_forward.4} parent=43 // pred_region
        _
      $region60: #{down_forward.4} parent=43 // pred_fallthru
        _
    $region44: #{down_forward.4} parent=5 // pred_fallthru
      _
    %p2513 = scmp.le.s32.totalorder 2, %s14
    // Predicated region
    $region61: #{down_forward.4} parent=5 // pred_check
      %p2514 = pneg %p2513
    $region62: #{down_forward.4} parent=5 // pred_check_branch
      %2516 = sbr.rel (%p2514) target = $region64
    $region63: #{down_forward.4} parent=5 // pred_region
      %s2517 = ssub.s32 %s14, 2
      // Predicated region
      $region65: #{down_forward.4} parent=63 // pred_check
        %p2518 = pneg %p220
      $region66: #{down_forward.4} parent=63 // pred_check_branch
        %2520 = sbr.rel (%p2518) target = $region68
      $region67: #{down_forward.4} parent=63 // pred_region
        %s2521 = smul.u32 8, %s26
        %p2522 = scmp.lt.s32.totalorder %s25, 1
        %s2523 = scalar_select %p2522, %s25, 1
        %p2524 = scmp.lt.s32.totalorder %s2521, 7
        %s2525 = scalar_select %p2524, %s2521, 7
        %s2526 = smul.addr %s2523, 8
        %s2527 = sadd.s32 %s2525, %s2526
        %s2528 = smul.addr %s2527, 4
        %s2529 = scalar_lea.vmem %s6, %s2528
      $region68: #{down_forward.4} parent=63 // pred_fallthru
        _
      // Predicated region
      $region69: #{down_forward.4} parent=63 // pred_check
        %p2530 = pneg %p248
      $region70: #{down_forward.4} parent=63 // pred_check_branch
        %2532 = sbr.rel (%p2530) target = $region72
      $region71: #{down_forward.4} parent=63 // pred_region
        %p2533 = scmp.lt.s32.totalorder %s25, 1
        %s2534 = scalar_select %p2533, %s25, 1
        %p2535 = scmp.lt.s32.totalorder %s26, 0
        %s2536 = scalar_select %p2535, %s26, 0
        %s2537 = sadd.s32 %s2536, %s2534
        %s2538 = smul.addr %s2537, 2
        %s2539 = scalar_lea.vmem %s7, %s2538
      $region72: #{down_forward.4} parent=63 // pred_fallthru
        _
    $region64: #{down_forward.4} parent=5 // pred_fallthru
      _
  $region6: #{down_forward.4} parent=0 // loop_footer
    %s18 = sadd.s32 1, %s14
  $region7: #{down_forward.4} parent=0 // loop_footer_branch
    %13 = sbr.rel target = $region3
  $region8: #{down_forward.4} parent=0 // loop_exit
    _

// kernel: down_forward.3
$region0: #{down_forward.3}
  #allocation0 [shape = 'u32[]', space=smem, size = 0x4, offset = 0x4, fixed_abs, tag = 'smem constant byte address 0x4 - core index']
  #allocation1 [shape = 'u32[144,128]{1,0:T(1,128)}', space=vmem, size = 0x12000, scoped, tag = 'internal scratch']
  #allocation2 [shape = 'bf16[10,10,128]{2,1,0:T(8,128)(2,1)}', space=vmem, size = 0xa000, scoped, tag = 'scratch operand']
  %s0 = inlined_call_operand.vmem [shape: f32[2,8,2,8,8], index: 0, kind: input, shape index: {}, may-alias: {0,1,2}]
  %s1 = inlined_call_operand.vmem [shape: f32[2,8,2,8,8], index: 1, kind: input, shape index: {}, may-alias: {0,1,2}]
  %s2 = inlined_call_operand.vmem [shape: f32[2,8,2,8,8], index: 2, kind: input, shape index: {}, may-alias: {0,1,2}]
  %s3 = inlined_call_operand.vmem [shape: bf16[1152,128], index: 3, kind: input, shape index: {}]
  %s4 = inlined_call_operand.vmem [shape: bf16[2,8,8,128], index: 4, kind: output, shape index: {0}]
  %s5 = inlined_call_operand.vmem [shape: f32[2,1,2,128], index: 5, kind: output, shape index: {1}]
  %6 = xla_tuple %s4, %s5
  %s7 = sld [smem:[#allocation0]]
  $region65: #{down_forward.3} parent=0
    _
  %s9 = ssub.s32 1, %s7
  %s10 = scalar_select 0, %s9, %s7
  loop: start=0, step=1, limit=4
  $region2: #{down_forward.3} parent=0 // loop_pre_header
    _
  $region3: #{down_forward.3} parent=0 // loop_header
    %s12 = sphi 0, %s16
    %p13 = scmp.ge.s32.totalorder %s12, 4
    %s19 = sphi 0, %s31
    %s20 = sphi 0, %s27
    %s21 = sphi 0, %s19
    %s22 = sphi 0, %s20
    %s23 = sphi 0, %s21
    %s24 = sphi 0, %s22
    %s36 = sphi 0, %s38
    %s39 = sphi 0, %s36
    %s40 = sphi 0, %s39
    %s56 = sphi 0, %s40
    %s72 = sphi 0, %s74
    %s75 = sphi 0, %s72
    %s76 = sphi 0, %s75
    %s92 = sphi 0, %s76
    %s108 = sphi 0, %s110
    %s111 = sphi 0, %s108
    %s112 = sphi 0, %s111
    %s128 = sphi 0, %s112
    %s132 = sphi 0, %s132
    %s134 = sphi 0, %s132
    %s135 = sphi 0, %s134
    %s149 = sphi 0, %s135
    %s157 = sphi 0, %s159
    %s160 = sphi 0, %s157
    %s161 = sphi 0, %s160
    %s177 = sphi 0, %s161
    %s185 = sphi 0, %s187
    %s188 = sphi 0, %s185
    %s189 = sphi 0, %s188
    %s205 = sphi 0, %s189
  $region4: #{down_forward.3} parent=0 // loop_header_branch
    %15 = sbr.rel (%p13) target = $region8
  $region5: #{down_forward.3} parent=0 // loop_body
    %s17 = ssub.s32 %s12, 1
    %s18 = ssub.s32 %s12, 2
    %s25 = sadd.s32 1, %s20
    %p26 = scmp.ge.s32.totalorder %s25, 1
    %s27 = scalar_select %p26, 0, %s25
    %s28 = sadd.s32 1, %s19
    %s29 = scalar_select %p26, %s28, %s19
    %p30 = scmp.ge.s32.totalorder %s29, 2
    %s31 = scalar_select %p30, 0, %s29
    %s32 = ssub.s32 %s19, %s31
    %s33 = ssub.s32 %s20, %s27
    %s34 = sor.u32 %s32, %s33
    %p35 = scmp.eq.s32.totalorder %s34, 0
    %s37 = sadd.s32 %s36, 1
    %s38 = scalar_select %p35, %s36, %s37
    %p41 = pneg %p35
    %p42 = scmp.eq.s32.totalorder %s12, 1
    %p43 = por %p41, %p42
    %p44 = scmp.ne.s32.totalorder %s36, %s39
    %p45 = scmp.eq.s32.totalorder %s12, 0
    %p46 = por %p44, %p45
    %p47 = scmp.ne.s32.totalorder %s36, %s39
    %p48 = scmp.eq.s32.totalorder %s17, 1
    %p49 = por %p47, %p48
    %p50 = scmp.ne.s32.totalorder %s39, %s40
    %p51 = scmp.eq.s32.totalorder %s17, 0
    %p52 = por %p50, %p51
    %p53 = scmp.ne.s32.totalorder %s39, %s40
    %p54 = scmp.eq.s32.totalorder %s18, 1
    %p55 = por %p53, %p54
    %p57 = scmp.ne.s32.totalorder %s40, %s56
    %p58 = scmp.eq.s32.totalorder %s18, 0
    %p59 = por %p57, %p58
    %s60 = smul.u32 %s20, 8
    %s61 = ssub.s32 %s60, 1
    %p62 = scmp.gt.s32.totalorder %s61, 0
    %s63 = scalar_select %p62, %s61, 0
    %s64 = smul.u32 %s27, 8
    %s65 = ssub.s32 %s64, 1
    %p66 = scmp.gt.s32.totalorder %s65, 0
    %s67 = scalar_select %p66, %s65, 0
    %s68 = ssub.s32 %s19, %s31
    %s69 = ssub.s32 %s63, %s67
    %s70 = sor.u32 %s68, %s69
    %p71 = scmp.eq.s32.totalorder %s70, 0
    %s73 = sadd.s32 %s72, 1
    %s74 = scalar_select %p71, %s72, %s73
    %p77 = pneg %p71
    %p78 = scmp.eq.s32.totalorder %s12, 1
    %p79 = por %p77, %p78
    %p80 = scmp.ne.s32.totalorder %s72, %s75
    %p81 = scmp.eq.s32.totalorder %s12, 0
    %p82 = por %p80, %p81
    %p83 = scmp.ne.s32.totalorder %s72, %s75
    %p84 = scmp.eq.s32.totalorder %s17, 1
    %p85 = por %p83, %p84
    %p86 = scmp.ne.s32.totalorder %s75, %s76
    %p87 = scmp.eq.s32.totalorder %s17, 0
    %p88 = por %p86, %p87
    %p89 = scmp.ne.s32.totalorder %s75, %s76
    %p90 = scmp.eq.s32.totalorder %s18, 1
    %p91 = por %p89, %p90
    %p93 = scmp.ne.s32.totalorder %s76, %s92
    %p94 = scmp.eq.s32.totalorder %s18, 0
    %p95 = por %p93, %p94
    %s96 = smul.u32 %s20, 8
    %s97 = sadd.s32 %s96, 8
    %p98 = scmp.lt.s32.totalorder %s97, 7
    %s99 = scalar_select %p98, %s97, 7
    %s100 = smul.u32 %s27, 8
    %s101 = sadd.s32 %s100, 8
    %p102 = scmp.lt.s32.totalorder %s101, 7
    %s103 = scalar_select %p102, %s101, 7
    %s104 = ssub.s32 %s19, %s31
    %s105 = ssub.s32 %s99, %s103
    %s106 = sor.u32 %s104, %s105
    %p107 = scmp.eq.s32.totalorder %s106, 0
    %s109 = sadd.s32 %s108, 1
    %s110 = scalar_select %p107, %s108, %s109
    %p113 = pneg %p107
    %p114 = scmp.eq.s32.totalorder %s12, 1
    %p115 = por %p113, %p114
    %p116 = scmp.ne.s32.totalorder %s108, %s111
    %p117 = scmp.eq.s32.totalorder %s12, 0
    %p118 = por %p116, %p117
    %p119 = scmp.ne.s32.totalorder %s108, %s111
    %p120 = scmp.eq.s32.totalorder %s17, 1
    %p121 = por %p119, %p120
    %p122 = scmp.ne.s32.totalorder %s111, %s112
    %p123 = scmp.eq.s32.totalorder %s17, 0
    %p124 = por %p122, %p123
    %p125 = scmp.ne.s32.totalorder %s111, %s112
    %p126 = scmp.eq.s32.totalorder %s18, 1
    %p127 = por %p125, %p126
    %p129 = scmp.ne.s32.totalorder %s112, %s128
    %p130 = scmp.eq.s32.totalorder %s18, 0
    %p131 = por %p129, %p130
    %s133 = sadd.s32 %s132, 1
    %p136 = scmp.eq.s32.totalorder %s12, 1
    %p137 = scmp.ne.s32.totalorder %s132, %s134
    %p138 = scmp.eq.s32.totalorder %s12, 0
    %p139 = por %p137, %p138
    %p140 = scmp.ne.s32.totalorder %s132, %s134
    %p141 = scmp.eq.s32.totalorder %s17, 1
    %p142 = por %p140, %p141
    %p143 = scmp.ne.s32.totalorder %s134, %s135
    %p144 = scmp.eq.s32.totalorder %s17, 0
    %p145 = por %p143, %p144
    %p146 = scmp.ne.s32.totalorder %s134, %s135
    %p147 = scmp.eq.s32.totalorder %s18, 1
    %p148 = por %p146, %p147
    %p150 = scmp.ne.s32.totalorder %s135, %s149
    %p151 = scmp.eq.s32.totalorder %s18, 0
    %p152 = por %p150, %p151
    %s153 = ssub.s32 %s19, %s31
    %s154 = ssub.s32 %s20, %s27
    %s155 = sor.u32 %s153, %s154
    %p156 = scmp.eq.s32.totalorder %s155, 0
    %s158 = sadd.s32 %s157, 1
    %s159 = scalar_select %p156, %s157, %s158
    %p162 = pneg %p156
    %p163 = scmp.eq.s32.totalorder %s12, 1
    %p164 = por %p162, %p163
    %p165 = scmp.ne.s32.totalorder %s157, %s160
    %p166 = scmp.eq.s32.totalorder %s12, 0
    %p167 = por %p165, %p166
    %p168 = scmp.ne.s32.totalorder %s157, %s160
    %p169 = scmp.eq.s32.totalorder %s17, 1
    %p170 = por %p168, %p169
    %p171 = scmp.ne.s32.totalorder %s160, %s161
    %p172 = scmp.eq.s32.totalorder %s17, 0
    %p173 = por %p171, %p172
    %p174 = scmp.ne.s32.totalorder %s160, %s161
    %p175 = scmp.eq.s32.totalorder %s18, 1
    %p176 = por %p174, %p175
    %p178 = scmp.ne.s32.totalorder %s161, %s177
    %p179 = scmp.eq.s32.totalorder %s18, 0
    %p180 = por %p178, %p179
    %s181 = ssub.s32 %s19, %s31
    %s182 = ssub.s32 %s20, %s27
    %s183 = sor.u32 %s181, %s182
    %p184 = scmp.eq.s32.totalorder %s183, 0
    %s186 = sadd.s32 %s185, 1
    %s187 = scalar_select %p184, %s185, %s186
    %p190 = pneg %p184
    %p191 = scmp.eq.s32.totalorder %s12, 1
    %p192 = por %p190, %p191
    %p193 = scmp.ne.s32.totalorder %s185, %s188
    %p194 = scmp.eq.s32.totalorder %s12, 0
    %p195 = por %p193, %p194
    %p196 = scmp.ne.s32.totalorder %s185, %s188
    %p197 = scmp.eq.s32.totalorder %s17, 1
    %p198 = por %p196, %p197
    %p199 = scmp.ne.s32.totalorder %s188, %s189
    %p200 = scmp.eq.s32.totalorder %s17, 0
    %p201 = por %p199, %p200
    %p202 = scmp.ne.s32.totalorder %s188, %s189
    %p203 = scmp.eq.s32.totalorder %s18, 1
    %p204 = por %p202, %p203
    %p206 = scmp.ne.s32.totalorder %s189, %s205
    %p207 = scmp.eq.s32.totalorder %s18, 0
    %p208 = por %p206, %p207
    %p209 = scmp.le.s32.totalorder 1, %s12
    %p210 = scmp.lt.s32.totalorder %s12, 3
    %p211 = pnand %p209, %p210
    %p212 = pneg %p211
    // Predicated region
    $region9: #{down_forward.3} parent=5 // pred_check
      _
    $region10: #{down_forward.3} parent=5 // pred_check_branch
      %214 = sbr.rel (%p211) target = $region12
    $region11: #{down_forward.3} parent=5 // pred_region
      %s215 = ssub.s32 %s12, 1
      // Predicated region
      $region13: #{down_forward.3} parent=11 // pred_check
        %p216 = pneg %p145
      $region14: #{down_forward.3} parent=11 // pred_check_branch
        %218 = sbr.rel (%p216) target = $region16
      $region15: #{down_forward.3} parent=11 // pred_region
        _
      $region16: #{down_forward.3} parent=11 // pred_fallthru
        _
    $region12: #{down_forward.3} parent=5 // pred_fallthru
      _
    %p219 = scmp.lt.s32.totalorder %s12, 2
    // Predicated region
    $region17: #{down_forward.3} parent=5 // pred_check
      %p220 = pneg %p219
    $region18: #{down_forward.3} parent=5 // pred_check_branch
      %222 = sbr.rel (%p220) target = $region20
    $region19: #{down_forward.3} parent=5 // pred_region
      // Predicated region
      $region21: #{down_forward.3} parent=19 // pred_check
        %p223 = pneg %p46
      $region22: #{down_forward.3} parent=19 // pred_check_branch
        %225 = sbr.rel (%p223) target = $region24
      $region23: #{down_forward.3} parent=19 // pred_region
        %s226 = smul.u32 8, %s20
        %p227 = scmp.lt.s32.totalorder %s19, 1
        %s228 = scalar_select %p227, %s19, 1
        %p229 = scmp.lt.s32.totalorder %s226, 7
        %s230 = scalar_select %p229, %s226, 7
        %s231 = smul.addr %s230, 2
        %s232 = smul.addr %s228, 16
        %s233 = sadd.s32 %s231, %s232
        %s234 = smul.addr %s233, 8
        %s235 = scalar_lea.vmem %s0, %s234
        %s236 = smul.u32 8, %s20
      $region24: #{down_forward.3} parent=19 // pred_fallthru
        _
      // Predicated region
      $region25: #{down_forward.3} parent=19 // pred_check
        %p237 = pneg %p82
      $region26: #{down_forward.3} parent=19 // pred_check_branch
        %239 = sbr.rel (%p237) target = $region28
      $region27: #{down_forward.3} parent=19 // pred_region
        %s240 = smul.u32 %s20, 8
        %s241 = ssub.s32 %s240, 1
        %p242 = scmp.gt.s32.totalorder %s241, 0
        %s243 = scalar_select %p242, %s241, 0
        %p244 = scmp.lt.s32.totalorder %s19, 1
        %s245 = scalar_select %p244, %s19, 1
        %p246 = scmp.lt.s32.totalorder %s243, 7
        %s247 = scalar_select %p246, %s243, 7
        %s248 = smul.addr %s247, 2
        %s249 = smul.addr %s245, 16
        %s250 = sadd.s32 %s248, %s249
        %s251 = smul.addr %s250, 8
        %s252 = scalar_lea.vmem %s1, %s251
        %s253 = smul.u32 %s20, 8
        %s254 = ssub.s32 %s253, 1
        %p255 = scmp.gt.s32.totalorder %s254, 0
        %s256 = scalar_select %p255, %s254, 0
      $region28: #{down_forward.3} parent=19 // pred_fallthru
        _
      // Predicated region
      $region29: #{down_forward.3} parent=19 // pred_check
        %p257 = pneg %p118
      $region30: #{down_forward.3} parent=19 // pred_check_branch
        %259 = sbr.rel (%p257) target = $region32
      $region31: #{down_forward.3} parent=19 // pred_region
        %s260 = smul.u32 %s20, 8
        %s261 = sadd.s32 %s260, 8
        %p262 = scmp.lt.s32.totalorder %s261, 7
        %s263 = scalar_select %p262, %s261, 7
        %p264 = scmp.lt.s32.totalorder %s19, 1
        %s265 = scalar_select %p264, %s19, 1
        %p266 = scmp.lt.s32.totalorder %s263, 7
        %s267 = scalar_select %p266, %s263, 7
        %s268 = smul.addr %s267, 2
        %s269 = smul.addr %s265, 16
        %s270 = sadd.s32 %s268, %s269
        %s271 = smul.addr %s270, 8
        %s272 = scalar_lea.vmem %s2, %s271
        %s273 = smul.u32 %s20, 8
        %s274 = sadd.s32 %s273, 8
        %p275 = scmp.lt.s32.totalorder %s274, 7
        %s276 = scalar_select %p275, %s274, 7
      $region32: #{down_forward.3} parent=19 // pred_fallthru
        _
    $region20: #{down_forward.3} parent=5 // pred_fallthru
      _
    %p277 = scmp.le.s32.totalorder 1, %s12
    %p278 = scmp.lt.s32.totalorder %s12, 3
    %p279 = pnand %p277, %p278
    %p280 = pneg %p279
    // Predicated region
    $region33: #{down_forward.3} parent=5 // pred_check
      _
    $region34: #{down_forward.3} parent=5 // pred_check_branch
      %282 = sbr.rel (%p279) target = $region36
    $region35: #{down_forward.3} parent=5 // pred_region
      %s283 = ssub.s32 %s12, 1
      %s284 = smul.u32 8, %s22
      %p285 = scmp.lt.s32.totalorder %s21, 1
      %s286 = scalar_select %p285, %s21, 1
      %p287 = scmp.lt.s32.totalorder %s284, 7
      %s288 = scalar_select %p287, %s284, 7
      %s289 = smul.addr %s288, 2
      %s290 = smul.addr %s286, 16
      %s291 = sadd.s32 %s289, %s290
      %s292 = smul.addr %s291, 8
      %s293 = scalar_lea.vmem %s0, %s292
      %p294 = pneg %p52
      %p295 = pneg %p49
      %s296 = smul.u32 %s22, 8
      %s297 = ssub.s32 %s296, 1
      %p298 = scmp.gt.s32.totalorder %s297, 0
      %s299 = scalar_select %p298, %s297, 0
      %p300 = scmp.lt.s32.totalorder %s21, 1
      %s301 = scalar_select %p300, %s21, 1
      %p302 = scmp.lt.s32.totalorder %s299, 7
      %s303 = scalar_select %p302, %s299, 7
      %s304 = smul.addr %s303, 2
      %s305 = smul.addr %s301, 16
      %s306 = sadd.s32 %s304, %s305
      %s307 = smul.addr %s306, 8
      %s308 = scalar_lea.vmem %s1, %s307
      %p309 = pneg %p88
      %p310 = pneg %p85
      %s311 = smul.u32 %s22, 8
      %s312 = sadd.s32 %s311, 8
      %p313 = scmp.lt.s32.totalorder %s312, 7
      %s314 = scalar_select %p313, %s312, 7
      %p315 = scmp.lt.s32.totalorder %s21, 1
      %s316 = scalar_select %p315, %s21, 1
      %p317 = scmp.lt.s32.totalorder %s314, 7
      %s318 = scalar_select %p317, %s314, 7
      %s319 = smul.addr %s318, 2
      %s320 = smul.addr %s316, 16
      %s321 = sadd.s32 %s319, %s320
      %s322 = smul.addr %s321, 8
      %s323 = scalar_lea.vmem %s2, %s322
      %p324 = pneg %p124
      %p325 = pneg %p121
      %p326 = pneg %p145
      %p327 = pneg %p142
      %p328 = pneg %p173
      %p329 = pneg %p170
      %s330 = smul.u32 8, %s22
      %p331 = scmp.lt.s32.totalorder %s21, 1
      %s332 = scalar_select %p331, %s21, 1
      %p333 = scmp.lt.s32.totalorder %s330, 7
      %s334 = scalar_select %p333, %s330, 7
      %s335 = smul.addr %s332, 8
      %s336 = sadd.s32 %s334, %s335
      %s337 = smul.addr %s336, 4
      %s338 = scalar_lea.vmem %s4, %s337
      %p339 = pneg %p201
      %p340 = pneg %p198
      %p341 = scmp.lt.s32.totalorder %s21, 1
      %s342 = scalar_select %p341, %s21, 1
      %p343 = scmp.lt.s32.totalorder %s22, 0
      %s344 = scalar_select %p343, %s22, 0
      %s345 = sadd.s32 %s344, %s342
      %s346 = smul.addr %s345, 2
      %s347 = scalar_lea.vmem %s5, %s346
      %s348 = smul.u32 8, %s22
      %p349 = scmp.lt.s32.totalorder %s21, 1
      %s350 = scalar_select %p349, %s21, 1
      %p351 = scmp.lt.s32.totalorder %s348, 7
      %s352 = scalar_select %p351, %s348, 7
      %s353 = smul.addr %s352, 2
      %s354 = smul.addr %s350, 16
      %s355 = sadd.s32 %s353, %s354
      %s356 = smul.addr %s355, 8
      %s357 = scalar_lea.vmem %s0, %s356
      %s358 = smul.u32 8, %s22
      %s359 = smul.u32 %s22, 8
      %s360 = ssub.s32 %s359, 1
      %p361 = scmp.gt.s32.totalorder %s360, 0
      %s362 = scalar_select %p361, %s360, 0
      %p363 = scmp.lt.s32.totalorder %s21, 1
      %s364 = scalar_select %p363, %s21, 1
      %p365 = scmp.lt.s32.totalorder %s362, 7
      %s366 = scalar_select %p365, %s362, 7
      %s367 = smul.addr %s366, 2
      %s368 = smul.addr %s364, 16
      %s369 = sadd.s32 %s367, %s368
      %s370 = smul.addr %s369, 8
      %s371 = scalar_lea.vmem %s1, %s370
      %s372 = smul.u32 %s22, 8
      %s373 = ssub.s32 %s372, 1
      %p374 = scmp.gt.s32.totalorder %s373, 0
      %s375 = scalar_select %p374, %s373, 0
      %s376 = smul.u32 %s22, 8
      %s377 = sadd.s32 %s376, 8
      %p378 = scmp.lt.s32.totalorder %s377, 7
      %s379 = scalar_select %p378, %s377, 7
      %p380 = scmp.lt.s32.totalorder %s21, 1
      %s381 = scalar_select %p380, %s21, 1
      %p382 = scmp.lt.s32.totalorder %s379, 7
      %s383 = scalar_select %p382, %s379, 7
      %s384 = smul.addr %s383, 2
      %s385 = smul.addr %s381, 16
      %s386 = sadd.s32 %s384, %s385
      %s387 = smul.addr %s386, 8
      %s388 = scalar_lea.vmem %s2, %s387
      %s389 = smul.u32 %s22, 8
      %s390 = sadd.s32 %s389, 8
      %p391 = scmp.lt.s32.totalorder %s390, 7
      %s392 = scalar_select %p391, %s390, 7
      %s393 = smul.u32 8, %s22
      %p394 = scmp.lt.s32.totalorder %s21, 1
      %s395 = scalar_select %p394, %s21, 1
      %p396 = scmp.lt.s32.totalorder %s393, 7
      %s397 = scalar_select %p396, %s393, 7
      %s398 = smul.addr %s395, 8
      %s399 = sadd.s32 %s397, %s398
      %s400 = smul.addr %s399, 4
      %s401 = scalar_lea.vmem %s4, %s400
      %s402 = smul.u32 8, %s22
      %p403 = scmp.lt.s32.totalorder %s21, 1
      %s404 = scalar_select %p403, %s21, 1
      %p405 = scmp.lt.s32.totalorder %s22, 0
      %s406 = scalar_select %p405, %s22, 0
      %s407 = sadd.s32 %s406, %s404
      %s408 = smul.addr %s407, 2
      %s409 = scalar_lea.vmem %s5, %s408
      %v411 = vld [vmem:[%s371] sm:$0xff]
      %v412 = vld [vmem:[%s371 + $0x8] sm:$0xff]
      %v413 = vmax.f32 %v411, %v412
      %415 = vrot.lane.b32.xlu0 %v413, 124
      %v416 = vpop.permute.xlu0 %415
      %v418 = vmax.f32 %v413, %v416
      %vm419 = vcmask 31744
      %v420 = vsel %vm419, %v418, 0.0
      %v421 = vld [vmem:[%s357] sm:$0xff]
      %v422 = vld [vmem:[%s357 + $0x8] sm:$0xff]
      %v423 = vld [vmem:[%s357 + $0x10] sm:$0xff]
      %v424 = vld [vmem:[%s357 + $0x18] sm:$0xff]
      %v425 = vld [vmem:[%s357 + $0x20] sm:$0xff]
      %v426 = vld [vmem:[%s357 + $0x28] sm:$0xff]
      %v427 = vld [vmem:[%s357 + $0x30] sm:$0xff]
      %v428 = vld [vmem:[%s357 + $0x38] sm:$0xff]
      %v429 = vld [vmem:[%s357 + $0x40] sm:$0xff]
      %v430 = vld [vmem:[%s357 + $0x48] sm:$0xff]
      %v431 = vld [vmem:[%s357 + $0x50] sm:$0xff]
      %v432 = vld [vmem:[%s357 + $0x58] sm:$0xff]
      %v433 = vld [vmem:[%s357 + $0x60] sm:$0xff]
      %v434 = vld [vmem:[%s357 + $0x68] sm:$0xff]
      %v435 = vld [vmem:[%s357 + $0x70] sm:$0xff]
      %v436 = vld [vmem:[%s357 + $0x78] sm:$0xff]
      %v437 = vmax.f32 %v421, %v422
      %v438 = vmax.f32 %v423, %v424
      %v439 = vmax.f32 %v425, %v426
      %v440 = vmax.f32 %v427, %v428
      %v441 = vmax.f32 %v429, %v430
      %v442 = vmax.f32 %v431, %v432
      %v443 = vmax.f32 %v433, %v434
      %v444 = vmax.f32 %v435, %v436
      %453 = vrot.lane.b32.xlu0 %v437, 124
      %v454 = vpop.permute.xlu0 %453
      %455 = vrot.lane.b32.xlu0 %v438, 124
      %v456 = vpop.permute.xlu0 %455
      %457 = vrot.lane.b32.xlu0 %v439, 124
      %v458 = vpop.permute.xlu0 %457
      %459 = vrot.lane.b32.xlu0 %v440, 124
      %v460 = vpop.permute.xlu0 %459
      %461 = vrot.lane.b32.xlu0 %v441, 124
      %v462 = vpop.permute.xlu0 %461
      %463 = vrot.lane.b32.xlu0 %v442, 124
      %v464 = vpop.permute.xlu0 %463
      %465 = vrot.lane.b32.xlu0 %v443, 124
      %v466 = vpop.permute.xlu0 %465
      %467 = vrot.lane.b32.xlu0 %v444, 124
      %v468 = vpop.permute.xlu0 %467
      %v477 = vmax.f32 %v437, %v454
      %v478 = vmax.f32 %v438, %v456
      %v479 = vmax.f32 %v439, %v458
      %v480 = vmax.f32 %v440, %v460
      %v481 = vmax.f32 %v441, %v462
      %v482 = vmax.f32 %v442, %v464
      %v483 = vmax.f32 %v443, %v466
      %v484 = vmax.f32 %v444, %v468
      %v485 = vsel %vm419, %v477, 0.0
      %v486 = vsel %vm419, %v478, 0.0
      %v487 = vsel %vm419, %v479, 0.0
      %v488 = vsel %vm419, %v480, 0.0
      %v489 = vsel %vm419, %v481, 0.0
      %v490 = vsel %vm419, %v482, 0.0
      %v491 = vsel %vm419, %v483, 0.0
      %v492 = vsel %vm419, %v484, 0.0
      %v493 = vld [vmem:[%s388] sm:$0xff]
      %v494 = vld [vmem:[%s388 + $0x8] sm:$0xff]
      %v495 = vmax.f32 %v493, %v494
      %497 = vrot.lane.b32.xlu0 %v495, 124
      %v498 = vpop.permute.xlu0 %497
      %v500 = vmax.f32 %v495, %v498
      %v501 = vsel %vm419, %v500, 0.0
      %v502 = vpack.c.bf16 %v420, %v420
      %v503 = vpack.c.bf16 %v485, %v485
      %v504 = vpack.c.bf16 %v486, %v486
      %v505 = vpack.c.bf16 %v487, %v487
      %v506 = vpack.c.bf16 %v488, %v488
      %v507 = vpack.c.bf16 %v489, %v489
      %v508 = vpack.c.bf16 %v490, %v490
      %v509 = vpack.c.bf16 %v491, %v491
      %v510 = vpack.c.bf16 %v492, %v492
      %v511 = vpack.c.bf16 %v501, %v501
      %v522 = vunpack.c.l.b16 %v502
      %v523 = vunpack.c.l.b16 %v503
      %v524 = vunpack.c.l.b16 %v504
      %v525 = vunpack.c.l.b16 %v505
      %v526 = vunpack.c.l.b16 %v506
      %v527 = vunpack.c.l.b16 %v507
      %v528 = vunpack.c.l.b16 %v508
      %v529 = vunpack.c.l.b16 %v509
      %v530 = vunpack.c.l.b16 %v510
      %v531 = vunpack.c.l.b16 %v511
      %v532 = vpack.c.b16 %v522, %v522
      %v533 = vpack.c.b16 %v523, %v523
      %v534 = vpack.c.b16 %v524, %v524
      %v535 = vpack.c.b16 %v525, %v525
      %v536 = vpack.c.b16 %v526, %v526
      %v537 = vpack.c.b16 %v527, %v527
      %v538 = vpack.c.b16 %v528, %v528
      %v539 = vpack.c.b16 %v529, %v529
      %v540 = vpack.c.b16 %v530, %v530
      %v541 = vpack.c.b16 %v531, %v531
      %v543 = vshrl.u32 %v532, 16
      %v545 = vrot.slane %v543, 7
      %v546 = vshll.u32 %v532, 16
      %v548 = vor.u32 %v545, %v546
      %v549 = vrot.slane %v545, 4
      %v551 = vshrl.u32 %v533, 16
      %v553 = vrot.slane %v551, 7
      %v554 = vshll.u32 %v533, 16
      %v556 = vor.u32 %v553, %v554
      %v557 = vrot.slane %v553, 4
      %v559 = vshrl.u32 %v534, 16
      %v561 = vrot.slane %v559, 7
      %v562 = vshll.u32 %v534, 16
      %v564 = vor.u32 %v561, %v562
      %v565 = vrot.slane %v561, 4
      %v567 = vshrl.u32 %v535, 16
      %v569 = vrot.slane %v567, 7
      %v570 = vshll.u32 %v535, 16
      %v572 = vor.u32 %v569, %v570
      %v573 = vrot.slane %v569, 4
      %v575 = vshrl.u32 %v536, 16
      %v577 = vrot.slane %v575, 7
      %v578 = vshll.u32 %v536, 16
      %v580 = vor.u32 %v577, %v578
      %v581 = vrot.slane %v577, 4
      %v583 = vshrl.u32 %v537, 16
      %v585 = vrot.slane %v583, 7
      %v586 = vshll.u32 %v537, 16
      %v588 = vor.u32 %v585, %v586
      %v589 = vrot.slane %v585, 4
      %v591 = vshrl.u32 %v538, 16
      %v593 = vrot.slane %v591, 7
      %v594 = vshll.u32 %v538, 16
      %v596 = vor.u32 %v593, %v594
      %v597 = vrot.slane %v593, 4
      %v599 = vshrl.u32 %v539, 16
      %v601 = vrot.slane %v599, 7
      %v602 = vshll.u32 %v539, 16
      %v604 = vor.u32 %v601, %v602
      %v605 = vrot.slane %v601, 4
      %v607 = vshrl.u32 %v540, 16
      %v609 = vrot.slane %v607, 7
      %v610 = vshll.u32 %v540, 16
      %v612 = vor.u32 %v609, %v610
      %v613 = vrot.slane %v609, 4
      %v615 = vshrl.u32 %v541, 16
      %v617 = vrot.slane %v615, 7
      %v618 = vshll.u32 %v541, 16
      %v620 = vor.u32 %v617, %v618
      %v621 = vrot.slane %v617, 4
      %vm642 = vcmask 1043456
      %vm643 = vsmask.f32 7938
      %vm644 = vmand %vm642, %vm643
      %v645 = vld [vmem:[#allocation2] sm:$0xf]
      %v646 = vsel %vm644, %v548, %v645
      %647 = vst [vmem:[#allocation2] sm:$0xf] %v646
      %vm648 = vcmask 1040384
      %vm649 = vsmask.f32 256
      %vm650 = vmand %vm648, %vm649
      %v651 = vld [vmem:[#allocation2 + $0x4] sm:$0x1]
      %v652 = vsel %vm650, %v549, %v651
      %653 = vst [vmem:[#allocation2 + $0x4] sm:$0x1] %v652
      %v654 = vld [vmem:[#allocation2 + $0x8] sm:$0xf]
      %v655 = vsel %vm644, %v556, %v654
      %656 = vst [vmem:[#allocation2 + $0x8] sm:$0xf] %v655
      %v657 = vld [vmem:[#allocation2 + $0xc] sm:$0x1]
      %v658 = vsel %vm650, %v557, %v657
      %659 = vst [vmem:[#allocation2 + $0xc] sm:$0x1] %v658
      %v660 = vld [vmem:[#allocation2 + $0x10] sm:$0xf]
      %v661 = vsel %vm644, %v564, %v660
      %662 = vst [vmem:[#allocation2 + $0x10] sm:$0xf] %v661
      %v663 = vld [vmem:[#allocation2 + $0x14] sm:$0x1]
      %v664 = vsel %vm650, %v565, %v663
      %665 = vst [vmem:[#allocation2 + $0x14] sm:$0x1] %v664
      %v666 = vld [vmem:[#allocation2 + $0x18] sm:$0xf]
      %v667 = vsel %vm644, %v572, %v666
      %668 = vst [vmem:[#allocation2 + $0x18] sm:$0xf] %v667
      %v669 = vld [vmem:[#allocation2 + $0x1c] sm:$0x1]
      %v670 = vsel %vm650, %v573, %v669
      %671 = vst [vmem:[#allocation2 + $0x1c] sm:$0x1] %v670
      %v672 = vld [vmem:[#allocation2 + $0x20] sm:$0xf]
      %v673 = vsel %vm644, %v580, %v672
      %674 = vst [vmem:[#allocation2 + $0x20] sm:$0xf] %v673
      %v675 = vld [vmem:[#allocation2 + $0x24] sm:$0x1]
      %v676 = vsel %vm650, %v581, %v675
      %677 = vst [vmem:[#allocation2 + $0x24] sm:$0x1] %v676
      %v678 = vld [vmem:[#allocation2 + $0x28] sm:$0xf]
      %v679 = vsel %vm644, %v588, %v678
      %680 = vst [vmem:[#allocation2 + $0x28] sm:$0xf] %v679
      %v681 = vld [vmem:[#allocation2 + $0x2c] sm:$0x1]
      %v682 = vsel %vm650, %v589, %v681
      %683 = vst [vmem:[#allocation2 + $0x2c] sm:$0x1] %v682
      %v684 = vld [vmem:[#allocation2 + $0x30] sm:$0xf]
      %v685 = vsel %vm644, %v596, %v684
      %686 = vst [vmem:[#allocation2 + $0x30] sm:$0xf] %v685
      %v687 = vld [vmem:[#allocation2 + $0x34] sm:$0x1]
      %v688 = vsel %vm650, %v597, %v687
      %689 = vst [vmem:[#allocation2 + $0x34] sm:$0x1] %v688
      %v690 = vld [vmem:[#allocation2 + $0x38] sm:$0xf]
      %v691 = vsel %vm644, %v604, %v690
      %692 = vst [vmem:[#allocation2 + $0x38] sm:$0xf] %v691
      %v693 = vld [vmem:[#allocation2 + $0x3c] sm:$0x1]
      %v694 = vsel %vm650, %v605, %v693
      %695 = vst [vmem:[#allocation2 + $0x3c] sm:$0x1] %v694
      %v696 = vld [vmem:[#allocation2 + $0x40] sm:$0xf]
      %v697 = vsel %vm644, %v612, %v696
      %698 = vst [vmem:[#allocation2 + $0x40] sm:$0xf] %v697
      %v699 = vld [vmem:[#allocation2 + $0x44] sm:$0x1]
      %v700 = vsel %vm650, %v613, %v699
      %701 = vst [vmem:[#allocation2 + $0x44] sm:$0x1] %v700
      %v702 = vld [vmem:[#allocation2 + $0x48] sm:$0xf]
      %v703 = vsel %vm644, %v620, %v702
      %704 = vst [vmem:[#allocation2 + $0x48] sm:$0xf] %v703
      %v705 = vld [vmem:[#allocation2 + $0x4c] sm:$0x1]
      %v706 = vsel %vm650, %v621, %v705
      %707 = vst [vmem:[#allocation2 + $0x4c] sm:$0x1] %v706
      %v708 = vld [vmem:[#allocation2] sm:$0x1]
      %v709 = vsel %vm650, 0, %v708
      %710 = vst [vmem:[#allocation2] sm:$0x1] %v709
      %v711 = vld [vmem:[#allocation2 + $0x8] sm:$0x1]
      %v712 = vsel %vm650, 0, %v711
      %713 = vst [vmem:[#allocation2 + $0x8] sm:$0x1] %v712
      %v714 = vld [vmem:[#allocation2 + $0x10] sm:$0x1]
      %v715 = vsel %vm650, 0, %v714
      %716 = vst [vmem:[#allocation2 + $0x10] sm:$0x1] %v715
      %v717 = vld [vmem:[#allocation2 + $0x18] sm:$0x1]
      %v718 = vsel %vm650, 0, %v717
      %719 = vst [vmem:[#allocation2 + $0x18] sm:$0x1] %v718
      %v720 = vld [vmem:[#allocation2 + $0x20] sm:$0x1]
      %v721 = vsel %vm650, 0, %v720
      %722 = vst [vmem:[#allocation2 + $0x20] sm:$0x1] %v721
      %v723 = vld [vmem:[#allocation2 + $0x28] sm:$0x1]
      %v724 = vsel %vm650, 0, %v723
      %725 = vst [vmem:[#allocation2 + $0x28] sm:$0x1] %v724
      %v726 = vld [vmem:[#allocation2 + $0x30] sm:$0x1]
      %v727 = vsel %vm650, 0, %v726
      %728 = vst [vmem:[#allocation2 + $0x30] sm:$0x1] %v727
      %v729 = vld [vmem:[#allocation2 + $0x38] sm:$0x1]
      %v730 = vsel %vm650, 0, %v729
      %731 = vst [vmem:[#allocation2 + $0x38] sm:$0x1] %v730
      %v732 = vld [vmem:[#allocation2 + $0x40] sm:$0x1]
      %v733 = vsel %vm650, 0, %v732
      %734 = vst [vmem:[#allocation2 + $0x40] sm:$0x1] %v733
      %v735 = vld [vmem:[#allocation2 + $0x48] sm:$0x1]
      %v736 = vsel %vm650, 0, %v735
      %737 = vst [vmem:[#allocation2 + $0x48] sm:$0x1] %v736
      %vm738 = vmand %vm648, %vm643
      %v739 = vld [vmem:[#allocation2 + $0x4] sm:$0x1]
      %v740 = vsel %vm738, 0, %v739
      %741 = vst [vmem:[#allocation2 + $0x4] sm:$0x1] %v740
      %v742 = vld [vmem:[#allocation2 + $0xc] sm:$0x1]
      %v743 = vsel %vm738, 0, %v742
      %744 = vst [vmem:[#allocation2 + $0xc] sm:$0x1] %v743
      %v745 = vld [vmem:[#allocation2 + $0x14] sm:$0x1]
      %v746 = vsel %vm738, 0, %v745
      %747 = vst [vmem:[#allocation2 + $0x14] sm:$0x1] %v746
      %v748 = vld [vmem:[#allocation2 + $0x1c] sm:$0x1]
      %v749 = vsel %vm738, 0, %v748
      %750 = vst [vmem:[#allocation2 + $0x1c] sm:$0x1] %v749
      %v751 = vld [vmem:[#allocation2 + $0x24] sm:$0x1]
      %v752 = vsel %vm738, 0, %v751
      %753 = vst [vmem:[#allocation2 + $0x24] sm:$0x1] %v752
      %v754 = vld [vmem:[#allocation2 + $0x2c] sm:$0x1]
      %v755 = vsel %vm738, 0, %v754
      %756 = vst [vmem:[#allocation2 + $0x2c] sm:$0x1] %v755
      %v757 = vld [vmem:[#allocation2 + $0x34] sm:$0x1]
      %v758 = vsel %vm738, 0, %v757
      %759 = vst [vmem:[#allocation2 + $0x34] sm:$0x1] %v758
      %v760 = vld [vmem:[#allocation2 + $0x3c] sm:$0x1]
      %v761 = vsel %vm738, 0, %v760
      %762 = vst [vmem:[#allocation2 + $0x3c] sm:$0x1] %v761
      %v763 = vld [vmem:[#allocation2 + $0x44] sm:$0x1]
      %v764 = vsel %vm738, 0, %v763
      %765 = vst [vmem:[#allocation2 + $0x44] sm:$0x1] %v764
      %v766 = vld [vmem:[#allocation2 + $0x4c] sm:$0x1]
      %v767 = vsel %vm738, 0, %v766
      %768 = vst [vmem:[#allocation2 + $0x4c] sm:$0x1] %v767
      %p769 = scmp.eq.s32.totalorder %s22, 0
      // Predicated region
      $region37: #{down_forward.3} parent=35 // pred_check
        %p770 = pneg %p769
      $region38: #{down_forward.3} parent=35 // pred_check_branch
        %772 = sbr.rel (%p770) target = $region40
      $region39: #{down_forward.3} parent=35 // pred_region
        %v773 = vld [vmem:[#allocation2] sm:$0xf]
        %v774 = vsel %vm644, 0, %v773
        %775 = vst [vmem:[#allocation2] sm:$0xf] %v774
        %v776 = vld [vmem:[#allocation2 + $0x4] sm:$0x1]
        %v777 = vsel %vm650, 0, %v776
        %778 = vst [vmem:[#allocation2 + $0x4] sm:$0x1] %v777
      $region40: #{down_forward.3} parent=35 // pred_fallthru
        _
      %s779 = sadd.s32 %s22, 1
      %p780 = scmp.eq.s32.totalorder %s779, 1
      // Predicated region
      $region41: #{down_forward.3} parent=35 // pred_check
        %p781 = pneg %p780
      $region42: #{down_forward.3} parent=35 // pred_check_branch
        %783 = sbr.rel (%p781) target = $region44
      $region43: #{down_forward.3} parent=35 // pred_region
        %s784 = scalar_lea.vmem [#allocation2], 72
        %v785 = vld [vmem:[%s784] sm:$0xf]
        %v786 = vsel %vm644, 0, %v785
        %787 = vst [vmem:[%s784] sm:$0xf] %v786
        %v788 = vld [vmem:[%s784 + $0x4] sm:$0x1]
        %v789 = vsel %vm650, 0, %v788
        %790 = vst [vmem:[%s784 + $0x4] sm:$0x1] %v789
      $region44: #{down_forward.3} parent=35 // pred_fallthru
        _
      %v791 = vld [vmem:[#allocation2] sm:$0xf]
      %v792 = vld [vmem:[#allocation2 + $0x8] sm:$0xf]
      %v793 = vld [vmem:[#allocation2 + $0x10] sm:$0xf]
      %v794 = vld [vmem:[#allocation2 + $0x18] sm:$0xf]
      %v795 = vld [vmem:[#allocation2 + $0x20] sm:$0xf]
      %v796 = vld [vmem:[#allocation2 + $0x28] sm:$0xf]
      %v797 = vld [vmem:[#allocation2 + $0x30] sm:$0xf]
      %v798 = vld [vmem:[#allocation2 + $0x38] sm:$0xf]
      %v799 = vld [vmem:[#allocation2 + $0x4] sm:$0x1]
      %v800 = vld [vmem:[#allocation2 + $0xc] sm:$0x1]
      %v801 = vld [vmem:[#allocation2 + $0x14] sm:$0x1]
      %v802 = vld [vmem:[#allocation2 + $0x1c] sm:$0x1]
      %v803 = vld [vmem:[#allocation2 + $0x24] sm:$0x1]
      %v804 = vld [vmem:[#allocation2 + $0x2c] sm:$0x1]
      %v805 = vld [vmem:[#allocation2 + $0x34] sm:$0x1]
      %v806 = vld [vmem:[#allocation2 + $0x3c] sm:$0x1]
      %vm807 = vsmask.f32 3328
      %vm808 = vsmask.f32 7440
      %vm809 = vmor %vm807, %vm808
      %v811 = vshrl.u32 %v791, 16
      %v813 = vrot.slane %v811, 4
      %v814 = vshll.u32 %v791, 16
      %v816 = vrot.slane %v814, 5
      %v817 = vor.u32 %v813, %v816
      %v818 = vrot.slane %v817, 4
      %v820 = vshll.u32 %v799, 16
      %v822 = vrot.slane %v820, 5
      %v823 = vsel %vm809, %v818, %v822
      %v825 = vshrl.u32 %v792, 16
      %v827 = vrot.slane %v825, 4
      %v828 = vshll.u32 %v792, 16
      %v830 = vrot.slane %v828, 5
      %v831 = vor.u32 %v827, %v830
      %v832 = vrot.slane %v831, 4
      %v834 = vshll.u32 %v800, 16
      %v836 = vrot.slane %v834, 5
      %v837 = vsel %vm809, %v832, %v836
      %v839 = vshrl.u32 %v793, 16
      %v841 = vrot.slane %v839, 4
      %v842 = vshll.u32 %v793, 16
      %v844 = vrot.slane %v842, 5
      %v845 = vor.u32 %v841, %v844
      %v846 = vrot.slane %v845, 4
      %v848 = vshll.u32 %v801, 16
      %v850 = vrot.slane %v848, 5
      %v851 = vsel %vm809, %v846, %v850
      %v853 = vshrl.u32 %v794, 16
      %v855 = vrot.slane %v853, 4
      %v856 = vshll.u32 %v794, 16
      %v858 = vrot.slane %v856, 5
      %v859 = vor.u32 %v855, %v858
      %v860 = vrot.slane %v859, 4
      %v862 = vshll.u32 %v802, 16
      %v864 = vrot.slane %v862, 5
      %v865 = vsel %vm809, %v860, %v864
      %v867 = vshrl.u32 %v795, 16
      %v869 = vrot.slane %v867, 4
      %v870 = vshll.u32 %v795, 16
      %v872 = vrot.slane %v870, 5
      %v873 = vor.u32 %v869, %v872
      %v874 = vrot.slane %v873, 4
      %v876 = vshll.u32 %v803, 16
      %v878 = vrot.slane %v876, 5
      %v879 = vsel %vm809, %v874, %v878
      %v881 = vshrl.u32 %v796, 16
      %v883 = vrot.slane %v881, 4
      %v884 = vshll.u32 %v796, 16
      %v886 = vrot.slane %v884, 5
      %v887 = vor.u32 %v883, %v886
      %v888 = vrot.slane %v887, 4
      %v890 = vshll.u32 %v804, 16
      %v892 = vrot.slane %v890, 5
      %v893 = vsel %vm809, %v888, %v892
      %v895 = vshrl.u32 %v797, 16
      %v897 = vrot.slane %v895, 4
      %v898 = vshll.u32 %v797, 16
      %v900 = vrot.slane %v898, 5
      %v901 = vor.u32 %v897, %v900
      %v902 = vrot.slane %v901, 4
      %v904 = vshll.u32 %v805, 16
      %v906 = vrot.slane %v904, 5
      %v907 = vsel %vm809, %v902, %v906
      %v909 = vshrl.u32 %v798, 16
      %v911 = vrot.slane %v909, 4
      %v912 = vshll.u32 %v798, 16
      %v914 = vrot.slane %v912, 5
      %v915 = vor.u32 %v911, %v914
      %v916 = vrot.slane %v915, 4
      %v918 = vshll.u32 %v806, 16
      %v920 = vrot.slane %v918, 5
      %v921 = vsel %vm809, %v916, %v920
      %v922 = vld [vmem:[#allocation2] sm:$0xe]
      %v923 = vld [vmem:[#allocation2 + $0x8] sm:$0xe]
      %v924 = vld [vmem:[#allocation2 + $0x10] sm:$0xe]
      %v925 = vld [vmem:[#allocation2 + $0x18] sm:$0xe]
      %v926 = vld [vmem:[#allocation2 + $0x20] sm:$0xe]
      %v927 = vld [vmem:[#allocation2 + $0x28] sm:$0xe]
      %v928 = vld [vmem:[#allocation2 + $0x30] sm:$0xe]
      %v929 = vld [vmem:[#allocation2 + $0x38] sm:$0xe]
      %vm946 = vcmask 1042432
      %vm947 = vcmask 1046532
      %vm948 = vmor %vm946, %vm947
      %v949 = vrot.slane %v922, 5
      %v950 = vrot.slane %v949, 4
      %v951 = vrot.slane %v799, 5
      %v952 = vsel %vm948, %v950, %v951
      %v953 = vrot.slane %v923, 5
      %v954 = vrot.slane %v953, 4
      %v955 = vrot.slane %v800, 5
      %v956 = vsel %vm948, %v954, %v955
      %v957 = vrot.slane %v924, 5
      %v958 = vrot.slane %v957, 4
      %v959 = vrot.slane %v801, 5
      %v960 = vsel %vm948, %v958, %v959
      %v961 = vrot.slane %v925, 5
      %v962 = vrot.slane %v961, 4
      %v963 = vrot.slane %v802, 5
      %v964 = vsel %vm948, %v962, %v963
      %v965 = vrot.slane %v926, 5
      %v966 = vrot.slane %v965, 4
      %v967 = vrot.slane %v803, 5
      %v968 = vsel %vm948, %v966, %v967
      %v969 = vrot.slane %v927, 5
      %v970 = vrot.slane %v969, 4
      %v971 = vrot.slane %v804, 5
      %v972 = vsel %vm948, %v970, %v971
      %v973 = vrot.slane %v928, 5
      %v974 = vrot.slane %v973, 4
      %v975 = vrot.slane %v805, 5
      %v976 = vsel %vm948, %v974, %v975
      %v977 = vrot.slane %v929, 5
      %v978 = vrot.slane %v977, 4
      %v979 = vrot.slane %v806, 5
      %v980 = vsel %vm948, %v978, %v979
      %s981 = scalar_lea.vmem [#allocation2], 8
      %v982 = vld [vmem:[%s981] sm:$0xf]
      %v983 = vld [vmem:[%s981 + $0x8] sm:$0xf]
      %v984 = vld [vmem:[%s981 + $0x10] sm:$0xf]
      %v985 = vld [vmem:[%s981 + $0x18] sm:$0xf]
      %v986 = vld [vmem:[%s981 + $0x20] sm:$0xf]
      %v987 = vld [vmem:[%s981 + $0x28] sm:$0xf]
      %v988 = vld [vmem:[%s981 + $0x30] sm:$0xf]
      %v989 = vld [vmem:[%s981 + $0x38] sm:$0xf]
      %v990 = vld [vmem:[%s981 + $0x4] sm:$0x1]
      %v991 = vld [vmem:[%s981 + $0xc] sm:$0x1]
      %v992 = vld [vmem:[%s981 + $0x14] sm:$0x1]
      %v993 = vld [vmem:[%s981 + $0x1c] sm:$0x1]
      %v994 = vld [vmem:[%s981 + $0x24] sm:$0x1]
      %v995 = vld [vmem:[%s981 + $0x2c] sm:$0x1]
      %v996 = vld [vmem:[%s981 + $0x34] sm:$0x1]
      %v997 = vld [vmem:[%s981 + $0x3c] sm:$0x1]
      %v999 = vshrl.u32 %v982, 16
      %v1001 = vrot.slane %v999, 4
      %v1002 = vshll.u32 %v982, 16
      %v1004 = vrot.slane %v1002, 5
      %v1005 = vor.u32 %v1001, %v1004
      %v1006 = vrot.slane %v1005, 4
      %v1008 = vshll.u32 %v990, 16
      %v1010 = vrot.slane %v1008, 5
      %v1011 = vsel %vm809, %v1006, %v1010
      %v1013 = vshrl.u32 %v983, 16
      %v1015 = vrot.slane %v1013, 4
      %v1016 = vshll.u32 %v983, 16
      %v1018 = vrot.slane %v1016, 5
      %v1019 = vor.u32 %v1015, %v1018
      %v1020 = vrot.slane %v1019, 4
      %v1022 = vshll.u32 %v991, 16
      %v1024 = vrot.slane %v1022, 5
      %v1025 = vsel %vm809, %v1020, %v1024
      %v1027 = vshrl.u32 %v984, 16
      %v1029 = vrot.slane %v1027, 4
      %v1030 = vshll.u32 %v984, 16
      %v1032 = vrot.slane %v1030, 5
      %v1033 = vor.u32 %v1029, %v1032
      %v1034 = vrot.slane %v1033, 4
      %v1036 = vshll.u32 %v992, 16
      %v1038 = vrot.slane %v1036, 5
      %v1039 = vsel %vm809, %v1034, %v1038
      %v1041 = vshrl.u32 %v985, 16
      %v1043 = vrot.slane %v1041, 4
      %v1044 = vshll.u32 %v985, 16
      %v1046 = vrot.slane %v1044, 5
      %v1047 = vor.u32 %v1043, %v1046
      %v1048 = vrot.slane %v1047, 4
      %v1050 = vshll.u32 %v993, 16
      %v1052 = vrot.slane %v1050, 5
      %v1053 = vsel %vm809, %v1048, %v1052
      %v1055 = vshrl.u32 %v986, 16
      %v1057 = vrot.slane %v1055, 4
      %v1058 = vshll.u32 %v986, 16
      %v1060 = vrot.slane %v1058, 5
      %v1061 = vor.u32 %v1057, %v1060
      %v1062 = vrot.slane %v1061, 4
      %v1064 = vshll.u32 %v994, 16
      %v1066 = vrot.slane %v1064, 5
      %v1067 = vsel %vm809, %v1062, %v1066
      %v1069 = vshrl.u32 %v987, 16
      %v1071 = vrot.slane %v1069, 4
      %v1072 = vshll.u32 %v987, 16
      %v1074 = vrot.slane %v1072, 5
      %v1075 = vor.u32 %v1071, %v1074
      %v1076 = vrot.slane %v1075, 4
      %v1078 = vshll.u32 %v995, 16
      %v1080 = vrot.slane %v1078, 5
      %v1081 = vsel %vm809, %v1076, %v1080
      %v1083 = vshrl.u32 %v988, 16
      %v1085 = vrot.slane %v1083, 4
      %v1086 = vshll.u32 %v988, 16
      %v1088 = vrot.slane %v1086, 5
      %v1089 = vor.u32 %v1085, %v1088
      %v1090 = vrot.slane %v1089, 4
      %v1092 = vshll.u32 %v996, 16
      %v1094 = vrot.slane %v1092, 5
      %v1095 = vsel %vm809, %v1090, %v1094
      %v1097 = vshrl.u32 %v989, 16
      %v1099 = vrot.slane %v1097, 4
      %v1100 = vshll.u32 %v989, 16
      %v1102 = vrot.slane %v1100, 5
      %v1103 = vor.u32 %v1099, %v1102
      %v1104 = vrot.slane %v1103, 4
      %v1106 = vshll.u32 %v997, 16
      %v1108 = vrot.slane %v1106, 5
      %v1109 = vsel %vm809, %v1104, %v1108
      %v1110 = vld [vmem:[%s981] sm:$0xe]
      %v1111 = vld [vmem:[%s981 + $0x8] sm:$0xe]
      %v1112 = vld [vmem:[%s981 + $0x10] sm:$0xe]
      %v1113 = vld [vmem:[%s981 + $0x18] sm:$0xe]
      %v1114 = vld [vmem:[%s981 + $0x20] sm:$0xe]
      %v1115 = vld [vmem:[%s981 + $0x28] sm:$0xe]
      %v1116 = vld [vmem:[%s981 + $0x30] sm:$0xe]
      %v1117 = vld [vmem:[%s981 + $0x38] sm:$0xe]
      %v1134 = vrot.slane %v1110, 5
      %v1135 = vrot.slane %v1134, 4
      %v1136 = vrot.slane %v990, 5
      %v1137 = vsel %vm948, %v1135, %v1136
      %v1138 = vrot.slane %v1111, 5
      %v1139 = vrot.slane %v1138, 4
      %v1140 = vrot.slane %v991, 5
      %v1141 = vsel %vm948, %v1139, %v1140
      %v1142 = vrot.slane %v1112, 5
      %v1143 = vrot.slane %v1142, 4
      %v1144 = vrot.slane %v992, 5
      %v1145 = vsel %vm948, %v1143, %v1144
      %v1146 = vrot.slane %v1113, 5
      %v1147 = vrot.slane %v1146, 4
      %v1148 = vrot.slane %v993, 5
      %v1149 = vsel %vm948, %v1147, %v1148
      %v1150 = vrot.slane %v1114, 5
      %v1151 = vrot.slane %v1150, 4
      %v1152 = vrot.slane %v994, 5
      %v1153 = vsel %vm948, %v1151, %v1152
      %v1154 = vrot.slane %v1115, 5
      %v1155 = vrot.slane %v1154, 4
      %v1156 = vrot.slane %v995, 5
      %v1157 = vsel %vm948, %v1155, %v1156
      %v1158 = vrot.slane %v1116, 5
      %v1159 = vrot.slane %v1158, 4
      %v1160 = vrot.slane %v996, 5
      %v1161 = vsel %vm948, %v1159, %v1160
      %v1162 = vrot.slane %v1117, 5
      %v1163 = vrot.slane %v1162, 4
      %v1164 = vrot.slane %v997, 5
      %v1165 = vsel %vm948, %v1163, %v1164
      %s1166 = scalar_lea.vmem [#allocation2], 16
      %v1167 = vld [vmem:[%s1166] sm:$0xf]
      %v1168 = vld [vmem:[%s1166 + $0x8] sm:$0xf]
      %v1169 = vld [vmem:[%s1166 + $0x10] sm:$0xf]
      %v1170 = vld [vmem:[%s1166 + $0x18] sm:$0xf]
      %v1171 = vld [vmem:[%s1166 + $0x20] sm:$0xf]
      %v1172 = vld [vmem:[%s1166 + $0x28] sm:$0xf]
      %v1173 = vld [vmem:[%s1166 + $0x30] sm:$0xf]
      %v1174 = vld [vmem:[%s1166 + $0x38] sm:$0xf]
      %v1175 = vld [vmem:[%s1166 + $0x4] sm:$0x1]
      %v1176 = vld [vmem:[%s1166 + $0xc] sm:$0x1]
      %v1177 = vld [vmem:[%s1166 + $0x14] sm:$0x1]
      %v1178 = vld [vmem:[%s1166 + $0x1c] sm:$0x1]
      %v1179 = vld [vmem:[%s1166 + $0x24] sm:$0x1]
      %v1180 = vld [vmem:[%s1166 + $0x2c] sm:$0x1]
      %v1181 = vld [vmem:[%s1166 + $0x34] sm:$0x1]
      %v1182 = vld [vmem:[%s1166 + $0x3c] sm:$0x1]
      %v1184 = vshrl.u32 %v1167, 16
      %v1186 = vrot.slane %v1184, 4
      %v1187 = vshll.u32 %v1167, 16
      %v1189 = vrot.slane %v1187, 5
      %v1190 = vor.u32 %v1186, %v1189
      %v1191 = vrot.slane %v1190, 4
      %v1193 = vshll.u32 %v1175, 16
      %v1195 = vrot.slane %v1193, 5
      %v1196 = vsel %vm809, %v1191, %v1195
      %v1198 = vshrl.u32 %v1168, 16
      %v1200 = vrot.slane %v1198, 4
      %v1201 = vshll.u32 %v1168, 16
      %v1203 = vrot.slane %v1201, 5
      %v1204 = vor.u32 %v1200, %v1203
      %v1205 = vrot.slane %v1204, 4
      %v1207 = vshll.u32 %v1176, 16
      %v1209 = vrot.slane %v1207, 5
      %v1210 = vsel %vm809, %v1205, %v1209
      %v1212 = vshrl.u32 %v1169, 16
      %v1214 = vrot.slane %v1212, 4
      %v1215 = vshll.u32 %v1169, 16
      %v1217 = vrot.slane %v1215, 5
      %v1218 = vor.u32 %v1214, %v1217
      %v1219 = vrot.slane %v1218, 4
      %v1221 = vshll.u32 %v1177, 16
      %v1223 = vrot.slane %v1221, 5
      %v1224 = vsel %vm809, %v1219, %v1223
      %v1226 = vshrl.u32 %v1170, 16
      %v1228 = vrot.slane %v1226, 4
      %v1229 = vshll.u32 %v1170, 16
      %v1231 = vrot.slane %v1229, 5
      %v1232 = vor.u32 %v1228, %v1231
      %v1233 = vrot.slane %v1232, 4
      %v1235 = vshll.u32 %v1178, 16
      %v1237 = vrot.slane %v1235, 5
      %v1238 = vsel %vm809, %v1233, %v1237
      %v1240 = vshrl.u32 %v1171, 16
      %v1242 = vrot.slane %v1240, 4
      %v1243 = vshll.u32 %v1171, 16
      %v1245 = vrot.slane %v1243, 5
      %v1246 = vor.u32 %v1242, %v1245
      %v1247 = vrot.slane %v1246, 4
      %v1249 = vshll.u32 %v1179, 16
      %v1251 = vrot.slane %v1249, 5
      %v1252 = vsel %vm809, %v1247, %v1251
      %v1254 = vshrl.u32 %v1172, 16
      %v1256 = vrot.slane %v1254, 4
      %v1257 = vshll.u32 %v1172, 16
      %v1259 = vrot.slane %v1257, 5
      %v1260 = vor.u32 %v1256, %v1259
      %v1261 = vrot.slane %v1260, 4
      %v1263 = vshll.u32 %v1180, 16
      %v1265 = vrot.slane %v1263, 5
      %v1266 = vsel %vm809, %v1261, %v1265
      %v1268 = vshrl.u32 %v1173, 16
      %v1270 = vrot.slane %v1268, 4
      %v1271 = vshll.u32 %v1173, 16
      %v1273 = vrot.slane %v1271, 5
      %v1274 = vor.u32 %v1270, %v1273
      %v1275 = vrot.slane %v1274, 4
      %v1277 = vshll.u32 %v1181, 16
      %v1279 = vrot.slane %v1277, 5
      %v1280 = vsel %vm809, %v1275, %v1279
      %v1282 = vshrl.u32 %v1174, 16
      %v1284 = vrot.slane %v1282, 4
      %v1285 = vshll.u32 %v1174, 16
      %v1287 = vrot.slane %v1285, 5
      %v1288 = vor.u32 %v1284, %v1287
      %v1289 = vrot.slane %v1288, 4
      %v1291 = vshll.u32 %v1182, 16
      %v1293 = vrot.slane %v1291, 5
      %v1294 = vsel %vm809, %v1289, %v1293
      %v1295 = vld [vmem:[%s1166] sm:$0xe]
      %v1296 = vld [vmem:[%s1166 + $0x8] sm:$0xe]
      %v1297 = vld [vmem:[%s1166 + $0x10] sm:$0xe]
      %v1298 = vld [vmem:[%s1166 + $0x18] sm:$0xe]
      %v1299 = vld [vmem:[%s1166 + $0x20] sm:$0xe]
      %v1300 = vld [vmem:[%s1166 + $0x28] sm:$0xe]
      %v1301 = vld [vmem:[%s1166 + $0x30] sm:$0xe]
      %v1302 = vld [vmem:[%s1166 + $0x38] sm:$0xe]
      %v1319 = vrot.slane %v1295, 5
      %v1320 = vrot.slane %v1319, 4
      %v1321 = vrot.slane %v1175, 5
      %v1322 = vsel %vm948, %v1320, %v1321
      %v1323 = vrot.slane %v1296, 5
      %v1324 = vrot.slane %v1323, 4
      %v1325 = vrot.slane %v1176, 5
      %v1326 = vsel %vm948, %v1324, %v1325
      %v1327 = vrot.slane %v1297, 5
      %v1328 = vrot.slane %v1327, 4
      %v1329 = vrot.slane %v1177, 5
      %v1330 = vsel %vm948, %v1328, %v1329
      %v1331 = vrot.slane %v1298, 5
      %v1332 = vrot.slane %v1331, 4
      %v1333 = vrot.slane %v1178, 5
      %v1334 = vsel %vm948, %v1332, %v1333
      %v1335 = vrot.slane %v1299, 5
      %v1336 = vrot.slane %v1335, 4
      %v1337 = vrot.slane %v1179, 5
      %v1338 = vsel %vm948, %v1336, %v1337
      %v1339 = vrot.slane %v1300, 5
      %v1340 = vrot.slane %v1339, 4
      %v1341 = vrot.slane %v1180, 5
      %v1342 = vsel %vm948, %v1340, %v1341
      %v1343 = vrot.slane %v1301, 5
      %v1344 = vrot.slane %v1343, 4
      %v1345 = vrot.slane %v1181, 5
      %v1346 = vsel %vm948, %v1344, %v1345
      %v1347 = vrot.slane %v1302, 5
      %v1348 = vrot.slane %v1347, 4
      %v1349 = vrot.slane %v1182, 5
      %v1350 = vsel %vm948, %v1348, %v1349
      %v1359 = vunpack.c.l.b16 %v791
      %v1360 = vunpack.c.l.b16 %v792
      %v1361 = vunpack.c.l.b16 %v793
      %v1362 = vunpack.c.l.b16 %v794
      %v1363 = vunpack.c.l.b16 %v795
      %v1364 = vunpack.c.l.b16 %v796
      %v1365 = vunpack.c.l.b16 %v797
      %v1366 = vunpack.c.l.b16 %v798
      %v1367 = vpack.c.b16 %v1360, %v1359
      %v1368 = vpack.c.b16 %v1362, %v1361
      %v1369 = vpack.c.b16 %v1364, %v1363
      %v1370 = vpack.c.b16 %v1366, %v1365
      %v1375 = vunpack.c.l.b16 %v823
      %v1376 = vunpack.c.l.b16 %v837
      %v1377 = vunpack.c.l.b16 %v851
      %v1378 = vunpack.c.l.b16 %v865
      %v1379 = vunpack.c.l.b16 %v879
      %v1380 = vunpack.c.l.b16 %v893
      %v1381 = vunpack.c.l.b16 %v907
      %v1382 = vunpack.c.l.b16 %v921
      %v1383 = vpack.c.b16 %v1376, %v1375
      %v1384 = vpack.c.b16 %v1378, %v1377
      %v1385 = vpack.c.b16 %v1380, %v1379
      %v1386 = vpack.c.b16 %v1382, %v1381
      %v1391 = vunpack.c.l.b16 %v952
      %v1392 = vunpack.c.l.b16 %v956
      %v1393 = vunpack.c.l.b16 %v960
      %v1394 = vunpack.c.l.b16 %v964
      %v1395 = vunpack.c.l.b16 %v968
      %v1396 = vunpack.c.l.b16 %v972
      %v1397 = vunpack.c.l.b16 %v976
      %v1398 = vunpack.c.l.b16 %v980
      %v1399 = vpack.c.b16 %v1392, %v1391
      %v1400 = vpack.c.b16 %v1394, %v1393
      %v1401 = vpack.c.b16 %v1396, %v1395
      %v1402 = vpack.c.b16 %v1398, %v1397
      %v1415 = vunpack.c.l.b16 %v982
      %v1416 = vunpack.c.l.b16 %v983
      %v1417 = vunpack.c.l.b16 %v984
      %v1418 = vunpack.c.l.b16 %v985
      %v1419 = vunpack.c.l.b16 %v986
      %v1420 = vunpack.c.l.b16 %v987
      %v1421 = vunpack.c.l.b16 %v988
      %v1422 = vunpack.c.l.b16 %v989
      %v1423 = vpack.c.b16 %v1416, %v1415
      %v1424 = vpack.c.b16 %v1418, %v1417
      %v1425 = vpack.c.b16 %v1420, %v1419
      %v1426 = vpack.c.b16 %v1422, %v1421
      %v1431 = vunpack.c.l.b16 %v1011
      %v1432 = vunpack.c.l.b16 %v1025
      %v1433 = vunpack.c.l.b16 %v1039
      %v1434 = vunpack.c.l.b16 %v1053
      %v1435 = vunpack.c.l.b16 %v1067
      %v1436 = vunpack.c.l.b16 %v1081
      %v1437 = vunpack.c.l.b16 %v1095
      %v1438 = vunpack.c.l.b16 %v1109
      %v1439 = vpack.c.b16 %v1432, %v1431
      %v1440 = vpack.c.b16 %v1434, %v1433
      %v1441 = vpack.c.b16 %v1436, %v1435
      %v1442 = vpack.c.b16 %v1438, %v1437
      %v1447 = vunpack.c.l.b16 %v1137
      %v1448 = vunpack.c.l.b16 %v1141
      %v1449 = vunpack.c.l.b16 %v1145
      %v1450 = vunpack.c.l.b16 %v1149
      %v1451 = vunpack.c.l.b16 %v1153
      %v1452 = vunpack.c.l.b16 %v1157
      %v1453 = vunpack.c.l.b16 %v1161
      %v1454 = vunpack.c.l.b16 %v1165
      %v1455 = vpack.c.b16 %v1448, %v1447
      %v1456 = vpack.c.b16 %v1450, %v1449
      %v1457 = vpack.c.b16 %v1452, %v1451
      %v1458 = vpack.c.b16 %v1454, %v1453
      %v1471 = vunpack.c.l.b16 %v1167
      %v1472 = vunpack.c.l.b16 %v1168
      %v1473 = vunpack.c.l.b16 %v1169
      %v1474 = vunpack.c.l.b16 %v1170
      %v1475 = vunpack.c.l.b16 %v1171
      %v1476 = vunpack.c.l.b16 %v1172
      %v1477 = vunpack.c.l.b16 %v1173
      %v1478 = vunpack.c.l.b16 %v1174
      %v1479 = vpack.c.b16 %v1472, %v1471
      %v1480 = vpack.c.b16 %v1474, %v1473
      %v1481 = vpack.c.b16 %v1476, %v1475
      %v1482 = vpack.c.b16 %v1478, %v1477
      %v1487 = vunpack.c.l.b16 %v1196
      %v1488 = vunpack.c.l.b16 %v1210
      %v1489 = vunpack.c.l.b16 %v1224
      %v1490 = vunpack.c.l.b16 %v1238
      %v1491 = vunpack.c.l.b16 %v1252
      %v1492 = vunpack.c.l.b16 %v1266
      %v1493 = vunpack.c.l.b16 %v1280
      %v1494 = vunpack.c.l.b16 %v1294
      %v1495 = vpack.c.b16 %v1488, %v1487
      %v1496 = vpack.c.b16 %v1490, %v1489
      %v1497 = vpack.c.b16 %v1492, %v1491
      %v1498 = vpack.c.b16 %v1494, %v1493
      %v1503 = vunpack.c.l.b16 %v1322
      %v1504 = vunpack.c.l.b16 %v1326
      %v1505 = vunpack.c.l.b16 %v1330
      %v1506 = vunpack.c.l.b16 %v1334
      %v1507 = vunpack.c.l.b16 %v1338
      %v1508 = vunpack.c.l.b16 %v1342
      %v1509 = vunpack.c.l.b16 %v1346
      %v1510 = vunpack.c.l.b16 %v1350
      %v1511 = vpack.c.b16 %v1504, %v1503
      %v1512 = vpack.c.b16 %v1506, %v1505
      %v1513 = vpack.c.b16 %v1508, %v1507
      %v1514 = vpack.c.b16 %v1510, %v1509
      %v1519 = vld [vmem:[%s3] sm:$0xf]
      %v1520 = vld [vmem:[%s3 + $0x4] sm:$0xf]
      %v1521 = vld [vmem:[%s3 + $0x8] sm:$0xf]
      %v1522 = vld [vmem:[%s3 + $0xc] sm:$0xf]
      %v1523 = vld [vmem:[%s3 + $0x10] sm:$0xf]
      %v1524 = vld [vmem:[%s3 + $0x14] sm:$0xf]
      %v1525 = vld [vmem:[%s3 + $0x18] sm:$0xf]
      %v1526 = vld [vmem:[%s3 + $0x1c] sm:$0xf]
      %v1527 = vld [vmem:[%s3 + $0x20] sm:$0xf]
      %v1528 = vld [vmem:[%s3 + $0x24] sm:$0xf]
      %v1529 = vld [vmem:[%s3 + $0x28] sm:$0xf]
      %v1530 = vld [vmem:[%s3 + $0x2c] sm:$0xf]
      %v1531 = vld [vmem:[%s3 + $0x30] sm:$0xf]
      %v1532 = vld [vmem:[%s3 + $0x34] sm:$0xf]
      %v1533 = vld [vmem:[%s3 + $0x38] sm:$0xf]
      %v1534 = vld [vmem:[%s3 + $0x3c] sm:$0xf]
      %v1535 = vld [vmem:[%s3 + $0x40] sm:$0xf]
      %v1536 = vld [vmem:[%s3 + $0x44] sm:$0xf]
      %v1537 = vld [vmem:[%s3 + $0x48] sm:$0xf]
      %v1538 = vld [vmem:[%s3 + $0x4c] sm:$0xf]
      %v1539 = vld [vmem:[%s3 + $0x50] sm:$0xf]
      %v1540 = vld [vmem:[%s3 + $0x54] sm:$0xf]
      %v1541 = vld [vmem:[%s3 + $0x58] sm:$0xf]
      %v1542 = vld [vmem:[%s3 + $0x5c] sm:$0xf]
      %v1543 = vld [vmem:[%s3 + $0x60] sm:$0xf]
      %v1544 = vld [vmem:[%s3 + $0x64] sm:$0xf]
      %v1545 = vld [vmem:[%s3 + $0x68] sm:$0xf]
      %v1546 = vld [vmem:[%s3 + $0x6c] sm:$0xf]
      %v1547 = vld [vmem:[%s3 + $0x70] sm:$0xf]
      %v1548 = vld [vmem:[%s3 + $0x74] sm:$0xf]
      %v1549 = vld [vmem:[%s3 + $0x78] sm:$0xf]
      %v1550 = vld [vmem:[%s3 + $0x7c] sm:$0xf]
      %v1551 = vld [vmem:[%s3 + $0x80] sm:$0xf]
      %v1552 = vld [vmem:[%s3 + $0x84] sm:$0xf]
      %v1553 = vld [vmem:[%s3 + $0x88] sm:$0xf]
      %v1554 = vld [vmem:[%s3 + $0x8c] sm:$0xf]
      %v1555 = vld [vmem:[%s3 + $0x90] sm:$0xf]
      %v1556 = vld [vmem:[%s3 + $0x94] sm:$0xf]
      %v1557 = vld [vmem:[%s3 + $0x98] sm:$0xf]
      %v1558 = vld [vmem:[%s3 + $0x9c] sm:$0xf]
      %v1559 = vld [vmem:[%s3 + $0xa0] sm:$0xf]
      %v1560 = vld [vmem:[%s3 + $0xa4] sm:$0xf]
      %v1561 = vld [vmem:[%s3 + $0xa8] sm:$0xf]
      %v1562 = vld [vmem:[%s3 + $0xac] sm:$0xf]
      %v1563 = vld [vmem:[%s3 + $0xb0] sm:$0xf]
      %v1564 = vld [vmem:[%s3 + $0xb4] sm:$0xf]
      %v1565 = vld [vmem:[%s3 + $0xb8] sm:$0xf]
      %v1566 = vld [vmem:[%s3 + $0xbc] sm:$0xf]
      %v1567 = vld [vmem:[%s3 + $0xc0] sm:$0xf]
      %v1568 = vld [vmem:[%s3 + $0xc4] sm:$0xf]
      %v1569 = vld [vmem:[%s3 + $0xc8] sm:$0xf]
      %v1570 = vld [vmem:[%s3 + $0xcc] sm:$0xf]
      %v1571 = vld [vmem:[%s3 + $0xd0] sm:$0xf]
      %v1572 = vld [vmem:[%s3 + $0xd4] sm:$0xf]
      %v1573 = vld [vmem:[%s3 + $0xd8] sm:$0xf]
      %v1574 = vld [vmem:[%s3 + $0xdc] sm:$0xf]
      %v1575 = vld [vmem:[%s3 + $0xe0] sm:$0xf]
      %v1576 = vld [vmem:[%s3 + $0xe4] sm:$0xf]
      %v1577 = vld [vmem:[%s3 + $0xe8] sm:$0xf]
      %v1578 = vld [vmem:[%s3 + $0xec] sm:$0xf]
      %v1579 = vld [vmem:[%s3 + $0xf0] sm:$0xf]
      %v1580 = vld [vmem:[%s3 + $0xf4] sm:$0xf]
      %v1581 = vld [vmem:[%s3 + $0xf8] sm:$0xf]
      %v1582 = vld [vmem:[%s3 + $0xfc] sm:$0xf]
      %v1583 = vld [vmem:[%s3 + $0x100] sm:$0xf]
      %v1584 = vld [vmem:[%s3 + $0x104] sm:$0xf]
      %v1585 = vld [vmem:[%s3 + $0x108] sm:$0xf]
      %v1586 = vld [vmem:[%s3 + $0x10c] sm:$0xf]
      %v1587 = vld [vmem:[%s3 + $0x110] sm:$0xf]
      %v1588 = vld [vmem:[%s3 + $0x114] sm:$0xf]
      %v1589 = vld [vmem:[%s3 + $0x118] sm:$0xf]
      %v1590 = vld [vmem:[%s3 + $0x11c] sm:$0xf]
      %v1591 = vld [vmem:[%s3 + $0x120] sm:$0xf]
      %v1592 = vld [vmem:[%s3 + $0x124] sm:$0xf]
      %v1593 = vld [vmem:[%s3 + $0x128] sm:$0xf]
      %v1594 = vld [vmem:[%s3 + $0x12c] sm:$0xf]
      %v1595 = vld [vmem:[%s3 + $0x130] sm:$0xf]
      %v1596 = vld [vmem:[%s3 + $0x134] sm:$0xf]
      %v1597 = vld [vmem:[%s3 + $0x138] sm:$0xf]
      %v1598 = vld [vmem:[%s3 + $0x13c] sm:$0xf]
      %v1599 = vld [vmem:[%s3 + $0x140] sm:$0xf]
      %v1600 = vld [vmem:[%s3 + $0x144] sm:$0xf]
      %v1601 = vld [vmem:[%s3 + $0x148] sm:$0xf]
      %v1602 = vld [vmem:[%s3 + $0x14c] sm:$0xf]
      %v1603 = vld [vmem:[%s3 + $0x150] sm:$0xf]
      %v1604 = vld [vmem:[%s3 + $0x154] sm:$0xf]
      %v1605 = vld [vmem:[%s3 + $0x158] sm:$0xf]
      %v1606 = vld [vmem:[%s3 + $0x15c] sm:$0xf]
      %v1607 = vld [vmem:[%s3 + $0x160] sm:$0xf]
      %v1608 = vld [vmem:[%s3 + $0x164] sm:$0xf]
      %v1609 = vld [vmem:[%s3 + $0x168] sm:$0xf]
      %v1610 = vld [vmem:[%s3 + $0x16c] sm:$0xf]
      %v1611 = vld [vmem:[%s3 + $0x170] sm:$0xf]
      %v1612 = vld [vmem:[%s3 + $0x174] sm:$0xf]
      %v1613 = vld [vmem:[%s3 + $0x178] sm:$0xf]
      %v1614 = vld [vmem:[%s3 + $0x17c] sm:$0xf]
      %v1615 = vld [vmem:[%s3 + $0x180] sm:$0xf]
      %v1616 = vld [vmem:[%s3 + $0x184] sm:$0xf]
      %v1617 = vld [vmem:[%s3 + $0x188] sm:$0xf]
      %v1618 = vld [vmem:[%s3 + $0x18c] sm:$0xf]
      %v1619 = vld [vmem:[%s3 + $0x190] sm:$0xf]
      %v1620 = vld [vmem:[%s3 + $0x194] sm:$0xf]
      %v1621 = vld [vmem:[%s3 + $0x198] sm:$0xf]
      %v1622 = vld [vmem:[%s3 + $0x19c] sm:$0xf]
      %v1623 = vld [vmem:[%s3 + $0x1a0] sm:$0xf]
      %v1624 = vld [vmem:[%s3 + $0x1a4] sm:$0xf]
      %v1625 = vld [vmem:[%s3 + $0x1a8] sm:$0xf]
      %v1626 = vld [vmem:[%s3 + $0x1ac] sm:$0xf]
      %v1627 = vld [vmem:[%s3 + $0x1b0] sm:$0xf]
      %v1628 = vld [vmem:[%s3 + $0x1b4] sm:$0xf]
      %v1629 = vld [vmem:[%s3 + $0x1b8] sm:$0xf]
      %v1630 = vld [vmem:[%s3 + $0x1bc] sm:$0xf]
      %v1631 = vld [vmem:[%s3 + $0x1c0] sm:$0xf]
      %v1632 = vld [vmem:[%s3 + $0x1c4] sm:$0xf]
      %v1633 = vld [vmem:[%s3 + $0x1c8] sm:$0xf]
      %v1634 = vld [vmem:[%s3 + $0x1cc] sm:$0xf]
      %v1635 = vld [vmem:[%s3 + $0x1d0] sm:$0xf]
      %v1636 = vld [vmem:[%s3 + $0x1d4] sm:$0xf]
      %v1637 = vld [vmem:[%s3 + $0x1d8] sm:$0xf]
      %v1638 = vld [vmem:[%s3 + $0x1dc] sm:$0xf]
      %v1639 = vld [vmem:[%s3 + $0x1e0] sm:$0xf]
      %v1640 = vld [vmem:[%s3 + $0x1e4] sm:$0xf]
      %v1641 = vld [vmem:[%s3 + $0x1e8] sm:$0xf]
      %v1642 = vld [vmem:[%s3 + $0x1ec] sm:$0xf]
      %v1643 = vld [vmem:[%s3 + $0x1f0] sm:$0xf]
      %v1644 = vld [vmem:[%s3 + $0x1f4] sm:$0xf]
      %v1645 = vld [vmem:[%s3 + $0x1f8] sm:$0xf]
      %v1646 = vld [vmem:[%s3 + $0x1fc] sm:$0xf]
      %v1647 = vld [vmem:[%s3 + $0x200] sm:$0xf]
      %v1648 = vld [vmem:[%s3 + $0x204] sm:$0xf]
      %v1649 = vld [vmem:[%s3 + $0x208] sm:$0xf]
      %v1650 = vld [vmem:[%s3 + $0x20c] sm:$0xf]
      %v1651 = vld [vmem:[%s3 + $0x210] sm:$0xf]
      %v1652 = vld [vmem:[%s3 + $0x214] sm:$0xf]
      %v1653 = vld [vmem:[%s3 + $0x218] sm:$0xf]
      %v1654 = vld [vmem:[%s3 + $0x21c] sm:$0xf]
      %v1655 = vld [vmem:[%s3 + $0x220] sm:$0xf]
      %v1656 = vld [vmem:[%s3 + $0x224] sm:$0xf]
      %v1657 = vld [vmem:[%s3 + $0x228] sm:$0xf]
      %v1658 = vld [vmem:[%s3 + $0x22c] sm:$0xf]
      %v1659 = vld [vmem:[%s3 + $0x230] sm:$0xf]
      %v1660 = vld [vmem:[%s3 + $0x234] sm:$0xf]
      %v1661 = vld [vmem:[%s3 + $0x238] sm:$0xf]
      %v1662 = vld [vmem:[%s3 + $0x23c] sm:$0xf]
      %v1807 = vunpack.c.l.b16 %v1519
      %v1808 = vunpack.c.l.b16 %v1520
      %v1809 = vunpack.c.l.b16 %v1521
      %v1810 = vunpack.c.l.b16 %v1522
      %v1811 = vunpack.c.l.b16 %v1523
      %v1812 = vunpack.c.l.b16 %v1524
      %v1813 = vunpack.c.l.b16 %v1525
      %v1814 = vunpack.c.l.b16 %v1526
      %v1815 = vunpack.c.l.b16 %v1527
      %v1816 = vunpack.c.l.b16 %v1528
      %v1817 = vunpack.c.l.b16 %v1529
      %v1818 = vunpack.c.l.b16 %v1530
      %v1819 = vunpack.c.l.b16 %v1531
      %v1820 = vunpack.c.l.b16 %v1532
      %v1821 = vunpack.c.l.b16 %v1533
      %v1822 = vunpack.c.l.b16 %v1534
      %v1823 = vunpack.c.l.b16 %v1535
      %v1824 = vunpack.c.l.b16 %v1536
      %v1825 = vunpack.c.l.b16 %v1537
      %v1826 = vunpack.c.l.b16 %v1538
      %v1827 = vunpack.c.l.b16 %v1539
      %v1828 = vunpack.c.l.b16 %v1540
      %v1829 = vunpack.c.l.b16 %v1541
      %v1830 = vunpack.c.l.b16 %v1542
      %v1831 = vunpack.c.l.b16 %v1543
      %v1832 = vunpack.c.l.b16 %v1544
      %v1833 = vunpack.c.l.b16 %v1545
      %v1834 = vunpack.c.l.b16 %v1546
      %v1835 = vunpack.c.l.b16 %v1547
      %v1836 = vunpack.c.l.b16 %v1548
      %v1837 = vunpack.c.l.b16 %v1549
      %v1838 = vunpack.c.l.b16 %v1550
      %v1839 = vunpack.c.l.b16 %v1551
      %v1840 = vunpack.c.l.b16 %v1552
      %v1841 = vunpack.c.l.b16 %v1553
      %v1842 = vunpack.c.l.b16 %v1554
      %v1843 = vunpack.c.l.b16 %v1555
      %v1844 = vunpack.c.l.b16 %v1556
      %v1845 = vunpack.c.l.b16 %v1557
      %v1846 = vunpack.c.l.b16 %v1558
      %v1847 = vunpack.c.l.b16 %v1559
      %v1848 = vunpack.c.l.b16 %v1560
      %v1849 = vunpack.c.l.b16 %v1561
      %v1850 = vunpack.c.l.b16 %v1562
      %v1851 = vunpack.c.l.b16 %v1563
      %v1852 = vunpack.c.l.b16 %v1564
      %v1853 = vunpack.c.l.b16 %v1565
      %v1854 = vunpack.c.l.b16 %v1566
      %v1855 = vunpack.c.l.b16 %v1567
      %v1856 = vunpack.c.l.b16 %v1568
      %v1857 = vunpack.c.l.b16 %v1569
      %v1858 = vunpack.c.l.b16 %v1570
      %v1859 = vunpack.c.l.b16 %v1571
      %v1860 = vunpack.c.l.b16 %v1572
      %v1861 = vunpack.c.l.b16 %v1573
      %v1862 = vunpack.c.l.b16 %v1574
      %v1863 = vunpack.c.l.b16 %v1575
      %v1864 = vunpack.c.l.b16 %v1576
      %v1865 = vunpack.c.l.b16 %v1577
      %v1866 = vunpack.c.l.b16 %v1578
      %v1867 = vunpack.c.l.b16 %v1579
      %v1868 = vunpack.c.l.b16 %v1580
      %v1869 = vunpack.c.l.b16 %v1581
      %v1870 = vunpack.c.l.b16 %v1582
      %v1871 = vunpack.c.l.b16 %v1583
      %v1872 = vunpack.c.l.b16 %v1584
      %v1873 = vunpack.c.l.b16 %v1585
      %v1874 = vunpack.c.l.b16 %v1586
      %v1875 = vunpack.c.l.b16 %v1587
      %v1876 = vunpack.c.l.b16 %v1588
      %v1877 = vunpack.c.l.b16 %v1589
      %v1878 = vunpack.c.l.b16 %v1590
      %v1879 = vunpack.c.l.b16 %v1591
      %v1880 = vunpack.c.l.b16 %v1592
      %v1881 = vunpack.c.l.b16 %v1593
      %v1882 = vunpack.c.l.b16 %v1594
      %v1883 = vunpack.c.l.b16 %v1595
      %v1884 = vunpack.c.l.b16 %v1596
      %v1885 = vunpack.c.l.b16 %v1597
      %v1886 = vunpack.c.l.b16 %v1598
      %v1887 = vunpack.c.l.b16 %v1599
      %v1888 = vunpack.c.l.b16 %v1600
      %v1889 = vunpack.c.l.b16 %v1601
      %v1890 = vunpack.c.l.b16 %v1602
      %v1891 = vunpack.c.l.b16 %v1603
      %v1892 = vunpack.c.l.b16 %v1604
      %v1893 = vunpack.c.l.b16 %v1605
      %v1894 = vunpack.c.l.b16 %v1606
      %v1895 = vunpack.c.l.b16 %v1607
      %v1896 = vunpack.c.l.b16 %v1608
      %v1897 = vunpack.c.l.b16 %v1609
      %v1898 = vunpack.c.l.b16 %v1610
      %v1899 = vunpack.c.l.b16 %v1611
      %v1900 = vunpack.c.l.b16 %v1612
      %v1901 = vunpack.c.l.b16 %v1613
      %v1902 = vunpack.c.l.b16 %v1614
      %v1903 = vunpack.c.l.b16 %v1615
      %v1904 = vunpack.c.l.b16 %v1616
      %v1905 = vunpack.c.l.b16 %v1617
      %v1906 = vunpack.c.l.b16 %v1618
      %v1907 = vunpack.c.l.b16 %v1619
      %v1908 = vunpack.c.l.b16 %v1620
      %v1909 = vunpack.c.l.b16 %v1621
      %v1910 = vunpack.c.l.b16 %v1622
      %v1911 = vunpack.c.l.b16 %v1623
      %v1912 = vunpack.c.l.b16 %v1624
      %v1913 = vunpack.c.l.b16 %v1625
      %v1914 = vunpack.c.l.b16 %v1626
      %v1915 = vunpack.c.l.b16 %v1627
      %v1916 = vunpack.c.l.b16 %v1628
      %v1917 = vunpack.c.l.b16 %v1629
      %v1918 = vunpack.c.l.b16 %v1630
      %v1919 = vunpack.c.l.b16 %v1631
      %v1920 = vunpack.c.l.b16 %v1632
      %v1921 = vunpack.c.l.b16 %v1633
      %v1922 = vunpack.c.l.b16 %v1634
      %v1923 = vunpack.c.l.b16 %v1635
      %v1924 = vunpack.c.l.b16 %v1636
      %v1925 = vunpack.c.l.b16 %v1637
      %v1926 = vunpack.c.l.b16 %v1638
      %v1927 = vunpack.c.l.b16 %v1639
      %v1928 = vunpack.c.l.b16 %v1640
      %v1929 = vunpack.c.l.b16 %v1641
      %v1930 = vunpack.c.l.b16 %v1642
      %v1931 = vunpack.c.l.b16 %v1643
      %v1932 = vunpack.c.l.b16 %v1644
      %v1933 = vunpack.c.l.b16 %v1645
      %v1934 = vunpack.c.l.b16 %v1646
      %v1935 = vunpack.c.l.b16 %v1647
      %v1936 = vunpack.c.l.b16 %v1648
      %v1937 = vunpack.c.l.b16 %v1649
      %v1938 = vunpack.c.l.b16 %v1650
      %v1939 = vunpack.c.l.b16 %v1651
      %v1940 = vunpack.c.l.b16 %v1652
      %v1941 = vunpack.c.l.b16 %v1653
      %v1942 = vunpack.c.l.b16 %v1654
      %v1943 = vunpack.c.l.b16 %v1655
      %v1944 = vunpack.c.l.b16 %v1656
      %v1945 = vunpack.c.l.b16 %v1657
      %v1946 = vunpack.c.l.b16 %v1658
      %v1947 = vunpack.c.l.b16 %v1659
      %v1948 = vunpack.c.l.b16 %v1660
      %v1949 = vunpack.c.l.b16 %v1661
      %v1950 = vunpack.c.l.b16 %v1662
      %v1951 = vpack.c.b16 %v1808, %v1807
      %v1952 = vpack.c.b16 %v1810, %v1809
      %v1953 = vpack.c.b16 %v1812, %v1811
      %v1954 = vpack.c.b16 %v1814, %v1813
      %v1955 = vpack.c.b16 %v1816, %v1815
      %v1956 = vpack.c.b16 %v1818, %v1817
      %v1957 = vpack.c.b16 %v1820, %v1819
      %v1958 = vpack.c.b16 %v1822, %v1821
      %v1959 = vpack.c.b16 %v1824, %v1823
      %v1960 = vpack.c.b16 %v1826, %v1825
      %v1961 = vpack.c.b16 %v1828, %v1827
      %v1962 = vpack.c.b16 %v1830, %v1829
      %v1963 = vpack.c.b16 %v1832, %v1831
      %v1964 = vpack.c.b16 %v1834, %v1833
      %v1965 = vpack.c.b16 %v1836, %v1835
      %v1966 = vpack.c.b16 %v1838, %v1837
      %v1967 = vpack.c.b16 %v1840, %v1839
      %v1968 = vpack.c.b16 %v1842, %v1841
      %v1969 = vpack.c.b16 %v1844, %v1843
      %v1970 = vpack.c.b16 %v1846, %v1845
      %v1971 = vpack.c.b16 %v1848, %v1847
      %v1972 = vpack.c.b16 %v1850, %v1849
      %v1973 = vpack.c.b16 %v1852, %v1851
      %v1974 = vpack.c.b16 %v1854, %v1853
      %v1975 = vpack.c.b16 %v1856, %v1855
      %v1976 = vpack.c.b16 %v1858, %v1857
      %v1977 = vpack.c.b16 %v1860, %v1859
      %v1978 = vpack.c.b16 %v1862, %v1861
      %v1979 = vpack.c.b16 %v1864, %v1863
      %v1980 = vpack.c.b16 %v1866, %v1865
      %v1981 = vpack.c.b16 %v1868, %v1867
      %v1982 = vpack.c.b16 %v1870, %v1869
      %v1983 = vpack.c.b16 %v1872, %v1871
      %v1984 = vpack.c.b16 %v1874, %v1873
      %v1985 = vpack.c.b16 %v1876, %v1875
      %v1986 = vpack.c.b16 %v1878, %v1877
      %v1987 = vpack.c.b16 %v1880, %v1879
      %v1988 = vpack.c.b16 %v1882, %v1881
      %v1989 = vpack.c.b16 %v1884, %v1883
      %v1990 = vpack.c.b16 %v1886, %v1885
      %v1991 = vpack.c.b16 %v1888, %v1887
      %v1992 = vpack.c.b16 %v1890, %v1889
      %v1993 = vpack.c.b16 %v1892, %v1891
      %v1994 = vpack.c.b16 %v1894, %v1893
      %v1995 = vpack.c.b16 %v1896, %v1895
      %v1996 = vpack.c.b16 %v1898, %v1897
      %v1997 = vpack.c.b16 %v1900, %v1899
      %v1998 = vpack.c.b16 %v1902, %v1901
      %v1999 = vpack.c.b16 %v1904, %v1903
      %v2000 = vpack.c.b16 %v1906, %v1905
      %v2001 = vpack.c.b16 %v1908, %v1907
      %v2002 = vpack.c.b16 %v1910, %v1909
      %v2003 = vpack.c.b16 %v1912, %v1911
      %v2004 = vpack.c.b16 %v1914, %v1913
      %v2005 = vpack.c.b16 %v1916, %v1915
      %v2006 = vpack.c.b16 %v1918, %v1917
      %v2007 = vpack.c.b16 %v1920, %v1919
      %v2008 = vpack.c.b16 %v1922, %v1921
      %v2009 = vpack.c.b16 %v1924, %v1923
      %v2010 = vpack.c.b16 %v1926, %v1925
      %v2011 = vpack.c.b16 %v1928, %v1927
      %v2012 = vpack.c.b16 %v1930, %v1929
      %v2013 = vpack.c.b16 %v1932, %v1931
      %v2014 = vpack.c.b16 %v1934, %v1933
      %v2015 = vpack.c.b16 %v1936, %v1935
      %v2016 = vpack.c.b16 %v1938, %v1937
      %v2017 = vpack.c.b16 %v1940, %v1939
      %v2018 = vpack.c.b16 %v1942, %v1941
      %v2019 = vpack.c.b16 %v1944, %v1943
      %v2020 = vpack.c.b16 %v1946, %v1945
      %v2021 = vpack.c.b16 %v1948, %v1947
      %v2022 = vpack.c.b16 %v1950, %v1949
      %2095 = vmatprep.subr.bf16.mxu0 0
      %2096 = vmatpush1.bf16.msra.mxu0 %v1958
      %2097 = vmatprep.subr.bf16.mxu0 0
      %2098 = vmatpush1.bf16.msra.mxu0 %v1957
      %2099 = vmatprep.subr.bf16.mxu0 0
      %2100 = vmatpush1.bf16.msra.mxu0 %v1956
      %2101 = vmatprep.subr.bf16.mxu0 0
      %2102 = vmatpush1.bf16.msra.mxu0 %v1955
      %2103 = vmatprep.subr.bf16.mxu0 0
      %2104 = vmatpush1.bf16.msra.mxu0 %v1954
      %2105 = vmatprep.subr.bf16.mxu0 0
      %2106 = vmatpush1.bf16.msra.mxu0 %v1953
      %2107 = vmatprep.subr.bf16.mxu0 0
      %2108 = vmatpush1.bf16.msra.mxu0 %v1952
      %2109 = vmatprep.subr.bf16.mxu0 0
      %2110 = vmatpush1.bf16.msra.mxu0 %v1951
      %2111 = vmatprep.subr.bf16.mxu0 0
      %2112 = vmatpush2.bf16.msra.mxu0 %v1966
      %2113 = vmatprep.subr.bf16.mxu0 0
      %2114 = vmatpush2.bf16.msra.mxu0 %v1965
      %2115 = vmatprep.subr.bf16.mxu0 0
      %2116 = vmatpush2.bf16.msra.mxu0 %v1964
      %2117 = vmatprep.subr.bf16.mxu0 0
      %2118 = vmatpush2.bf16.msra.mxu0 %v1963
      %2119 = vmatprep.subr.bf16.mxu0 0
      %2120 = vmatpush2.bf16.msra.mxu0 %v1962
      %2121 = vmatprep.subr.bf16.mxu0 0
      %2122 = vmatpush2.bf16.msra.mxu0 %v1961
      %2123 = vmatprep.subr.bf16.mxu0 0
      %2124 = vmatpush2.bf16.msra.mxu0 %v1960
      %2125 = vmatprep.subr.bf16.mxu0 0
      %2126 = vmatpush2.bf16.msra.mxu0 %v1959
      %2127 = vmatprep.mubr.bf16.mxu0 %v1383
      %2128 = vmatmul.mubr.bf16.gmra.mxu0 %v1367
      %v2129 = vpop.f32.mrf.mxu0
      %v2130 = vadd.f32 0.0, %v2129
      %v2131 = vpop.f32.mrf.mxu0
      %v2132 = vpop.f32.mrf.mxu0
      %v2133 = vadd.f32 0.0, %v2132
      %v2134 = vpop.f32.mrf.mxu0
      %2135 = vmatprep.mubr.bf16.mxu0 %v1384
      %2136 = vmatmul.mubr.bf16.gmra.mxu0 %v1368
      %v2137 = vpop.f32.mrf.mxu0
      %v2138 = vadd.f32 0.0, %v2137
      %v2139 = vpop.f32.mrf.mxu0
      %v2140 = vpop.f32.mrf.mxu0
      %v2141 = vadd.f32 0.0, %v2140
      %v2142 = vpop.f32.mrf.mxu0
      %2143 = vmatprep.mubr.bf16.mxu0 %v1385
      %2144 = vmatmul.mubr.bf16.gmra.mxu0 %v1369
      %v2145 = vpop.f32.mrf.mxu0
      %v2146 = vadd.f32 0.0, %v2145
      %v2147 = vpop.f32.mrf.mxu0
      %v2148 = vpop.f32.mrf.mxu0
      %v2149 = vadd.f32 0.0, %v2148
      %v2150 = vpop.f32.mrf.mxu0
      %2151 = vmatprep.mubr.bf16.mxu0 %v1386
      %2152 = vmatmul.mubr.bf16.gmra.mxu0 %v1370
      %v2153 = vpop.f32.mrf.mxu0
      %v2154 = vadd.f32 0.0, %v2153
      %v2155 = vpop.f32.mrf.mxu0
      %v2156 = vpop.f32.mrf.mxu0
      %v2157 = vadd.f32 0.0, %v2156
      %v2158 = vpop.f32.mrf.mxu0
      %2159 = vdwg.mxu0
      %2160 = vmatprep.subr.bf16.mxu0 0
      %2161 = vmatpush1.bf16.msra.mxu0 %v1974
      %2162 = vmatprep.subr.bf16.mxu0 0
      %2163 = vmatpush1.bf16.msra.mxu0 %v1973
      %2164 = vmatprep.subr.bf16.mxu0 0
      %2165 = vmatpush1.bf16.msra.mxu0 %v1972
      %2166 = vmatprep.subr.bf16.mxu0 0
      %2167 = vmatpush1.bf16.msra.mxu0 %v1971
      %2168 = vmatprep.subr.bf16.mxu0 0
      %2169 = vmatpush1.bf16.msra.mxu0 %v1970
      %2170 = vmatprep.subr.bf16.mxu0 0
      %2171 = vmatpush1.bf16.msra.mxu0 %v1969
      %2172 = vmatprep.subr.bf16.mxu0 0
      %2173 = vmatpush1.bf16.msra.mxu0 %v1968
      %2174 = vmatprep.subr.bf16.mxu0 0
      %2175 = vmatpush1.bf16.msra.mxu0 %v1967
      %2176 = vmatprep.subr.bf16.mxu0 0
      %2177 = vmatpush2.bf16.msra.mxu0 %v1982
      %2178 = vmatprep.subr.bf16.mxu0 0
      %2179 = vmatpush2.bf16.msra.mxu0 %v1981
      %2180 = vmatprep.subr.bf16.mxu0 0
      %2181 = vmatpush2.bf16.msra.mxu0 %v1980
      %2182 = vmatprep.subr.bf16.mxu0 0
      %2183 = vmatpush2.bf16.msra.mxu0 %v1979
      %2184 = vmatprep.subr.bf16.mxu0 0
      %2185 = vmatpush2.bf16.msra.mxu0 %v1978
      %2186 = vmatprep.subr.bf16.mxu0 0
      %2187 = vmatpush2.bf16.msra.mxu0 %v1977
      %2188 = vmatprep.subr.bf16.mxu0 0
      %2189 = vmatpush2.bf16.msra.mxu0 %v1976
      %2190 = vmatprep.subr.bf16.mxu0 0
      %2191 = vmatpush2.bf16.msra.mxu0 %v1975
      %2192 = vmatprep.mubr.bf16.mxu0 %v1423
      %2193 = vmatmul.mubr.bf16.gmra.mxu0 %v1399
      %v2194 = vpop.f32.mrf.mxu0
      %v2195 = vadd.f32 %v2130, %v2194
      %v2196 = vpop.f32.mrf.mxu0
      %v2197 = vpop.f32.mrf.mxu0
      %v2198 = vadd.f32 %v2133, %v2197
      %v2199 = vpop.f32.mrf.mxu0
      %2200 = vmatprep.mubr.bf16.mxu0 %v1424
      %2201 = vmatmul.mubr.bf16.gmra.mxu0 %v1400
      %v2202 = vpop.f32.mrf.mxu0
      %v2203 = vadd.f32 %v2138, %v2202
      %v2204 = vpop.f32.mrf.mxu0
      %v2205 = vpop.f32.mrf.mxu0
      %v2206 = vadd.f32 %v2141, %v2205
      %v2207 = vpop.f32.mrf.mxu0
      %2208 = vmatprep.mubr.bf16.mxu0 %v1425
      %2209 = vmatmul.mubr.bf16.gmra.mxu0 %v1401
      %v2210 = vpop.f32.mrf.mxu0
      %v2211 = vadd.f32 %v2146, %v2210
      %v2212 = vpop.f32.mrf.mxu0
      %v2213 = vpop.f32.mrf.mxu0
      %v2214 = vadd.f32 %v2149, %v2213
      %v2215 = vpop.f32.mrf.mxu0
      %2216 = vmatprep.mubr.bf16.mxu0 %v1426
      %2217 = vmatmul.mubr.bf16.gmra.mxu0 %v1402
      %v2218 = vpop.f32.mrf.mxu0
      %v2219 = vadd.f32 %v2154, %v2218
      %v2220 = vpop.f32.mrf.mxu0
      %v2221 = vpop.f32.mrf.mxu0
      %v2222 = vadd.f32 %v2157, %v2221
      %v2223 = vpop.f32.mrf.mxu0
      %2224 = vdwg.mxu0
      %2225 = vmatprep.subr.bf16.mxu0 0
      %2226 = vmatpush1.bf16.msra.mxu0 %v1990
      %2227 = vmatprep.subr.bf16.mxu0 0
      %2228 = vmatpush1.bf16.msra.mxu0 %v1989
      %2229 = vmatprep.subr.bf16.mxu0 0
      %2230 = vmatpush1.bf16.msra.mxu0 %v1988
      %2231 = vmatprep.subr.bf16.mxu0 0
      %2232 = vmatpush1.bf16.msra.mxu0 %v1987
      %2233 = vmatprep.subr.bf16.mxu0 0
      %2234 = vmatpush1.bf16.msra.mxu0 %v1986
      %2235 = vmatprep.subr.bf16.mxu0 0
      %2236 = vmatpush1.bf16.msra.mxu0 %v1985
      %2237 = vmatprep.subr.bf16.mxu0 0
      %2238 = vmatpush1.bf16.msra.mxu0 %v1984
      %2239 = vmatprep.subr.bf16.mxu0 0
      %2240 = vmatpush1.bf16.msra.mxu0 %v1983
      %2241 = vmatprep.subr.bf16.mxu0 0
      %2242 = vmatpush2.bf16.msra.mxu0 %v1998
      %2243 = vmatprep.subr.bf16.mxu0 0
      %2244 = vmatpush2.bf16.msra.mxu0 %v1997
      %2245 = vmatprep.subr.bf16.mxu0 0
      %2246 = vmatpush2.bf16.msra.mxu0 %v1996
      %2247 = vmatprep.subr.bf16.mxu0 0
      %2248 = vmatpush2.bf16.msra.mxu0 %v1995
      %2249 = vmatprep.subr.bf16.mxu0 0
      %2250 = vmatpush2.bf16.msra.mxu0 %v1994
      %2251 = vmatprep.subr.bf16.mxu0 0
      %2252 = vmatpush2.bf16.msra.mxu0 %v1993
      %2253 = vmatprep.subr.bf16.mxu0 0
      %2254 = vmatpush2.bf16.msra.mxu0 %v1992
      %2255 = vmatprep.subr.bf16.mxu0 0
      %2256 = vmatpush2.bf16.msra.mxu0 %v1991
      %2257 = vmatprep.mubr.bf16.mxu0 %v1455
      %2258 = vmatmul.mubr.bf16.gmra.mxu0 %v1439
      %v2259 = vpop.f32.mrf.mxu0
      %v2260 = vadd.f32 %v2195, %v2259
      %v2261 = vpop.f32.mrf.mxu0
      %v2262 = vpop.f32.mrf.mxu0
      %v2263 = vadd.f32 %v2198, %v2262
      %v2264 = vpop.f32.mrf.mxu0
      %2265 = vmatprep.mubr.bf16.mxu0 %v1456
      %2266 = vmatmul.mubr.bf16.gmra.mxu0 %v1440
      %v2267 = vpop.f32.mrf.mxu0
      %v2268 = vadd.f32 %v2203, %v2267
      %v2269 = vpop.f32.mrf.mxu0
      %v2270 = vpop.f32.mrf.mxu0
      %v2271 = vadd.f32 %v2206, %v2270
      %v2272 = vpop.f32.mrf.mxu0
      %2273 = vmatprep.mubr.bf16.mxu0 %v1457
      %2274 = vmatmul.mubr.bf16.gmra.mxu0 %v1441
      %v2275 = vpop.f32.mrf.mxu0
      %v2276 = vadd.f32 %v2211, %v2275
      %v2277 = vpop.f32.mrf.mxu0
      %v2278 = vpop.f32.mrf.mxu0
      %v2279 = vadd.f32 %v2214, %v2278
      %v2280 = vpop.f32.mrf.mxu0
      %2281 = vmatprep.mubr.bf16.mxu0 %v1458
      %2282 = vmatmul.mubr.bf16.gmra.mxu0 %v1442
      %v2283 = vpop.f32.mrf.mxu0
      %v2284 = vadd.f32 %v2219, %v2283
      %v2285 = vpop.f32.mrf.mxu0
      %v2286 = vpop.f32.mrf.mxu0
      %v2287 = vadd.f32 %v2222, %v2286
      %v2288 = vpop.f32.mrf.mxu0
      %2289 = vdwg.mxu0
      %2290 = vmatprep.subr.bf16.mxu0 0
      %2291 = vmatpush1.bf16.msra.mxu0 %v2006
      %2292 = vmatprep.subr.bf16.mxu0 0
      %2293 = vmatpush1.bf16.msra.mxu0 %v2005
      %2294 = vmatprep.subr.bf16.mxu0 0
      %2295 = vmatpush1.bf16.msra.mxu0 %v2004
      %2296 = vmatprep.subr.bf16.mxu0 0
      %2297 = vmatpush1.bf16.msra.mxu0 %v2003
      %2298 = vmatprep.subr.bf16.mxu0 0
      %2299 = vmatpush1.bf16.msra.mxu0 %v2002
      %2300 = vmatprep.subr.bf16.mxu0 0
      %2301 = vmatpush1.bf16.msra.mxu0 %v2001
      %2302 = vmatprep.subr.bf16.mxu0 0
      %2303 = vmatpush1.bf16.msra.mxu0 %v2000
      %2304 = vmatprep.subr.bf16.mxu0 0
      %2305 = vmatpush1.bf16.msra.mxu0 %v1999
      %2306 = vmatprep.subr.bf16.mxu0 0
      %2307 = vmatpush2.bf16.msra.mxu0 %v2014
      %2308 = vmatprep.subr.bf16.mxu0 0
      %2309 = vmatpush2.bf16.msra.mxu0 %v2013
      %2310 = vmatprep.subr.bf16.mxu0 0
      %2311 = vmatpush2.bf16.msra.mxu0 %v2012
      %2312 = vmatprep.subr.bf16.mxu0 0
      %2313 = vmatpush2.bf16.msra.mxu0 %v2011
      %2314 = vmatprep.subr.bf16.mxu0 0
      %2315 = vmatpush2.bf16.msra.mxu0 %v2010
      %2316 = vmatprep.subr.bf16.mxu0 0
      %2317 = vmatpush2.bf16.msra.mxu0 %v2009
      %2318 = vmatprep.subr.bf16.mxu0 0
      %2319 = vmatpush2.bf16.msra.mxu0 %v2008
      %2320 = vmatprep.subr.bf16.mxu0 0
      %2321 = vmatpush2.bf16.msra.mxu0 %v2007
      %2322 = vmatprep.mubr.bf16.mxu0 %v1495
      %2323 = vmatmul.mubr.bf16.gmra.mxu0 %v1479
      %v2324 = vpop.f32.mrf.mxu0
      %v2325 = vadd.f32 %v2260, %v2324
      %v2326 = vpop.f32.mrf.mxu0
      %v2327 = vpop.f32.mrf.mxu0
      %v2328 = vadd.f32 %v2263, %v2327
      %v2329 = vpop.f32.mrf.mxu0
      %2330 = vmatprep.mubr.bf16.mxu0 %v1496
      %2331 = vmatmul.mubr.bf16.gmra.mxu0 %v1480
      %v2332 = vpop.f32.mrf.mxu0
      %v2333 = vadd.f32 %v2268, %v2332
      %v2334 = vpop.f32.mrf.mxu0
      %v2335 = vpop.f32.mrf.mxu0
      %v2336 = vadd.f32 %v2271, %v2335
      %v2337 = vpop.f32.mrf.mxu0
      %2338 = vmatprep.mubr.bf16.mxu0 %v1497
      %2339 = vmatmul.mubr.bf16.gmra.mxu0 %v1481
      %v2340 = vpop.f32.mrf.mxu0
      %v2341 = vadd.f32 %v2276, %v2340
      %v2342 = vpop.f32.mrf.mxu0
      %v2343 = vpop.f32.mrf.mxu0
      %v2344 = vadd.f32 %v2279, %v2343
      %v2345 = vpop.f32.mrf.mxu0
      %2346 = vmatprep.mubr.bf16.mxu0 %v1498
      %2347 = vmatmul.mubr.bf16.gmra.mxu0 %v1482
      %v2348 = vpop.f32.mrf.mxu0
      %v2349 = vadd.f32 %v2284, %v2348
      %v2350 = vpop.f32.mrf.mxu0
      %v2351 = vpop.f32.mrf.mxu0
      %v2352 = vadd.f32 %v2287, %v2351
      %v2353 = vpop.f32.mrf.mxu0
      %2354 = vdwg.mxu0
      %2355 = vmatprep.subr.bf16.mxu0 0
      %2356 = vmatpush1.bf16.msra.mxu0 %v2022
      %2357 = vmatprep.subr.bf16.mxu0 0
      %2358 = vmatpush1.bf16.msra.mxu0 %v2021
      %2359 = vmatprep.subr.bf16.mxu0 0
      %2360 = vmatpush1.bf16.msra.mxu0 %v2020
      %2361 = vmatprep.subr.bf16.mxu0 0
      %2362 = vmatpush1.bf16.msra.mxu0 %v2019
      %2363 = vmatprep.subr.bf16.mxu0 0
      %2364 = vmatpush1.bf16.msra.mxu0 %v2018
      %2365 = vmatprep.subr.bf16.mxu0 0
      %2366 = vmatpush1.bf16.msra.mxu0 %v2017
      %2367 = vmatprep.subr.bf16.mxu0 0
      %2368 = vmatpush1.bf16.msra.mxu0 %v2016
      %2369 = vmatprep.subr.bf16.mxu0 0
      %2370 = vmatpush1.bf16.msra.mxu0 %v2015
      %2371 = vmatprep.subr.bf16.mxu0 0
      %2372 = vmatpush2.bf16.msra.mxu0 0
      %2373 = vmatprep.subr.bf16.mxu0 0
      %2374 = vmatpush2.bf16.msra.mxu0 0
      %2375 = vmatprep.subr.bf16.mxu0 0
      %2376 = vmatpush2.bf16.msra.mxu0 0
      %2377 = vmatprep.subr.bf16.mxu0 0
      %2378 = vmatpush2.bf16.msra.mxu0 0
      %2379 = vmatprep.subr.bf16.mxu0 0
      %2380 = vmatpush2.bf16.msra.mxu0 0
      %2381 = vmatprep.subr.bf16.mxu0 0
      %2382 = vmatpush2.bf16.msra.mxu0 0
      %2383 = vmatprep.subr.bf16.mxu0 0
      %2384 = vmatpush2.bf16.msra.mxu0 0
      %2385 = vmatprep.subr.bf16.mxu0 0
      %2386 = vmatpush2.bf16.msra.mxu0 0
      %2387 = vmatprep.mubr.bf16.mxu0 0
      %2388 = vmatmul.mubr.bf16.gmra.mxu0 %v1511
      %v2389 = vpop.f32.mrf.mxu0
      %v2390 = vadd.f32 %v2325, %v2389
      %v2391 = vpop.f32.mrf.mxu0
      %v2392 = vpop.f32.mrf.mxu0
      %v2393 = vadd.f32 %v2328, %v2392
      %v2394 = vpop.f32.mrf.mxu0
      %2395 = vmatprep.mubr.bf16.mxu0 0
      %2396 = vmatmul.mubr.bf16.gmra.mxu0 %v1512
      %v2397 = vpop.f32.mrf.mxu0
      %v2398 = vadd.f32 %v2333, %v2397
      %v2399 = vpop.f32.mrf.mxu0
      %v2400 = vpop.f32.mrf.mxu0
      %v2401 = vadd.f32 %v2336, %v2400
      %v2402 = vpop.f32.mrf.mxu0
      %2403 = vmatprep.mubr.bf16.mxu0 0
      %2404 = vmatmul.mubr.bf16.gmra.mxu0 %v1513
      %v2405 = vpop.f32.mrf.mxu0
      %v2406 = vadd.f32 %v2341, %v2405
      %v2407 = vpop.f32.mrf.mxu0
      %v2408 = vpop.f32.mrf.mxu0
      %v2409 = vadd.f32 %v2344, %v2408
      %v2410 = vpop.f32.mrf.mxu0
      %2411 = vmatprep.mubr.bf16.mxu0 0
      %2412 = vmatmul.mubr.bf16.gmra.mxu0 %v1514
      %v2413 = vpop.f32.mrf.mxu0
      %v2414 = vadd.f32 %v2349, %v2413
      %v2415 = vpop.f32.mrf.mxu0
      %v2416 = vpop.f32.mrf.mxu0
      %v2417 = vadd.f32 %v2352, %v2416
      %v2418 = vpop.f32.mrf.mxu0
      %2419 = vdwg.mxu0
      %v2420 = vpack.c.bf16 %v2390, %v2390
      %v2421 = vpack.c.bf16 %v2393, %v2393
      %v2422 = vpack.c.bf16 %v2398, %v2398
      %v2423 = vpack.c.bf16 %v2401, %v2401
      %v2424 = vpack.c.bf16 %v2406, %v2406
      %v2425 = vpack.c.bf16 %v2409, %v2409
      %v2426 = vpack.c.bf16 %v2414, %v2414
      %v2427 = vpack.c.bf16 %v2417, %v2417
      %2428 = vst [vmem:[%s401] sm:$0xf] %v2420
      %2429 = vst [vmem:[%s401 + $0x4] sm:$0xf] %v2421
      %2430 = vst [vmem:[%s401 + $0x8] sm:$0xf] %v2422
      %2431 = vst [vmem:[%s401 + $0xc] sm:$0xf] %v2423
      %2432 = vst [vmem:[%s401 + $0x10] sm:$0xf] %v2424
      %2433 = vst [vmem:[%s401 + $0x14] sm:$0xf] %v2425
      %2434 = vst [vmem:[%s401 + $0x18] sm:$0xf] %v2426
      %2435 = vst [vmem:[%s401 + $0x1c] sm:$0xf] %v2427
      %v2436 = vadd.f32 %v2390, %v2393
      %v2437 = vadd.f32 %v2436, %v2398
      %v2438 = vadd.f32 %v2437, %v2401
      %v2439 = vadd.f32 %v2438, %v2406
      %v2440 = vadd.f32 %v2439, %v2409
      %v2441 = vadd.f32 %v2440, %v2414
      %v2442 = vadd.f32 %v2441, %v2417
      %v2443 = vrot.slane %v2442, 4
      %v2444 = vadd.f32 %v2442, %v2443
      %v2445 = vrot.slane %v2444, 2
      %v2446 = vadd.f32 %v2444, %v2445
      %v2447 = vrot.slane %v2446, 1
      %v2448 = vadd.f32 %v2446, %v2447
      %2449 = vst [vmem:[%s409] sm:$0x1] %v2448
      %v2450 = vmul.f32 %v2390, %v2390
      %v2451 = vmul.f32 %v2393, %v2393
      %v2452 = vmul.f32 %v2398, %v2398
      %v2453 = vmul.f32 %v2401, %v2401
      %v2454 = vmul.f32 %v2406, %v2406
      %v2455 = vmul.f32 %v2409, %v2409
      %v2456 = vmul.f32 %v2414, %v2414
      %v2457 = vmul.f32 %v2417, %v2417
      %v2458 = vadd.f32 %v2450, %v2451
      %v2459 = vadd.f32 %v2458, %v2452
      %v2460 = vadd.f32 %v2459, %v2453
      %v2461 = vadd.f32 %v2460, %v2454
      %v2462 = vadd.f32 %v2461, %v2455
      %v2463 = vadd.f32 %v2462, %v2456
      %v2464 = vadd.f32 %v2463, %v2457
      %v2465 = vrot.slane %v2464, 4
      %v2466 = vadd.f32 %v2464, %v2465
      %v2467 = vrot.slane %v2466, 2
      %v2468 = vadd.f32 %v2466, %v2467
      %v2469 = vrot.slane %v2468, 1
      %v2470 = vadd.f32 %v2468, %v2469
      %2471 = vst [vmem:[%s409 + $0x1] sm:$0x1] %v2470
      %s2472 = smul.u32 8, %s22
      %p2473 = scmp.lt.s32.totalorder %s21, 1
      %s2474 = scalar_select %p2473, %s21, 1
      %p2475 = scmp.lt.s32.totalorder %s2472, 7
      %s2476 = scalar_select %p2475, %s2472, 7
      %s2477 = smul.addr %s2474, 8
      %s2478 = sadd.s32 %s2476, %s2477
      %s2479 = smul.addr %s2478, 4
      %s2480 = scalar_lea.vmem %s4, %s2479
      %p2481 = scmp.lt.s32.totalorder %s21, 1
      %s2482 = scalar_select %p2481, %s21, 1
      %p2483 = scmp.lt.s32.totalorder %s22, 0
      %s2484 = scalar_select %p2483, %s22, 0
      %s2485 = sadd.s32 %s2484, %s2482
      %s2486 = smul.addr %s2485, 2
      %s2487 = scalar_lea.vmem %s5, %s2486
      // Predicated region
      $region45: #{down_forward.3} parent=35 // pred_check
        %p2488 = pneg %p170
      $region46: #{down_forward.3} parent=35 // pred_check_branch
        %2490 = sbr.rel (%p2488) target = $region48
      $region47: #{down_forward.3} parent=35 // pred_region
        %s2491 = smul.u32 8, %s22
      $region48: #{down_forward.3} parent=35 // pred_fallthru
        _
      // Predicated region
      $region49: #{down_forward.3} parent=35 // pred_check
        %p2492 = pneg %p198
      $region50: #{down_forward.3} parent=35 // pred_check_branch
        %2494 = sbr.rel (%p2492) target = $region52
      $region51: #{down_forward.3} parent=35 // pred_region
        _
      $region52: #{down_forward.3} parent=35 // pred_fallthru
        _
    $region36: #{down_forward.3} parent=5 // pred_fallthru
      _
    %p2495 = scmp.le.s32.totalorder 2, %s12
    // Predicated region
    $region53: #{down_forward.3} parent=5 // pred_check
      %p2496 = pneg %p2495
    $region54: #{down_forward.3} parent=5 // pred_check_branch
      %2498 = sbr.rel (%p2496) target = $region56
    $region55: #{down_forward.3} parent=5 // pred_region
      %s2499 = ssub.s32 %s12, 2
      // Predicated region
      $region57: #{down_forward.3} parent=55 // pred_check
        %p2500 = pneg %p176
      $region58: #{down_forward.3} parent=55 // pred_check_branch
        %2502 = sbr.rel (%p2500) target = $region60
      $region59: #{down_forward.3} parent=55 // pred_region
        %s2503 = smul.u32 8, %s24
        %p2504 = scmp.lt.s32.totalorder %s23, 1
        %s2505 = scalar_select %p2504, %s23, 1
        %p2506 = scmp.lt.s32.totalorder %s2503, 7
        %s2507 = scalar_select %p2506, %s2503, 7
        %s2508 = smul.addr %s2505, 8
        %s2509 = sadd.s32 %s2507, %s2508
        %s2510 = smul.addr %s2509, 4
        %s2511 = scalar_lea.vmem %s4, %s2510
      $region60: #{down_forward.3} parent=55 // pred_fallthru
        _
      // Predicated region
      $region61: #{down_forward.3} parent=55 // pred_check
        %p2512 = pneg %p204
      $region62: #{down_forward.3} parent=55 // pred_check_branch
        %2514 = sbr.rel (%p2512) target = $region64
      $region63: #{down_forward.3} parent=55 // pred_region
        %p2515 = scmp.lt.s32.totalorder %s23, 1
        %s2516 = scalar_select %p2515, %s23, 1
        %p2517 = scmp.lt.s32.totalorder %s24, 0
        %s2518 = scalar_select %p2517, %s24, 0
        %s2519 = sadd.s32 %s2518, %s2516
        %s2520 = smul.addr %s2519, 2
        %s2521 = scalar_lea.vmem %s5, %s2520
      $region64: #{down_forward.3} parent=55 // pred_fallthru
        _
    $region56: #{down_forward.3} parent=5 // pred_fallthru
      _
  $region6: #{down_forward.3} parent=0 // loop_footer
    %s16 = sadd.s32 1, %s12
  $region7: #{down_forward.3} parent=0 // loop_footer_branch
    %11 = sbr.rel target = $region3
  $region8: #{down_forward.3} parent=0 // loop_exit
    _

</llo_original>
